<compile_context>
chip_gen: v6e
topology: v6e:2x2x1
jax: 0.10.0
libtpu: 0.0.40
codegen_flags: <defaults>
</compile_context>

<pallas_src>
import functools

import jax
import jax.numpy as jnp
from jax.experimental import pallas as pl
from jax.experimental.pallas import tpu as pltpu

LANE = 128


def _round_up(c, m=LANE):
    return ((c + m - 1) // m) * m


@functools.lru_cache(maxsize=None)
def _vmem_limit_bytes():
    cap = 64 * 1024 * 1024
    try:
        cap = int(pltpu.get_tpu_info().vmem_capacity_bytes)
    except Exception:
        pass
    # Leave headroom for compiler-internal scratch; cap per the v6e guidance.
    return int(min(cap * 4 // 5, 112 * 1024 * 1024))


def _pick_row_tile(H):
    # Row-tile height: a multiple of 8 that divides H (needed so the 8-row halo blocks
    # line up with the tile edges); fall back to a single whole-image tile otherwise.
    for th in (64, 32, 16, 8):
        if H % th == 0 and th < H:
            return th
    return H


def _pool2x2(x):
    """2x2 max-pool of a (2r, 2w, c) float32 value -> (r, w, c)."""
    r2, w2, c = x.shape
    x = x.reshape(r2, w2 // 2, 2, c)
    x = jnp.maximum(x[:, :, 0, :], x[:, :, 1, :])      # horizontal max -> (2r, w, c)
    x = x.reshape(r2 // 2, 2, w2 // 2, c)
    return jnp.maximum(x[:, 0], x[:, 1])               # vertical max   -> (r, w, c)


# ----------------------------------------------------------------------------
# Fused per-layer kernel:
#   [2x2 maxpool | prev-layer BN+ReLU on load] -> zero-padded halo tile in VMEM ->
#   9 accumulated bf16 MXU matmuls (+bias) -> bf16 activation tile + BN stat partials.
# ----------------------------------------------------------------------------
def _conv_kernel(*refs, dilation, pool_input, apply_input_bn, has_halo,
                 TH, W, n_row_tiles):
    d = dilation
    idx = 0
    x_ref = refs[idx]; idx += 1
    if has_halo:
        xt_ref = refs[idx]; xb_ref = refs[idx + 1]; idx += 2
    w_ref = refs[idx]; b_ref = refs[idx + 1]; idx += 2
    if apply_input_bn:
        sc_ref = refs[idx]; sh_ref = refs[idx + 1]; idx += 2
    y_ref = refs[idx]; sum_ref = refs[idx + 1]; ssq_ref = refs[idx + 2]; idx += 3
    xpad_ref = refs[idx]

    cin = xpad_ref.shape[2]
    cout_p = y_ref.shape[3]
    i = pl.program_id(1)

    def _prep(v):
        # Fused input path: (conv1) 2x2 max-pool of raw rows, (conv2/3) previous
        # layer's BatchNorm + ReLU applied at load time (saves a full HBM pass).
        v = v.astype(jnp.float32)
        if pool_input:
            v = _pool2x2(v)
        if apply_input_bn:
            v = jnp.maximum(v * sc_ref[...] + sh_ref[...], 0.0)
        return v

    # Zero only the halo frame of the padded scratch; the interior is fully overwritten.
    zrow = jnp.zeros((d, W + 2 * d, cin), jnp.float32)
    zcol = jnp.zeros((TH, d, cin), jnp.float32)
    xpad_ref[0:d, :, :] = zrow
    xpad_ref[TH + d:TH + 2 * d, :, :] = zrow
    xpad_ref[d:TH + d, 0:d, :] = zcol
    xpad_ref[d:TH + d, W + d:W + 2 * d, :] = zcol

    # Interior rows of this row tile.
    xpad_ref[d:TH + d, d:W + d, :] = _prep(x_ref[0, :, :, :])

    # Dilation halo rows from the neighbouring row tiles (edge tiles keep zeros).
    if has_halo:
        hr = 2 if pool_input else d   # rows consumed from each 8-row halo block

        @pl.when(i > 0)
        def _():
            xpad_ref[0:d, d:W + d, :] = _prep(xt_ref[0, 8 - hr:8, :, :])

        @pl.when(i < n_row_tiles - 1)
        def _():
            xpad_ref[TH + d:TH + 2 * d, d:W + d, :] = _prep(xb_ref[0, 0:hr, :, :])

    # 9 accumulated bf16 MXU matmuls reading the tap slices directly (no im2col buffer).
    acc = jnp.zeros((TH * W, cout_p), jnp.float32)
    for ky in range(3):
        for kx in range(3):
            patch = xpad_ref[ky * d:ky * d + TH, kx * d:kx * d + W, :]
            a = patch.reshape(TH * W, cin).astype(jnp.bfloat16)
            acc = acc + jnp.dot(a, w_ref[ky * 3 + kx, :, :],
                                preferred_element_type=jnp.float32)
    y2d = acc + b_ref[...]

    y_ref[0, :, :, :] = y2d.reshape(TH, W, cout_p).astype(y_ref.dtype)
    # Per-grid-step BN partials (reduced over (batch, row tiles) outside the kernel),
    # computed from the f32 accumulator before the bf16 cast.
    sum_ref[...] = jnp.sum(y2d, axis=0).reshape(1, 1, 1, cout_p)
    ssq_ref[...] = jnp.sum(y2d * y2d, axis=0).reshape(1, 1, 1, cout_p)


def _fused_conv(x, w, b, sc, sh, *, dilation, pool_input, apply_input_bn,
                H, W, TH, cout_p):
    N = x.shape[0]
    cin = w.shape[1]
    d = dilation
    assert H % TH == 0
    n_row_tiles = H // TH
    has_halo = n_row_tiles > 1

    r = 2 if pool_input else 1            # input rows per output row
    if has_halo:
        assert TH % 8 == 0 and (r * H) % 8 == 0 and r * d <= 8
    blocks_per_tile = (r * TH) // 8 if has_halo else 1
    n_hblocks = (r * H) // 8 if has_halo else 1

    in_specs = [pl.BlockSpec((1, r * TH, r * W, cin), lambda n, i: (n, i, 0, 0))]
    operands = [x]
    if has_halo:
        # 8-row views of the same array supplying the top / bottom dilation halo.
        in_specs.append(pl.BlockSpec(
            (1, 8, r * W, cin),
            lambda n, i: (n, jnp.maximum(i * blocks_per_tile - 1, 0), 0, 0)))
        in_specs.append(pl.BlockSpec(
            (1, 8, r * W, cin),
            lambda n, i: (n, jnp.minimum((i + 1) * blocks_per_tile,
                                         n_hblocks - 1), 0, 0)))
        operands += [x, x]
    in_specs += [pl.BlockSpec((9, cin, cout_p), lambda n, i: (0, 0, 0)),
                 pl.BlockSpec((1, cout_p), lambda n, i: (0, 0))]
    operands += [w, b]
    if apply_input_bn:
        in_specs += [pl.BlockSpec((1, cin), lambda n, i: (0, 0)),
                     pl.BlockSpec((1, cin), lambda n, i: (0, 0))]
        operands += [sc, sh]

    kernel = functools.partial(
        _conv_kernel, dilation=d, pool_input=pool_input,
        apply_input_bn=apply_input_bn, has_halo=has_halo,
        TH=TH, W=W, n_row_tiles=n_row_tiles)

    return pl.pallas_call(
        kernel,
        out_shape=(
            jax.ShapeDtypeStruct((N, H, W, cout_p), jnp.bfloat16),            # activation
            jax.ShapeDtypeStruct((N, n_row_tiles, 1, cout_p), jnp.float32),   # sum partial
            jax.ShapeDtypeStruct((N, n_row_tiles, 1, cout_p), jnp.float32),   # sumsq partial
        ),
        grid=(N, n_row_tiles),
        in_specs=in_specs,
        out_specs=(
            pl.BlockSpec((1, TH, W, cout_p), lambda n, i: (n, i, 0, 0)),
            pl.BlockSpec((1, 1, 1, cout_p), lambda n, i: (n, i, 0, 0)),
            pl.BlockSpec((1, 1, 1, cout_p), lambda n, i: (n, i, 0, 0)),
        ),
        scratch_shapes=[
            # Zero-padded (halo) input tile; f32 store path, cast to bf16 per tap for MXU.
            pltpu.VMEM((TH + 2 * d, W + 2 * d, cin), jnp.float32),
        ],
        compiler_params=pltpu.CompilerParams(
            dimension_semantics=("parallel", "parallel"),
            vmem_limit_bytes=_vmem_limit_bytes()),
    )(*operands)


# ----------------------------------------------------------------------------
# Final standalone BN + ReLU, with the channel padding stripped in-kernel.
# ----------------------------------------------------------------------------
def _bn_relu_strip_kernel(y_ref, sc_ref, sh_ref, o_ref):
    cout = o_ref.shape[3]
    y = y_ref[0, :, :, 0:cout].astype(jnp.float32)
    o_ref[0, :, :, :] = jnp.maximum(y * sc_ref[...] + sh_ref[...], 0.0)


def _bn_relu_strip(y, scale, shift, cout, TH):
    N, H, W, cp = y.shape
    n_row_tiles = H // TH
    return pl.pallas_call(
        _bn_relu_strip_kernel,
        out_shape=jax.ShapeDtypeStruct((N, H, W, cout), jnp.float32),
        grid=(N, n_row_tiles),
        in_specs=[pl.BlockSpec((1, TH, W, cp), lambda n, i: (n, i, 0, 0)),
                  pl.BlockSpec((1, cout), lambda n, i: (0, 0)),
                  pl.BlockSpec((1, cout), lambda n, i: (0, 0))],
        out_specs=pl.BlockSpec((1, TH, W, cout), lambda n, i: (n, i, 0, 0)),
        compiler_params=pltpu.CompilerParams(
            dimension_semantics=("parallel", "parallel"),
            vmem_limit_bytes=_vmem_limit_bytes()),
    )(y, scale[:, :cout], shift[:, :cout])


# ----------------------------------------------------------------------------
# BN batch statistics -> per-channel affine (training-mode forward, biased variance).
# ----------------------------------------------------------------------------
def _bn_affine(psum, pssq, gamma, beta, count, eps=1e-5):
    s = jnp.sum(psum, axis=(0, 1, 2))
    ss = jnp.sum(pssq, axis=(0, 1, 2))
    mean = s / count
    var = jnp.maximum(ss / count - mean * mean, 0.0)
    scale = gamma / jnp.sqrt(var + eps)
    shift = beta - mean * scale
    return scale.reshape(1, -1), shift.reshape(1, -1)


# ----------------------------------------------------------------------------
# Parameter preparation (bf16 weights, lane-padded output channels).
# ----------------------------------------------------------------------------
def _prep_weight(w, cout_p):
    kh, kw, cin, cout = w.shape
    wp = jnp.pad(w, ((0, 0), (0, 0), (0, 0), (0, cout_p - cout)))
    return wp.reshape(9, cin, cout_p).astype(jnp.bfloat16)


def _pad_vec(v, cp):
    return jnp.pad(v, (0, cp - v.shape[0])).astype(jnp.float32)


# ----------------------------------------------------------------------------
# Down module: MaxPool2d(2,2) -> TripleConv(in_channels, out_channels)
# ----------------------------------------------------------------------------
def down_forward(x_nchw, params):
    N, cin, H0, W0 = x_nchw.shape
    # TODO(synk): PyTorch MaxPool2d(2,2) silently floors odd spatial sizes; even only here.
    assert H0 % 2 == 0 and W0 % 2 == 0
    H, W = H0 // 2, W0 // 2
    cmid = params["w1"].shape[3]
    cout = params["w3"].shape[3]
    cmid_p, cout_p = _round_up(cmid), _round_up(cout)
    count = jnp.float32(N * H * W)
    TH = _pick_row_tile(H)

    # NCHW -> NHWC; keep the real input channel count (no 128-channel padding in HBM).
    x = jnp.transpose(x_nchw, (0, 2, 3, 1)).astype(jnp.float32)

    w1 = _prep_weight(params["w1"], cmid_p)
    w2 = _prep_weight(params["w2"], cmid_p)
    w3 = _prep_weight(params["w3"], cout_p)
    b1 = _pad_vec(params["b1"], cmid_p).reshape(1, -1)
    b2 = _pad_vec(params["b2"], cmid_p).reshape(1, -1)
    b3 = _pad_vec(params["b3"], cout_p).reshape(1, -1)
    g1, be1 = _pad_vec(params["g1"], cmid_p), _pad_vec(params["be1"], cmid_p)
    g2, be2 = _pad_vec(params["g2"], cmid_p), _pad_vec(params["be2"], cmid_p)
    g3, be3 = _pad_vec(params["g3"], cout_p), _pad_vec(params["be3"], cout_p)

    # conv1: 2x2 max-pool fused into the input path; no input BN.
    y1, s1, q1 = _fused_conv(x, w1, b1, None, None, dilation=1, pool_input=True,
                             apply_input_bn=False, H=H, W=W, TH=TH, cout_p=cmid_p)
    sc1, sh1 = _bn_affine(s1, q1, g1, be1, count)

    # conv2 (dilation 2): BN1 + ReLU fused into the input path.
    y2, s2, q2 = _fused_conv(y1, w2, b2, sc1, sh1, dilation=2, pool_input=False,
                             apply_input_bn=True, H=H, W=W, TH=TH, cout_p=cmid_p)
    sc2, sh2 = _bn_affine(s2, q2, g2, be2, count)

    # conv3 (dilation 3): BN2 + ReLU fused into the input path.
    y3, s3, q3 = _fused_conv(y2, w3, b3, sc2, sh2, dilation=3, pool_input=False,
                             apply_input_bn=True, H=H, W=W, TH=TH, cout_p=cout_p)
    sc3, sh3 = _bn_affine(s3, q3, g3, be3, count)

    # Final BN3 + ReLU (the only standalone pass), channel padding stripped in-kernel.
    out = _bn_relu_strip(y3, sc3, sh3, cout, TH)

    # TODO(synk): final NHWC -> NCHW transpose is left to XLA (not fused into the kernel).
    return jnp.transpose(out, (0, 3, 1, 2))


def init_params(key, in_channels, out_channels):
    mid = out_channels
    ks = jax.random.split(key, 6)

    def conv_init(kw, kb, cin, cout):
        fan_in = cin * 9
        bound = 1.0 / jnp.sqrt(jnp.float32(fan_in))
        w = jax.random.uniform(kw, (3, 3, cin, cout), jnp.float32, -bound, bound)
        b = jax.random.uniform(kb, (cout,), jnp.float32, -bound, bound)
        return w, b

    w1, b1 = conv_init(ks[0], ks[1], in_channels, mid)
    w2, b2 = conv_init(ks[2], ks[3], mid, mid)
    w3, b3 = conv_init(ks[4], ks[5], mid, out_channels)
    return {
        "w1": w1, "b1": b1, "g1": jnp.ones((mid,), jnp.float32),
        "be1": jnp.zeros((mid,), jnp.float32),
        "w2": w2, "b2": b2, "g2": jnp.ones((mid,), jnp.float32),
        "be2": jnp.zeros((mid,), jnp.float32),
        "w3": w3, "b3": b3, "g3": jnp.ones((out_channels,), jnp.float32),
        "be3": jnp.zeros((out_channels,), jnp.float32),
    }


if __name__ == "__main__":
    key = jax.random.PRNGKey(0)
    k_x, k_p = jax.random.split(key)

    # Small but large enough spatially (pooled H=W=16 -> two 8-row tiles) to exercise the
    # row-tiled halo path for all three dilations.
    N, Cin, H0, W0 = 2, 4, 32, 32
    Cout = 8
    x = jax.random.normal(k_x, (N, Cin, H0, W0), jnp.float32)
    params = init_params(k_p, Cin, Cout)

    out = down_forward(x, params)
    out = jax.block_until_ready(out)

    assert out.shape == (N, Cout, H0 // 2, W0 // 2)
    print("KERNEL_OK")
</pallas_src>

<mosaic_0001>
module attributes {stable_mosaic.version = 11 : i64} {
  func.func @_conv_kernel(%arg0: i32, %arg1: i32, %arg2: memref<1x16x32x4xf32, #tpu.memory_space<vmem>>, %arg3: memref<1x8x32x4xf32, #tpu.memory_space<vmem>>, %arg4: memref<1x8x32x4xf32, #tpu.memory_space<vmem>>, %arg5: memref<9x4x128xbf16, #tpu.memory_space<vmem>>, %arg6: memref<1x128xf32, #tpu.memory_space<vmem>>, %arg7: memref<1x8x16x128xbf16, #tpu.memory_space<vmem>>, %arg8: memref<1x1x1x128xf32, #tpu.memory_space<vmem>>, %arg9: memref<1x1x1x128xf32, #tpu.memory_space<vmem>>, %arg10: memref<10x18x4xf32, #tpu.memory_space<vmem>>) attributes {dimension_semantics = [#tpu.dimension_semantics<parallel>, #tpu.dimension_semantics<parallel>], iteration_bounds = array<i64: 2, 2>, scalar_prefetch = 0 : i64, scratch_operands = 1 : i64, tpu.core_type = #tpu.core_type<tc>, window_params = [{transform_indices = @transform_0, window_bounds = array<i64: 1, 16, 32, 4>}, {transform_indices = @transform_1, window_bounds = array<i64: 1, 8, 32, 4>}, {transform_indices = @transform_2, window_bounds = array<i64: 1, 8, 32, 4>}, {pipeline_mode = #tpu.pipeline_mode<synchronous>, transform_indices = @transform_3, window_bounds = array<i64: 9, 4, 128>}, {pipeline_mode = #tpu.pipeline_mode<synchronous>, transform_indices = @transform_4, window_bounds = array<i64: 1, 128>}, {transform_indices = @transform_5, window_bounds = array<i64: 1, 8, 16, 128>}, {transform_indices = @transform_6, window_bounds = array<i64: 1, 1, 1, 128>}, {transform_indices = @transform_7, window_bounds = array<i64: 1, 1, 1, 128>}]} {
    %cst = arith.constant 0.000000e+00 : f32
    %0 = vector.broadcast %cst : f32 to vector<1x18x4xf32>
    %cst_0 = arith.constant 0.000000e+00 : f32
    %1 = vector.broadcast %cst_0 : f32 to vector<8x1x4xf32>
    %c0 = arith.constant 0 : index
    %c0_1 = arith.constant 0 : index
    %c0_2 = arith.constant 0 : index
    %2 = vector.load %arg10[%c0, %c0_1, %c0_2] : memref<10x18x4xf32, #tpu.memory_space<vmem>>, vector<1x18x4xf32>
    tpu.vector_store %arg10[%c0, %c0_1, %c0_2], %0 {strides = array<i32>} : memref<10x18x4xf32, #tpu.memory_space<vmem>>, vector<1x18x4xf32>,
    %c9 = arith.constant 9 : index
    %c0_3 = arith.constant 0 : index
    %c0_4 = arith.constant 0 : index
    %3 = vector.load %arg10[%c9, %c0_3, %c0_4] : memref<10x18x4xf32, #tpu.memory_space<vmem>>, vector<1x18x4xf32>
    tpu.vector_store %arg10[%c9, %c0_3, %c0_4], %0 {strides = array<i32>} : memref<10x18x4xf32, #tpu.memory_space<vmem>>, vector<1x18x4xf32>,
    %c1 = arith.constant 1 : index
    %c0_5 = arith.constant 0 : index
    %c0_6 = arith.constant 0 : index
    %4 = vector.load %arg10[%c1, %c0_5, %c0_6] : memref<10x18x4xf32, #tpu.memory_space<vmem>>, vector<8x1x4xf32>
    tpu.vector_store %arg10[%c1, %c0_5, %c0_6], %1 {strides = array<i32>} : memref<10x18x4xf32, #tpu.memory_space<vmem>>, vector<8x1x4xf32>,
    %c1_7 = arith.constant 1 : index
    %c17 = arith.constant 17 : index
    %c0_8 = arith.constant 0 : index
    %5 = vector.load %arg10[%c1_7, %c17, %c0_8] : memref<10x18x4xf32, #tpu.memory_space<vmem>>, vector<8x1x4xf32>
    tpu.vector_store %arg10[%c1_7, %c17, %c0_8], %1 {strides = array<i32>} : memref<10x18x4xf32, #tpu.memory_space<vmem>>, vector<8x1x4xf32>,
    %c0_9 = arith.constant 0 : index
    %c0_10 = arith.constant 0 : index
    %c0_11 = arith.constant 0 : index
    %c0_12 = arith.constant 0 : index
    %6 = vector.load %arg2[%c0_9, %c0_10, %c0_11, %c0_12] : memref<1x16x32x4xf32, #tpu.memory_space<vmem>>, vector<1x16x32x4xf32>
    %7 = vector.shape_cast %6 : vector<1x16x32x4xf32> to vector<16x32x4xf32>
    %8 = vector.shape_cast %7 : vector<16x32x4xf32> to vector<16x16x2x4xf32>
    %9 = vector.extract_strided_slice %8 {offsets = [0, 0, 0, 0], sizes = [16, 16, 1, 4], strides = [1, 1, 1, 1]} : vector<16x16x2x4xf32> to vector<16x16x1x4xf32>
    %10 = vector.shape_cast %9 : vector<16x16x1x4xf32> to vector<16x16x4xf32>
    %11 = vector.extract_strided_slice %8 {offsets = [0, 0, 1, 0], sizes = [16, 16, 1, 4], strides = [1, 1, 1, 1]} : vector<16x16x2x4xf32> to vector<16x16x1x4xf32>
    %12 = vector.shape_cast %11 : vector<16x16x1x4xf32> to vector<16x16x4xf32>
    %13 = arith.maximumf %10, %12 : vector<16x16x4xf32>
    %14 = vector.shape_cast %13 : vector<16x16x4xf32> to vector<8x2x16x4xf32>
    %15 = vector.extract_strided_slice %14 {offsets = [0, 0, 0, 0], sizes = [8, 1, 16, 4], strides = [1, 1, 1, 1]} : vector<8x2x16x4xf32> to vector<8x1x16x4xf32>
    %16 = vector.shape_cast %15 : vector<8x1x16x4xf32> to vector<8x16x4xf32>
    %17 = vector.extract_strided_slice %14 {offsets = [0, 1, 0, 0], sizes = [8, 1, 16, 4], strides = [1, 1, 1, 1]} : vector<8x2x16x4xf32> to vector<8x1x16x4xf32>
    %18 = vector.shape_cast %17 : vector<8x1x16x4xf32> to vector<8x16x4xf32>
    %19 = arith.maximumf %16, %18 : vector<8x16x4xf32>
    %c1_13 = arith.constant 1 : index
    %c1_14 = arith.constant 1 : index
    %c0_15 = arith.constant 0 : index
    %20 = vector.load %arg10[%c1_13, %c1_14, %c0_15] : memref<10x18x4xf32, #tpu.memory_space<vmem>>, vector<8x16x4xf32>
    tpu.vector_store %arg10[%c1_13, %c1_14, %c0_15], %19 {strides = array<i32>} : memref<10x18x4xf32, #tpu.memory_space<vmem>>, vector<8x16x4xf32>,
    %c0_i32 = arith.constant 0 : i32
    %21 = arith.cmpi sgt, %arg1, %c0_i32 : i32
    %22 = arith.extui %21 : i1 to i32
    %c0_i32_16 = arith.constant 0 : i32
    %23 = arith.cmpi ne, %22, %c0_i32_16 : i32
    scf.if %23 {
      %c0_91 = arith.constant 0 : index
      %c6_92 = arith.constant 6 : index
      %c0_93 = arith.constant 0 : index
      %c0_94 = arith.constant 0 : index
      %106 = vector.load %arg3[%c0_91, %c6_92, %c0_93, %c0_94] : memref<1x8x32x4xf32, #tpu.memory_space<vmem>>, vector<1x2x32x4xf32>
      %107 = vector.shape_cast %106 : vector<1x2x32x4xf32> to vector<2x32x4xf32>
      %108 = vector.shape_cast %107 : vector<2x32x4xf32> to vector<2x16x2x4xf32>
      %109 = vector.extract_strided_slice %108 {offsets = [0, 0, 0, 0], sizes = [2, 16, 1, 4], strides = [1, 1, 1, 1]} : vector<2x16x2x4xf32> to vector<2x16x1x4xf32>
      %110 = vector.shape_cast %109 : vector<2x16x1x4xf32> to vector<2x16x4xf32>
      %111 = vector.extract_strided_slice %108 {offsets = [0, 0, 1, 0], sizes = [2, 16, 1, 4], strides = [1, 1, 1, 1]} : vector<2x16x2x4xf32> to vector<2x16x1x4xf32>
      %112 = vector.shape_cast %111 : vector<2x16x1x4xf32> to vector<2x16x4xf32>
      %113 = arith.maximumf %110, %112 : vector<2x16x4xf32>
      %114 = vector.shape_cast %113 : vector<2x16x4xf32> to vector<1x2x16x4xf32>
      %115 = vector.extract_strided_slice %114 {offsets = [0, 0, 0, 0], sizes = [1, 1, 16, 4], strides = [1, 1, 1, 1]} : vector<1x2x16x4xf32> to vector<1x1x16x4xf32>
      %116 = vector.shape_cast %115 : vector<1x1x16x4xf32> to vector<1x16x4xf32>
      %117 = vector.extract_strided_slice %114 {offsets = [0, 1, 0, 0], sizes = [1, 1, 16, 4], strides = [1, 1, 1, 1]} : vector<1x2x16x4xf32> to vector<1x1x16x4xf32>
      %118 = vector.shape_cast %117 : vector<1x1x16x4xf32> to vector<1x16x4xf32>
      %119 = arith.maximumf %116, %118 : vector<1x16x4xf32>
      %c0_95 = arith.constant 0 : index
      %c1_96 = arith.constant 1 : index
      %c0_97 = arith.constant 0 : index
      %120 = vector.load %arg10[%c0_95, %c1_96, %c0_97] : memref<10x18x4xf32, #tpu.memory_space<vmem>>, vector<1x16x4xf32>
      tpu.vector_store %arg10[%c0_95, %c1_96, %c0_97], %119 {strides = array<i32>} : memref<10x18x4xf32, #tpu.memory_space<vmem>>, vector<1x16x4xf32>,
    } else {
    }
    %c1_i32 = arith.constant 1 : i32
    %24 = arith.cmpi slt, %arg1, %c1_i32 : i32
    %25 = arith.extui %24 : i1 to i32
    %c0_i32_17 = arith.constant 0 : i32
    %26 = arith.cmpi ne, %25, %c0_i32_17 : i32
    scf.if %26 {
      %c0_91 = arith.constant 0 : index
      %c0_92 = arith.constant 0 : index
      %c0_93 = arith.constant 0 : index
      %c0_94 = arith.constant 0 : index
      %106 = vector.load %arg4[%c0_91, %c0_92, %c0_93, %c0_94] : memref<1x8x32x4xf32, #tpu.memory_space<vmem>>, vector<1x2x32x4xf32>
      %107 = vector.shape_cast %106 : vector<1x2x32x4xf32> to vector<2x32x4xf32>
      %108 = vector.shape_cast %107 : vector<2x32x4xf32> to vector<2x16x2x4xf32>
      %109 = vector.extract_strided_slice %108 {offsets = [0, 0, 0, 0], sizes = [2, 16, 1, 4], strides = [1, 1, 1, 1]} : vector<2x16x2x4xf32> to vector<2x16x1x4xf32>
      %110 = vector.shape_cast %109 : vector<2x16x1x4xf32> to vector<2x16x4xf32>
      %111 = vector.extract_strided_slice %108 {offsets = [0, 0, 1, 0], sizes = [2, 16, 1, 4], strides = [1, 1, 1, 1]} : vector<2x16x2x4xf32> to vector<2x16x1x4xf32>
      %112 = vector.shape_cast %111 : vector<2x16x1x4xf32> to vector<2x16x4xf32>
      %113 = arith.maximumf %110, %112 : vector<2x16x4xf32>
      %114 = vector.shape_cast %113 : vector<2x16x4xf32> to vector<1x2x16x4xf32>
      %115 = vector.extract_strided_slice %114 {offsets = [0, 0, 0, 0], sizes = [1, 1, 16, 4], strides = [1, 1, 1, 1]} : vector<1x2x16x4xf32> to vector<1x1x16x4xf32>
      %116 = vector.shape_cast %115 : vector<1x1x16x4xf32> to vector<1x16x4xf32>
      %117 = vector.extract_strided_slice %114 {offsets = [0, 1, 0, 0], sizes = [1, 1, 16, 4], strides = [1, 1, 1, 1]} : vector<1x2x16x4xf32> to vector<1x1x16x4xf32>
      %118 = vector.shape_cast %117 : vector<1x1x16x4xf32> to vector<1x16x4xf32>
      %119 = arith.maximumf %116, %118 : vector<1x16x4xf32>
      %c9_95 = arith.constant 9 : index
      %c1_96 = arith.constant 1 : index
      %c0_97 = arith.constant 0 : index
      %120 = vector.load %arg10[%c9_95, %c1_96, %c0_97] : memref<10x18x4xf32, #tpu.memory_space<vmem>>, vector<1x16x4xf32>
      tpu.vector_store %arg10[%c9_95, %c1_96, %c0_97], %119 {strides = array<i32>} : memref<10x18x4xf32, #tpu.memory_space<vmem>>, vector<1x16x4xf32>,
    } else {
    }
    %cst_18 = arith.constant 0.000000e+00 : f32
    %27 = vector.broadcast %cst_18 : f32 to vector<128x128xf32>
    %c0_19 = arith.constant 0 : index
    %c0_20 = arith.constant 0 : index
    %c0_21 = arith.constant 0 : index
    %28 = vector.load %arg10[%c0_19, %c0_20, %c0_21] : memref<10x18x4xf32, #tpu.memory_space<vmem>>, vector<8x16x4xf32>
    %29 = vector.shape_cast %28 : vector<8x16x4xf32> to vector<128x4xf32>
    %30 = arith.truncf %29 : vector<128x4xf32> to vector<128x4xbf16>
    %c0_22 = arith.constant 0 : index
    %c0_23 = arith.constant 0 : index
    %c0_24 = arith.constant 0 : index
    %31 = vector.load %arg5[%c0_22, %c0_23, %c0_24] : memref<9x4x128xbf16, #tpu.memory_space<vmem>>, vector<1x4x128xbf16>
    %32 = vector.shape_cast %31 : vector<1x4x128xbf16> to vector<4x128xbf16>
    %cst_25 = arith.constant dense<0.000000e+00> : vector<128x128xf32>
    %33 = tpu.matmul %30, %32, %cst_25 {dimension_numbers = #tpu.dot_dimension_numbers<[1], [0], [0], [1], [0, 0, 1, 1], [], []>} : vector<128x4xbf16>, vector<4x128xbf16>, vector<128x128xf32> -> vector<128x128xf32>
    %34 = arith.addf %27, %33 : vector<128x128xf32>
    %c0_26 = arith.constant 0 : index
    %c1_27 = arith.constant 1 : index
    %c0_28 = arith.constant 0 : index
    %35 = vector.load %arg10[%c0_26, %c1_27, %c0_28] : memref<10x18x4xf32, #tpu.memory_space<vmem>>, vector<8x16x4xf32>
    %36 = vector.shape_cast %35 : vector<8x16x4xf32> to vector<128x4xf32>
    %37 = arith.truncf %36 : vector<128x4xf32> to vector<128x4xbf16>
    %c1_29 = arith.constant 1 : index
    %c0_30 = arith.constant 0 : index
    %c0_31 = arith.constant 0 : index
    %38 = vector.load %arg5[%c1_29, %c0_30, %c0_31] : memref<9x4x128xbf16, #tpu.memory_space<vmem>>, vector<1x4x128xbf16>
    %39 = vector.shape_cast %38 : vector<1x4x128xbf16> to vector<4x128xbf16>
    %cst_32 = arith.constant dense<0.000000e+00> : vector<128x128xf32>
    %40 = tpu.matmul %37, %39, %cst_32 {dimension_numbers = #tpu.dot_dimension_numbers<[1], [0], [0], [1], [0, 0, 1, 1], [], []>} : vector<128x4xbf16>, vector<4x128xbf16>, vector<128x128xf32> -> vector<128x128xf32>
    %41 = arith.addf %34, %40 : vector<128x128xf32>
    %c0_33 = arith.constant 0 : index
    %c2 = arith.constant 2 : index
    %c0_34 = arith.constant 0 : index
    %42 = vector.load %arg10[%c0_33, %c2, %c0_34] : memref<10x18x4xf32, #tpu.memory_space<vmem>>, vector<8x16x4xf32>
    %43 = vector.shape_cast %42 : vector<8x16x4xf32> to vector<128x4xf32>
    %44 = arith.truncf %43 : vector<128x4xf32> to vector<128x4xbf16>
    %c2_35 = arith.constant 2 : index
    %c0_36 = arith.constant 0 : index
    %c0_37 = arith.constant 0 : index
    %45 = vector.load %arg5[%c2_35, %c0_36, %c0_37] : memref<9x4x128xbf16, #tpu.memory_space<vmem>>, vector<1x4x128xbf16>
    %46 = vector.shape_cast %45 : vector<1x4x128xbf16> to vector<4x128xbf16>
    %cst_38 = arith.constant dense<0.000000e+00> : vector<128x128xf32>
    %47 = tpu.matmul %44, %46, %cst_38 {dimension_numbers = #tpu.dot_dimension_numbers<[1], [0], [0], [1], [0, 0, 1, 1], [], []>} : vector<128x4xbf16>, vector<4x128xbf16>, vector<128x128xf32> -> vector<128x128xf32>
    %48 = arith.addf %41, %47 : vector<128x128xf32>
    %c1_39 = arith.constant 1 : index
    %c0_40 = arith.constant 0 : index
    %c0_41 = arith.constant 0 : index
    %49 = vector.load %arg10[%c1_39, %c0_40, %c0_41] : memref<10x18x4xf32, #tpu.memory_space<vmem>>, vector<8x16x4xf32>
    %50 = vector.shape_cast %49 : vector<8x16x4xf32> to vector<128x4xf32>
    %51 = arith.truncf %50 : vector<128x4xf32> to vector<128x4xbf16>
    %c3 = arith.constant 3 : index
    %c0_42 = arith.constant 0 : index
    %c0_43 = arith.constant 0 : index
    %52 = vector.load %arg5[%c3, %c0_42, %c0_43] : memref<9x4x128xbf16, #tpu.memory_space<vmem>>, vector<1x4x128xbf16>
    %53 = vector.shape_cast %52 : vector<1x4x128xbf16> to vector<4x128xbf16>
    %cst_44 = arith.constant dense<0.000000e+00> : vector<128x128xf32>
    %54 = tpu.matmul %51, %53, %cst_44 {dimension_numbers = #tpu.dot_dimension_numbers<[1], [0], [0], [1], [0, 0, 1, 1], [], []>} : vector<128x4xbf16>, vector<4x128xbf16>, vector<128x128xf32> -> vector<128x128xf32>
    %55 = arith.addf %48, %54 : vector<128x128xf32>
    %c1_45 = arith.constant 1 : index
    %c1_46 = arith.constant 1 : index
    %c0_47 = arith.constant 0 : index
    %56 = vector.load %arg10[%c1_45, %c1_46, %c0_47] : memref<10x18x4xf32, #tpu.memory_space<vmem>>, vector<8x16x4xf32>
    %57 = vector.shape_cast %56 : vector<8x16x4xf32> to vector<128x4xf32>
    %58 = arith.truncf %57 : vector<128x4xf32> to vector<128x4xbf16>
    %c4 = arith.constant 4 : index
    %c0_48 = arith.constant 0 : index
    %c0_49 = arith.constant 0 : index
    %59 = vector.load %arg5[%c4, %c0_48, %c0_49] : memref<9x4x128xbf16, #tpu.memory_space<vmem>>, vector<1x4x128xbf16>
    %60 = vector.shape_cast %59 : vector<1x4x128xbf16> to vector<4x128xbf16>
    %cst_50 = arith.constant dense<0.000000e+00> : vector<128x128xf32>
    %61 = tpu.matmul %58, %60, %cst_50 {dimension_numbers = #tpu.dot_dimension_numbers<[1], [0], [0], [1], [0, 0, 1, 1], [], []>} : vector<128x4xbf16>, vector<4x128xbf16>, vector<128x128xf32> -> vector<128x128xf32>
    %62 = arith.addf %55, %61 : vector<128x128xf32>
    %c1_51 = arith.constant 1 : index
    %c2_52 = arith.constant 2 : index
    %c0_53 = arith.constant 0 : index
    %63 = vector.load %arg10[%c1_51, %c2_52, %c0_53] : memref<10x18x4xf32, #tpu.memory_space<vmem>>, vector<8x16x4xf32>
    %64 = vector.shape_cast %63 : vector<8x16x4xf32> to vector<128x4xf32>
    %65 = arith.truncf %64 : vector<128x4xf32> to vector<128x4xbf16>
    %c5 = arith.constant 5 : index
    %c0_54 = arith.constant 0 : index
    %c0_55 = arith.constant 0 : index
    %66 = vector.load %arg5[%c5, %c0_54, %c0_55] : memref<9x4x128xbf16, #tpu.memory_space<vmem>>, vector<1x4x128xbf16>
    %67 = vector.shape_cast %66 : vector<1x4x128xbf16> to vector<4x128xbf16>
    %cst_56 = arith.constant dense<0.000000e+00> : vector<128x128xf32>
    %68 = tpu.matmul %65, %67, %cst_56 {dimension_numbers = #tpu.dot_dimension_numbers<[1], [0], [0], [1], [0, 0, 1, 1], [], []>} : vector<128x4xbf16>, vector<4x128xbf16>, vector<128x128xf32> -> vector<128x128xf32>
    %69 = arith.addf %62, %68 : vector<128x128xf32>
    %c2_57 = arith.constant 2 : index
    %c0_58 = arith.constant 0 : index
    %c0_59 = arith.constant 0 : index
    %70 = vector.load %arg10[%c2_57, %c0_58, %c0_59] : memref<10x18x4xf32, #tpu.memory_space<vmem>>, vector<8x16x4xf32>
    %71 = vector.shape_cast %70 : vector<8x16x4xf32> to vector<128x4xf32>
    %72 = arith.truncf %71 : vector<128x4xf32> to vector<128x4xbf16>
    %c6 = arith.constant 6 : index
    %c0_60 = arith.constant 0 : index
    %c0_61 = arith.constant 0 : index
    %73 = vector.load %arg5[%c6, %c0_60, %c0_61] : memref<9x4x128xbf16, #tpu.memory_space<vmem>>, vector<1x4x128xbf16>
    %74 = vector.shape_cast %73 : vector<1x4x128xbf16> to vector<4x128xbf16>
    %cst_62 = arith.constant dense<0.000000e+00> : vector<128x128xf32>
    %75 = tpu.matmul %72, %74, %cst_62 {dimension_numbers = #tpu.dot_dimension_numbers<[1], [0], [0], [1], [0, 0, 1, 1], [], []>} : vector<128x4xbf16>, vector<4x128xbf16>, vector<128x128xf32> -> vector<128x128xf32>
    %76 = arith.addf %69, %75 : vector<128x128xf32>
    %c2_63 = arith.constant 2 : index
    %c1_64 = arith.constant 1 : index
    %c0_65 = arith.constant 0 : index
    %77 = vector.load %arg10[%c2_63, %c1_64, %c0_65] : memref<10x18x4xf32, #tpu.memory_space<vmem>>, vector<8x16x4xf32>
    %78 = vector.shape_cast %77 : vector<8x16x4xf32> to vector<128x4xf32>
    %79 = arith.truncf %78 : vector<128x4xf32> to vector<128x4xbf16>
    %c7 = arith.constant 7 : index
    %c0_66 = arith.constant 0 : index
    %c0_67 = arith.constant 0 : index
    %80 = vector.load %arg5[%c7, %c0_66, %c0_67] : memref<9x4x128xbf16, #tpu.memory_space<vmem>>, vector<1x4x128xbf16>
    %81 = vector.shape_cast %80 : vector<1x4x128xbf16> to vector<4x128xbf16>
    %cst_68 = arith.constant dense<0.000000e+00> : vector<128x128xf32>
    %82 = tpu.matmul %79, %81, %cst_68 {dimension_numbers = #tpu.dot_dimension_numbers<[1], [0], [0], [1], [0, 0, 1, 1], [], []>} : vector<128x4xbf16>, vector<4x128xbf16>, vector<128x128xf32> -> vector<128x128xf32>
    %83 = arith.addf %76, %82 : vector<128x128xf32>
    %c2_69 = arith.constant 2 : index
    %c2_70 = arith.constant 2 : index
    %c0_71 = arith.constant 0 : index
    %84 = vector.load %arg10[%c2_69, %c2_70, %c0_71] : memref<10x18x4xf32, #tpu.memory_space<vmem>>, vector<8x16x4xf32>
    %85 = vector.shape_cast %84 : vector<8x16x4xf32> to vector<128x4xf32>
    %86 = arith.truncf %85 : vector<128x4xf32> to vector<128x4xbf16>
    %c8 = arith.constant 8 : index
    %c0_72 = arith.constant 0 : index
    %c0_73 = arith.constant 0 : index
    %87 = vector.load %arg5[%c8, %c0_72, %c0_73] : memref<9x4x128xbf16, #tpu.memory_space<vmem>>, vector<1x4x128xbf16>
    %88 = vector.shape_cast %87 : vector<1x4x128xbf16> to vector<4x128xbf16>
    %cst_74 = arith.constant dense<0.000000e+00> : vector<128x128xf32>
    %89 = tpu.matmul %86, %88, %cst_74 {dimension_numbers = #tpu.dot_dimension_numbers<[1], [0], [0], [1], [0, 0, 1, 1], [], []>} : vector<128x4xbf16>, vector<4x128xbf16>, vector<128x128xf32> -> vector<128x128xf32>
    %90 = arith.addf %83, %89 : vector<128x128xf32>
    %c0_75 = arith.constant 0 : index
    %c0_76 = arith.constant 0 : index
    %91 = vector.load %arg6[%c0_75, %c0_76] : memref<1x128xf32, #tpu.memory_space<vmem>>, vector<1x128xf32>
    %92 = vector.broadcast %91 : vector<1x128xf32> to vector<128x128xf32>
    %93 = arith.addf %90, %92 : vector<128x128xf32>
    %94 = vector.shape_cast %93 : vector<128x128xf32> to vector<8x16x128xf32>
    %95 = arith.truncf %94 : vector<8x16x128xf32> to vector<8x16x128xbf16>
    %c0_77 = arith.constant 0 : index
    %c0_78 = arith.constant 0 : index
    %c0_79 = arith.constant 0 : index
    %c0_80 = arith.constant 0 : index
    %96 = vector.load %arg7[%c0_77, %c0_78, %c0_79, %c0_80] : memref<1x8x16x128xbf16, #tpu.memory_space<vmem>>, vector<1x8x16x128xbf16>
    %97 = vector.shape_cast %96 : vector<1x8x16x128xbf16> to vector<8x16x128xbf16>
    %98 = vector.shape_cast %95 : vector<8x16x128xbf16> to vector<1x8x16x128xbf16>
    tpu.vector_store %arg7[%c0_77, %c0_78, %c0_79, %c0_80], %98 {strides = array<i32>} : memref<1x8x16x128xbf16, #tpu.memory_space<vmem>>, vector<1x8x16x128xbf16>,
    %cst_81 = arith.constant dense<0.000000e+00> : vector<128xf32>
    %99 = vector.multi_reduction <add>, %93, %cst_81 [0] : vector<128x128xf32> to vector<128xf32>
    %100 = vector.shape_cast %99 : vector<128xf32> to vector<1x1x1x128xf32>
    %c0_82 = arith.constant 0 : index
    %c0_83 = arith.constant 0 : index
    %c0_84 = arith.constant 0 : index
    %c0_85 = arith.constant 0 : index
    %101 = vector.load %arg8[%c0_82, %c0_83, %c0_84, %c0_85] : memref<1x1x1x128xf32, #tpu.memory_space<vmem>>, vector<1x1x1x128xf32>
    tpu.vector_store %arg8[%c0_82, %c0_83, %c0_84, %c0_85], %100 {strides = array<i32>} : memref<1x1x1x128xf32, #tpu.memory_space<vmem>>, vector<1x1x1x128xf32>,
    %102 = arith.mulf %93, %93 : vector<128x128xf32>
    %cst_86 = arith.constant dense<0.000000e+00> : vector<128xf32>
    %103 = vector.multi_reduction <add>, %102, %cst_86 [0] : vector<128x128xf32> to vector<128xf32>
    %104 = vector.shape_cast %103 : vector<128xf32> to vector<1x1x1x128xf32>
    %c0_87 = arith.constant 0 : index
    %c0_88 = arith.constant 0 : index
    %c0_89 = arith.constant 0 : index
    %c0_90 = arith.constant 0 : index
    %105 = vector.load %arg9[%c0_87, %c0_88, %c0_89, %c0_90] : memref<1x1x1x128xf32, #tpu.memory_space<vmem>>, vector<1x1x1x128xf32>
    tpu.vector_store %arg9[%c0_87, %c0_88, %c0_89, %c0_90], %104 {strides = array<i32>} : memref<1x1x1x128xf32, #tpu.memory_space<vmem>>, vector<1x1x1x128xf32>,
    return
  }
  func.func @transform_0(%arg0: i32, %arg1: i32) -> (i32, i32, i32, i32) {
    %c0_i32 = arith.constant 0 : i32
    %c0_i32_0 = arith.constant 0 : i32
    %c0_i32_1 = arith.constant 0 : i32
    return %arg0, %arg1, %c0_i32, %c0_i32_0 : i32, i32, i32, i32
  }
  func.func @transform_1(%arg0: i32, %arg1: i32) -> (i32, i32, i32, i32) {
    %c2_i32 = arith.constant 2 : i32
    %0 = arith.muli %arg1, %c2_i32 : i32
    %c1_i32 = arith.constant 1 : i32
    %1 = arith.subi %0, %c1_i32 : i32
    %c0_i32 = arith.constant 0 : i32
    %2 = arith.maxsi %1, %c0_i32 : i32
    %c0_i32_0 = arith.constant 0 : i32
    %c0_i32_1 = arith.constant 0 : i32
    %c0_i32_2 = arith.constant 0 : i32
    return %arg0, %2, %c0_i32_0, %c0_i32_1 : i32, i32, i32, i32
  }
  func.func @transform_2(%arg0: i32, %arg1: i32) -> (i32, i32, i32, i32) {
    %c1_i32 = arith.constant 1 : i32
    %0 = arith.addi %arg1, %c1_i32 : i32
    %c2_i32 = arith.constant 2 : i32
    %1 = arith.muli %0, %c2_i32 : i32
    %c3_i32 = arith.constant 3 : i32
    %2 = arith.minsi %1, %c3_i32 : i32
    %c0_i32 = arith.constant 0 : i32
    %c0_i32_0 = arith.constant 0 : i32
    %c0_i32_1 = arith.constant 0 : i32
    return %arg0, %2, %c0_i32, %c0_i32_0 : i32, i32, i32, i32
  }
  func.func @transform_3(%arg0: i32, %arg1: i32) -> (i32, i32, i32) {
    %c0_i32 = arith.constant 0 : i32
    %c0_i32_0 = arith.constant 0 : i32
    %c0_i32_1 = arith.constant 0 : i32
    %c0_i32_2 = arith.constant 0 : i32
    return %c0_i32, %c0_i32_0, %c0_i32_1 : i32, i32, i32
  }
  func.func @transform_4(%arg0: i32, %arg1: i32) -> (i32, i32) {
    %c0_i32 = arith.constant 0 : i32
    %c0_i32_0 = arith.constant 0 : i32
    %c0_i32_1 = arith.constant 0 : i32
    return %c0_i32, %c0_i32_0 : i32, i32
  }
  func.func @transform_5(%arg0: i32, %arg1: i32) -> (i32, i32, i32, i32) {
    %c0_i32 = arith.constant 0 : i32
    %c0_i32_0 = arith.constant 0 : i32
    %c0_i32_1 = arith.constant 0 : i32
    return %arg0, %arg1, %c0_i32, %c0_i32_0 : i32, i32, i32, i32
  }
  func.func @transform_6(%arg0: i32, %arg1: i32) -> (i32, i32, i32, i32) {
    %c0_i32 = arith.constant 0 : i32
    %c0_i32_0 = arith.constant 0 : i32
    %c0_i32_1 = arith.constant 0 : i32
    return %arg0, %arg1, %c0_i32, %c0_i32_0 : i32, i32, i32, i32
  }
  func.func @transform_7(%arg0: i32, %arg1: i32) -> (i32, i32, i32, i32) {
    %c0_i32 = arith.constant 0 : i32
    %c0_i32_0 = arith.constant 0 : i32
    %c0_i32_1 = arith.constant 0 : i32
    return %arg0, %arg1, %c0_i32, %c0_i32_0 : i32, i32, i32, i32
  }
}

</mosaic_0001>

<llo_original>
// kernel: tpu_custom_call.1
$region0: #{tpu_custom_call.1}
  #allocation0 [shape = 'u32[]', space=smem, size = 0x4, offset = 0x4, fixed_abs, tag = 'smem constant byte address 0x4 - core index']
  #allocation1 [shape = 'u32[144,128]{1,0:T(1,128)}', space=vmem, size = 0x12000, scoped, tag = 'internal scratch']
  #allocation2 [shape = 'f32[10,18,4]{2,1,0:T(8,128)}', space=vmem, size = 0x1e000, scoped, tag = 'scratch operand']
  %s0 = inlined_call_operand.vmem [shape: f32[2,32,32,4], index: 0, kind: input, shape index: {}]
  %s1 = inlined_call_operand.vmem [shape: f32[2,32,32,4], index: 1, kind: input, shape index: {}]
  %s2 = inlined_call_operand.vmem [shape: f32[2,32,32,4], index: 2, kind: input, shape index: {}]
  %s3 = inlined_call_operand.vmem [shape: bf16[9,4,128], index: 3, kind: input, shape index: {}]
  %s4 = inlined_call_operand.vmem [shape: f32[1,128], index: 4, kind: input, shape index: {}]
  %s5 = inlined_call_operand.hbm [shape: bf16[2,16,16,128], index: 5, kind: output, shape index: {0}]
  %s6 = inlined_call_operand.hbm [shape: f32[2,2,1,128], index: 6, kind: output, shape index: {1}]
  %s7 = inlined_call_operand.hbm [shape: f32[2,2,1,128], index: 7, kind: output, shape index: {2}]
  %8 = xla_tuple %s5, %s6, %s7
  %s9 = sld [smem:[#allocation0]]
  $region77: #{tpu_custom_call.1} parent=0
    _
  %s11 = ssub.s32 1, %s9
  %s12 = scalar_select 0, %s11, %s9
  $region1: #{tpu_custom_call.1} parent=0
    #allocation3 [shape = 'u8[65536]{0}', space=vmem, size = 0x10000, scoped, tag = 'output window, operand 0']
    #allocation4 [shape = 's32[2]{0}', space=sflag, size = 0x8, scoped, tag = 'scoped memory for tpu_custom_call.1']
    #allocation5 [shape = 'u8[1024]{0}', space=vmem, size = 0x400, scoped, tag = 'output window, operand 1']
    #allocation6 [shape = 's32[2]{0}', space=sflag, size = 0x8, scoped, tag = 'scoped memory for tpu_custom_call.1']
    #allocation7 [shape = 'u8[1024]{0}', space=vmem, size = 0x400, scoped, tag = 'output window, operand 2']
    %13 = vsyncpa [#allocation4], 0
    %s14 = scalar_lea.sflag [#allocation4], 1
    %15 = vsyncpa %s14, 0
    %16 = vsyncpa [#allocation6], 0
    %s17 = scalar_lea.sflag [#allocation6], 1
    %18 = vsyncpa %s17, 0
    loop: start=0, step=1, limit=6
    $region2: #{tpu_custom_call.1} parent=1 // loop_pre_header
      _
    $region3: #{tpu_custom_call.1} parent=1 // loop_header
      %s20 = sphi 0, %s24
      %p21 = scmp.ge.s32.totalorder %s20, 6
      %s27 = sphi 0, %s39
      %s28 = sphi 0, %s35
      %s29 = sphi 0, %s27
      %s30 = sphi 0, %s28
      %s31 = sphi 0, %s29
      %s32 = sphi 0, %s30
      %s44 = sphi 0, %s46
      %s47 = sphi 0, %s44
      %s48 = sphi 0, %s47
      %s64 = sphi 0, %s48
      %s80 = sphi 0, %s82
      %s83 = sphi 0, %s80
      %s84 = sphi 0, %s83
      %s100 = sphi 0, %s84
      %s116 = sphi 0, %s118
      %s119 = sphi 0, %s116
      %s120 = sphi 0, %s119
      %s136 = sphi 0, %s120
      %s140 = sphi 0, %s140
      %s142 = sphi 0, %s140
      %s143 = sphi 0, %s142
      %s157 = sphi 0, %s143
      %s161 = sphi 0, %s161
      %s163 = sphi 0, %s161
      %s164 = sphi 0, %s163
      %s178 = sphi 0, %s164
      %s186 = sphi 0, %s188
      %s189 = sphi 0, %s186
      %s190 = sphi 0, %s189
      %s206 = sphi 0, %s190
      %s214 = sphi 0, %s216
      %s217 = sphi 0, %s214
      %s218 = sphi 0, %s217
      %s234 = sphi 0, %s218
      %s242 = sphi 0, %s244
      %s245 = sphi 0, %s242
      %s246 = sphi 0, %s245
      %s262 = sphi 0, %s246
    $region4: #{tpu_custom_call.1} parent=1 // loop_header_branch
      %23 = sbr.rel (%p21) target = $region8
    $region5: #{tpu_custom_call.1} parent=1 // loop_body
      %s25 = ssub.s32 %s20, 1
      %s26 = ssub.s32 %s20, 2
      %s33 = sadd.s32 1, %s28
      %p34 = scmp.ge.s32.totalorder %s33, 2
      %s35 = scalar_select %p34, 0, %s33
      %s36 = sadd.s32 1, %s27
      %s37 = scalar_select %p34, %s36, %s27
      %p38 = scmp.ge.s32.totalorder %s37, 2
      %s39 = scalar_select %p38, 0, %s37
      %s40 = ssub.s32 %s27, %s39
      %s41 = ssub.s32 %s28, %s35
      %s42 = sor.u32 %s40, %s41
      %p43 = scmp.eq.s32.totalorder %s42, 0
      %s45 = sadd.s32 %s44, 1
      %s46 = scalar_select %p43, %s44, %s45
      %p49 = pneg %p43
      %p50 = scmp.eq.s32.totalorder %s20, 3
      %p51 = por %p49, %p50
      %p52 = scmp.ne.s32.totalorder %s44, %s47
      %p53 = scmp.eq.s32.totalorder %s20, 0
      %p54 = por %p52, %p53
      %p55 = scmp.ne.s32.totalorder %s44, %s47
      %p56 = scmp.eq.s32.totalorder %s25, 3
      %p57 = por %p55, %p56
      %p58 = scmp.ne.s32.totalorder %s47, %s48
      %p59 = scmp.eq.s32.totalorder %s25, 0
      %p60 = por %p58, %p59
      %p61 = scmp.ne.s32.totalorder %s47, %s48
      %p62 = scmp.eq.s32.totalorder %s26, 3
      %p63 = por %p61, %p62
      %p65 = scmp.ne.s32.totalorder %s48, %s64
      %p66 = scmp.eq.s32.totalorder %s26, 0
      %p67 = por %p65, %p66
      %s68 = smul.u32 %s28, 2
      %s69 = ssub.s32 %s68, 1
      %p70 = scmp.gt.s32.totalorder %s69, 0
      %s71 = scalar_select %p70, %s69, 0
      %s72 = smul.u32 %s35, 2
      %s73 = ssub.s32 %s72, 1
      %p74 = scmp.gt.s32.totalorder %s73, 0
      %s75 = scalar_select %p74, %s73, 0
      %s76 = ssub.s32 %s27, %s39
      %s77 = ssub.s32 %s71, %s75
      %s78 = sor.u32 %s76, %s77
      %p79 = scmp.eq.s32.totalorder %s78, 0
      %s81 = sadd.s32 %s80, 1
      %s82 = scalar_select %p79, %s80, %s81
      %p85 = pneg %p79
      %p86 = scmp.eq.s32.totalorder %s20, 3
      %p87 = por %p85, %p86
      %p88 = scmp.ne.s32.totalorder %s80, %s83
      %p89 = scmp.eq.s32.totalorder %s20, 0
      %p90 = por %p88, %p89
      %p91 = scmp.ne.s32.totalorder %s80, %s83
      %p92 = scmp.eq.s32.totalorder %s25, 3
      %p93 = por %p91, %p92
      %p94 = scmp.ne.s32.totalorder %s83, %s84
      %p95 = scmp.eq.s32.totalorder %s25, 0
      %p96 = por %p94, %p95
      %p97 = scmp.ne.s32.totalorder %s83, %s84
      %p98 = scmp.eq.s32.totalorder %s26, 3
      %p99 = por %p97, %p98
      %p101 = scmp.ne.s32.totalorder %s84, %s100
      %p102 = scmp.eq.s32.totalorder %s26, 0
      %p103 = por %p101, %p102
      %s104 = sadd.s32 %s28, 1
      %s105 = smul.u32 %s104, 2
      %p106 = scmp.lt.s32.totalorder %s105, 3
      %s107 = scalar_select %p106, %s105, 3
      %s108 = sadd.s32 %s35, 1
      %s109 = smul.u32 %s108, 2
      %p110 = scmp.lt.s32.totalorder %s109, 3
      %s111 = scalar_select %p110, %s109, 3
      %s112 = ssub.s32 %s27, %s39
      %s113 = ssub.s32 %s107, %s111
      %s114 = sor.u32 %s112, %s113
      %p115 = scmp.eq.s32.totalorder %s114, 0
      %s117 = sadd.s32 %s116, 1
      %s118 = scalar_select %p115, %s116, %s117
      %p121 = pneg %p115
      %p122 = scmp.eq.s32.totalorder %s20, 3
      %p123 = por %p121, %p122
      %p124 = scmp.ne.s32.totalorder %s116, %s119
      %p125 = scmp.eq.s32.totalorder %s20, 0
      %p126 = por %p124, %p125
      %p127 = scmp.ne.s32.totalorder %s116, %s119
      %p128 = scmp.eq.s32.totalorder %s25, 3
      %p129 = por %p127, %p128
      %p130 = scmp.ne.s32.totalorder %s119, %s120
      %p131 = scmp.eq.s32.totalorder %s25, 0
      %p132 = por %p130, %p131
      %p133 = scmp.ne.s32.totalorder %s119, %s120
      %p134 = scmp.eq.s32.totalorder %s26, 3
      %p135 = por %p133, %p134
      %p137 = scmp.ne.s32.totalorder %s120, %s136
      %p138 = scmp.eq.s32.totalorder %s26, 0
      %p139 = por %p137, %p138
      %s141 = sadd.s32 %s140, 1
      %p144 = scmp.eq.s32.totalorder %s20, 3
      %p145 = scmp.ne.s32.totalorder %s140, %s142
      %p146 = scmp.eq.s32.totalorder %s20, 0
      %p147 = por %p145, %p146
      %p148 = scmp.ne.s32.totalorder %s140, %s142
      %p149 = scmp.eq.s32.totalorder %s25, 3
      %p150 = por %p148, %p149
      %p151 = scmp.ne.s32.totalorder %s142, %s143
      %p152 = scmp.eq.s32.totalorder %s25, 0
      %p153 = por %p151, %p152
      %p154 = scmp.ne.s32.totalorder %s142, %s143
      %p155 = scmp.eq.s32.totalorder %s26, 3
      %p156 = por %p154, %p155
      %p158 = scmp.ne.s32.totalorder %s143, %s157
      %p159 = scmp.eq.s32.totalorder %s26, 0
      %p160 = por %p158, %p159
      %s162 = sadd.s32 %s161, 1
      %p165 = scmp.eq.s32.totalorder %s20, 3
      %p166 = scmp.ne.s32.totalorder %s161, %s163
      %p167 = scmp.eq.s32.totalorder %s20, 0
      %p168 = por %p166, %p167
      %p169 = scmp.ne.s32.totalorder %s161, %s163
      %p170 = scmp.eq.s32.totalorder %s25, 3
      %p171 = por %p169, %p170
      %p172 = scmp.ne.s32.totalorder %s163, %s164
      %p173 = scmp.eq.s32.totalorder %s25, 0
      %p174 = por %p172, %p173
      %p175 = scmp.ne.s32.totalorder %s163, %s164
      %p176 = scmp.eq.s32.totalorder %s26, 3
      %p177 = por %p175, %p176
      %p179 = scmp.ne.s32.totalorder %s164, %s178
      %p180 = scmp.eq.s32.totalorder %s26, 0
      %p181 = por %p179, %p180
      %s182 = ssub.s32 %s27, %s39
      %s183 = ssub.s32 %s28, %s35
      %s184 = sor.u32 %s182, %s183
      %p185 = scmp.eq.s32.totalorder %s184, 0
      %s187 = sadd.s32 %s186, 1
      %s188 = scalar_select %p185, %s186, %s187
      %p191 = pneg %p185
      %p192 = scmp.eq.s32.totalorder %s20, 3
      %p193 = por %p191, %p192
      %p194 = scmp.ne.s32.totalorder %s186, %s189
      %p195 = scmp.eq.s32.totalorder %s20, 0
      %p196 = por %p194, %p195
      %p197 = scmp.ne.s32.totalorder %s186, %s189
      %p198 = scmp.eq.s32.totalorder %s25, 3
      %p199 = por %p197, %p198
      %p200 = scmp.ne.s32.totalorder %s189, %s190
      %p201 = scmp.eq.s32.totalorder %s25, 0
      %p202 = por %p200, %p201
      %p203 = scmp.ne.s32.totalorder %s189, %s190
      %p204 = scmp.eq.s32.totalorder %s26, 3
      %p205 = por %p203, %p204
      %p207 = scmp.ne.s32.totalorder %s190, %s206
      %p208 = scmp.eq.s32.totalorder %s26, 0
      %p209 = por %p207, %p208
      %s210 = ssub.s32 %s27, %s39
      %s211 = ssub.s32 %s28, %s35
      %s212 = sor.u32 %s210, %s211
      %p213 = scmp.eq.s32.totalorder %s212, 0
      %s215 = sadd.s32 %s214, 1
      %s216 = scalar_select %p213, %s214, %s215
      %p219 = pneg %p213
      %p220 = scmp.eq.s32.totalorder %s20, 3
      %p221 = por %p219, %p220
      %p222 = scmp.ne.s32.totalorder %s214, %s217
      %p223 = scmp.eq.s32.totalorder %s20, 0
      %p224 = por %p222, %p223
      %p225 = scmp.ne.s32.totalorder %s214, %s217
      %p226 = scmp.eq.s32.totalorder %s25, 3
      %p227 = por %p225, %p226
      %p228 = scmp.ne.s32.totalorder %s217, %s218
      %p229 = scmp.eq.s32.totalorder %s25, 0
      %p230 = por %p228, %p229
      %p231 = scmp.ne.s32.totalorder %s217, %s218
      %p232 = scmp.eq.s32.totalorder %s26, 3
      %p233 = por %p231, %p232
      %p235 = scmp.ne.s32.totalorder %s218, %s234
      %p236 = scmp.eq.s32.totalorder %s26, 0
      %p237 = por %p235, %p236
      %s238 = ssub.s32 %s27, %s39
      %s239 = ssub.s32 %s28, %s35
      %s240 = sor.u32 %s238, %s239
      %p241 = scmp.eq.s32.totalorder %s240, 0
      %s243 = sadd.s32 %s242, 1
      %s244 = scalar_select %p241, %s242, %s243
      %p247 = pneg %p241
      %p248 = scmp.eq.s32.totalorder %s20, 3
      %p249 = por %p247, %p248
      %p250 = scmp.ne.s32.totalorder %s242, %s245
      %p251 = scmp.eq.s32.totalorder %s20, 0
      %p252 = por %p250, %p251
      %p253 = scmp.ne.s32.totalorder %s242, %s245
      %p254 = scmp.eq.s32.totalorder %s25, 3
      %p255 = por %p253, %p254
      %p256 = scmp.ne.s32.totalorder %s245, %s246
      %p257 = scmp.eq.s32.totalorder %s25, 0
      %p258 = por %p256, %p257
      %p259 = scmp.ne.s32.totalorder %s245, %s246
      %p260 = scmp.eq.s32.totalorder %s26, 3
      %p261 = por %p259, %p260
      %p263 = scmp.ne.s32.totalorder %s246, %s262
      %p264 = scmp.eq.s32.totalorder %s26, 0
      %p265 = por %p263, %p264
      %p266 = scmp.le.s32.totalorder 1, %s20
      %p267 = scmp.lt.s32.totalorder %s20, 5
      %p268 = pnand %p266, %p267
      %p269 = pneg %p268
      // Predicated region
      $region9: #{tpu_custom_call.1} parent=5 // pred_check
        _
      $region10: #{tpu_custom_call.1} parent=5 // pred_check_branch
        %271 = sbr.rel (%p268) target = $region12
      $region11: #{tpu_custom_call.1} parent=5 // pred_region
        %s272 = ssub.s32 %s20, 1
        // Predicated region
        $region13: #{tpu_custom_call.1} parent=11 // pred_check
          %p273 = pneg %p153
        $region14: #{tpu_custom_call.1} parent=11 // pred_check_branch
          %275 = sbr.rel (%p273) target = $region16
        $region15: #{tpu_custom_call.1} parent=11 // pred_region
          _
        $region16: #{tpu_custom_call.1} parent=11 // pred_fallthru
          _
        // Predicated region
        $region17: #{tpu_custom_call.1} parent=11 // pred_check
          %p276 = pneg %p174
        $region18: #{tpu_custom_call.1} parent=11 // pred_check_branch
          %278 = sbr.rel (%p276) target = $region20
        $region19: #{tpu_custom_call.1} parent=11 // pred_region
          _
        $region20: #{tpu_custom_call.1} parent=11 // pred_fallthru
          _
      $region12: #{tpu_custom_call.1} parent=5 // pred_fallthru
        _
      %p279 = scmp.lt.s32.totalorder %s20, 4
      // Predicated region
      $region21: #{tpu_custom_call.1} parent=5 // pred_check
        %p280 = pneg %p279
      $region22: #{tpu_custom_call.1} parent=5 // pred_check_branch
        %282 = sbr.rel (%p280) target = $region24
      $region23: #{tpu_custom_call.1} parent=5 // pred_region
        // Predicated region
        $region25: #{tpu_custom_call.1} parent=23 // pred_check
          %p283 = pneg %p54
        $region26: #{tpu_custom_call.1} parent=23 // pred_check_branch
          %285 = sbr.rel (%p283) target = $region28
        $region27: #{tpu_custom_call.1} parent=23 // pred_region
          %s286 = smul.u32 16, %s28
          %p287 = scmp.lt.s32.totalorder %s27, 1
          %s288 = scalar_select %p287, %s27, 1
          %p289 = scmp.lt.s32.totalorder %s286, 31
          %s290 = scalar_select %p289, %s286, 31
          %s291 = smul.addr %s290, 4
          %s292 = smul.addr %s288, 128
          %s293 = sadd.s32 %s291, %s292
          %s294 = smul.addr %s293, 8
          %s295 = scalar_lea.vmem %s0, %s294
          %s296 = smul.u32 16, %s28
        $region28: #{tpu_custom_call.1} parent=23 // pred_fallthru
          _
        // Predicated region
        $region29: #{tpu_custom_call.1} parent=23 // pred_check
          %p297 = pneg %p90
        $region30: #{tpu_custom_call.1} parent=23 // pred_check_branch
          %299 = sbr.rel (%p297) target = $region32
        $region31: #{tpu_custom_call.1} parent=23 // pred_region
          %s300 = smul.u32 %s28, 2
          %s301 = ssub.s32 %s300, 1
          %p302 = scmp.gt.s32.totalorder %s301, 0
          %s303 = scalar_select %p302, %s301, 0
          %s304 = smul.u32 8, %s303
          %p305 = scmp.lt.s32.totalorder %s27, 1
          %s306 = scalar_select %p305, %s27, 1
          %p307 = scmp.lt.s32.totalorder %s304, 31
          %s308 = scalar_select %p307, %s304, 31
          %s309 = smul.addr %s308, 4
          %s310 = smul.addr %s306, 128
          %s311 = sadd.s32 %s309, %s310
          %s312 = smul.addr %s311, 8
          %s313 = scalar_lea.vmem %s1, %s312
          %s314 = smul.u32 %s28, 2
          %s315 = ssub.s32 %s314, 1
          %p316 = scmp.gt.s32.totalorder %s315, 0
          %s317 = scalar_select %p316, %s315, 0
          %s318 = smul.u32 8, %s317
        $region32: #{tpu_custom_call.1} parent=23 // pred_fallthru
          _
        // Predicated region
        $region33: #{tpu_custom_call.1} parent=23 // pred_check
          %p319 = pneg %p126
        $region34: #{tpu_custom_call.1} parent=23 // pred_check_branch
          %321 = sbr.rel (%p319) target = $region36
        $region35: #{tpu_custom_call.1} parent=23 // pred_region
          %s322 = sadd.s32 %s28, 1
          %s323 = smul.u32 %s322, 2
          %p324 = scmp.lt.s32.totalorder %s323, 3
          %s325 = scalar_select %p324, %s323, 3
          %s326 = smul.u32 8, %s325
          %p327 = scmp.lt.s32.totalorder %s27, 1
          %s328 = scalar_select %p327, %s27, 1
          %p329 = scmp.lt.s32.totalorder %s326, 31
          %s330 = scalar_select %p329, %s326, 31
          %s331 = smul.addr %s330, 4
          %s332 = smul.addr %s328, 128
          %s333 = sadd.s32 %s331, %s332
          %s334 = smul.addr %s333, 8
          %s335 = scalar_lea.vmem %s2, %s334
          %s336 = sadd.s32 %s28, 1
          %s337 = smul.u32 %s336, 2
          %p338 = scmp.lt.s32.totalorder %s337, 3
          %s339 = scalar_select %p338, %s337, 3
          %s340 = smul.u32 8, %s339
        $region36: #{tpu_custom_call.1} parent=23 // pred_fallthru
          _
      $region24: #{tpu_custom_call.1} parent=5 // pred_fallthru
        _
      %p341 = scmp.le.s32.totalorder 1, %s20
      %p342 = scmp.lt.s32.totalorder %s20, 5
      %p343 = pnand %p341, %p342
      %p344 = pneg %p343
      // Predicated region
      $region37: #{tpu_custom_call.1} parent=5 // pred_check
        _
      $region38: #{tpu_custom_call.1} parent=5 // pred_check_branch
        %346 = sbr.rel (%p343) target = $region40
      $region39: #{tpu_custom_call.1} parent=5 // pred_region
        %s347 = ssub.s32 %s20, 1
        %s348 = smul.u32 16, %s30
        %p349 = scmp.lt.s32.totalorder %s29, 1
        %s350 = scalar_select %p349, %s29, 1
        %p351 = scmp.lt.s32.totalorder %s348, 31
        %s352 = scalar_select %p351, %s348, 31
        %s353 = smul.addr %s352, 4
        %s354 = smul.addr %s350, 128
        %s355 = sadd.s32 %s353, %s354
        %s356 = smul.addr %s355, 8
        %s357 = scalar_lea.vmem %s0, %s356
        %p358 = pneg %p60
        %p359 = pneg %p57
        %s360 = smul.u32 %s30, 2
        %s361 = ssub.s32 %s360, 1
        %p362 = scmp.gt.s32.totalorder %s361, 0
        %s363 = scalar_select %p362, %s361, 0
        %s364 = smul.u32 8, %s363
        %p365 = scmp.lt.s32.totalorder %s29, 1
        %s366 = scalar_select %p365, %s29, 1
        %p367 = scmp.lt.s32.totalorder %s364, 31
        %s368 = scalar_select %p367, %s364, 31
        %s369 = smul.addr %s368, 4
        %s370 = smul.addr %s366, 128
        %s371 = sadd.s32 %s369, %s370
        %s372 = smul.addr %s371, 8
        %s373 = scalar_lea.vmem %s1, %s372
        %p374 = pneg %p96
        %p375 = pneg %p93
        %s376 = sadd.s32 %s30, 1
        %s377 = smul.u32 %s376, 2
        %p378 = scmp.lt.s32.totalorder %s377, 3
        %s379 = scalar_select %p378, %s377, 3
        %s380 = smul.u32 8, %s379
        %p381 = scmp.lt.s32.totalorder %s29, 1
        %s382 = scalar_select %p381, %s29, 1
        %p383 = scmp.lt.s32.totalorder %s380, 31
        %s384 = scalar_select %p383, %s380, 31
        %s385 = smul.addr %s384, 4
        %s386 = smul.addr %s382, 128
        %s387 = sadd.s32 %s385, %s386
        %s388 = smul.addr %s387, 8
        %s389 = scalar_lea.vmem %s2, %s388
        %p390 = pneg %p132
        %p391 = pneg %p129
        %p392 = pneg %p153
        %p393 = pneg %p150
        %p394 = pneg %p174
        %p395 = pneg %p171
        %p396 = pneg %p202
        %p397 = pneg %p199
        %s398 = sand.u32 %s189, 1
        %s399 = scalar_lea.sflag [#allocation4], %s398
        %s400 = sand.u32 %s189, 1
        %s401 = smul.addr %s400, 64
        %s402 = scalar_lea.vmem [#allocation3], %s401
        %p403 = pneg %p230
        %p404 = pneg %p227
        %s405 = sand.u32 %s25, 1
        %s406 = scalar_lea.sflag [#allocation6], %s405
        %s407 = sand.u32 %s217, 1
        %s408 = scalar_lea.vmem [#allocation5], %s407
        %p409 = pneg %p258
        %p410 = pneg %p255
        %s411 = sand.u32 %s25, 1
        %s412 = scalar_lea.sflag [#allocation6], %s411
        %s413 = sand.u32 %s245, 1
        %s414 = scalar_lea.vmem [#allocation7], %s413
        %s415 = smul.u32 16, %s30
        %p416 = scmp.lt.s32.totalorder %s29, 1
        %s417 = scalar_select %p416, %s29, 1
        %p418 = scmp.lt.s32.totalorder %s415, 31
        %s419 = scalar_select %p418, %s415, 31
        %s420 = smul.addr %s419, 4
        %s421 = smul.addr %s417, 128
        %s422 = sadd.s32 %s420, %s421
        %s423 = smul.addr %s422, 8
        %s424 = scalar_lea.vmem %s0, %s423
        %s425 = smul.u32 16, %s30
        %s426 = smul.u32 %s30, 2
        %s427 = ssub.s32 %s426, 1
        %p428 = scmp.gt.s32.totalorder %s427, 0
        %s429 = scalar_select %p428, %s427, 0
        %s430 = smul.u32 8, %s429
        %p431 = scmp.lt.s32.totalorder %s29, 1
        %s432 = scalar_select %p431, %s29, 1
        %p433 = scmp.lt.s32.totalorder %s430, 31
        %s434 = scalar_select %p433, %s430, 31
        %s435 = smul.addr %s434, 4
        %s436 = smul.addr %s432, 128
        %s437 = sadd.s32 %s435, %s436
        %s438 = smul.addr %s437, 8
        %s439 = scalar_lea.vmem %s1, %s438
        %s440 = smul.u32 %s30, 2
        %s441 = ssub.s32 %s440, 1
        %p442 = scmp.gt.s32.totalorder %s441, 0
        %s443 = scalar_select %p442, %s441, 0
        %s444 = smul.u32 8, %s443
        %s445 = sadd.s32 %s30, 1
        %s446 = smul.u32 %s445, 2
        %p447 = scmp.lt.s32.totalorder %s446, 3
        %s448 = scalar_select %p447, %s446, 3
        %s449 = smul.u32 8, %s448
        %p450 = scmp.lt.s32.totalorder %s29, 1
        %s451 = scalar_select %p450, %s29, 1
        %p452 = scmp.lt.s32.totalorder %s449, 31
        %s453 = scalar_select %p452, %s449, 31
        %s454 = smul.addr %s453, 4
        %s455 = smul.addr %s451, 128
        %s456 = sadd.s32 %s454, %s455
        %s457 = smul.addr %s456, 8
        %s458 = scalar_lea.vmem %s2, %s457
        %s459 = sadd.s32 %s30, 1
        %s460 = smul.u32 %s459, 2
        %p461 = scmp.lt.s32.totalorder %s460, 3
        %s462 = scalar_select %p461, %s460, 3
        %s463 = smul.u32 8, %s462
        %s464 = smul.u32 8, %s30
        %vm466 = vcmask 31744
        %467 = vst.msk [vmem:[#allocation2] sm:$0xff] %vm466, 0.0
        %468 = vst.msk [vmem:[#allocation2 + $0x8] sm:$0xff] %vm466, 0.0
        %vm469 = vcmask 25600
        %470 = vst.msk [vmem:[#allocation2 + $0x10] sm:$0x3] %vm469, 0.0
        %s471 = scalar_lea.vmem [#allocation2], 216
        %472 = vst.msk [vmem:[%s471] sm:$0xff] %vm466, 0.0
        %473 = vst.msk [vmem:[%s471 + $0x8] sm:$0xff] %vm466, 0.0
        %474 = vst.msk [vmem:[%s471 + $0x10] sm:$0x3] %vm469, 0.0
        %s475 = scalar_lea.vmem [#allocation2], 24
        %vm476 = vcmask 24576
        %477 = vst.msk [vmem:[%s475] sm:$0x1] %vm476, 0.0
        %478 = vst.msk [vmem:[%s475 + $0x18] sm:$0x1] %vm476, 0.0
        %479 = vst.msk [vmem:[%s475 + $0x30] sm:$0x1] %vm476, 0.0
        %480 = vst.msk [vmem:[%s475 + $0x48] sm:$0x1] %vm476, 0.0
        %481 = vst.msk [vmem:[%s475 + $0x60] sm:$0x1] %vm476, 0.0
        %482 = vst.msk [vmem:[%s475 + $0x78] sm:$0x1] %vm476, 0.0
        %483 = vst.msk [vmem:[%s475 + $0x90] sm:$0x1] %vm476, 0.0
        %484 = vst.msk [vmem:[%s475 + $0xa8] sm:$0x1] %vm476, 0.0
        %485 = vst.msk [vmem:[%s475 + $0x11] sm:$0x1] %vm476, 0.0
        %486 = vst.msk [vmem:[%s475 + $0x29] sm:$0x1] %vm476, 0.0
        %487 = vst.msk [vmem:[%s475 + $0x41] sm:$0x1] %vm476, 0.0
        %488 = vst.msk [vmem:[%s475 + $0x59] sm:$0x1] %vm476, 0.0
        %489 = vst.msk [vmem:[%s475 + $0x71] sm:$0x1] %vm476, 0.0
        %490 = vst.msk [vmem:[%s475 + $0x89] sm:$0x1] %vm476, 0.0
        %491 = vst.msk [vmem:[%s475 + $0xa1] sm:$0x1] %vm476, 0.0
        %492 = vst.msk [vmem:[%s475 + $0xb9] sm:$0x1] %vm476, 0.0
        %v493 = vld [vmem:[%s424] sm:$0xff]
        %v494 = vld [vmem:[%s424 + $0x8] sm:$0xff]
        %v495 = vld [vmem:[%s424 + $0x10] sm:$0xff]
        %v496 = vld [vmem:[%s424 + $0x18] sm:$0xff]
        %v497 = vld [vmem:[%s424 + $0x20] sm:$0xff]
        %v498 = vld [vmem:[%s424 + $0x28] sm:$0xff]
        %v499 = vld [vmem:[%s424 + $0x30] sm:$0xff]
        %v500 = vld [vmem:[%s424 + $0x38] sm:$0xff]
        %v501 = vld [vmem:[%s424 + $0x40] sm:$0xff]
        %v502 = vld [vmem:[%s424 + $0x48] sm:$0xff]
        %v503 = vld [vmem:[%s424 + $0x50] sm:$0xff]
        %v504 = vld [vmem:[%s424 + $0x58] sm:$0xff]
        %v505 = vld [vmem:[%s424 + $0x60] sm:$0xff]
        %v506 = vld [vmem:[%s424 + $0x68] sm:$0xff]
        %v507 = vld [vmem:[%s424 + $0x70] sm:$0xff]
        %v508 = vld [vmem:[%s424 + $0x78] sm:$0xff]
        %v509 = vld [vmem:[%s424 + $0x80] sm:$0xff]
        %v510 = vld [vmem:[%s424 + $0x88] sm:$0xff]
        %v511 = vld [vmem:[%s424 + $0x90] sm:$0xff]
        %v512 = vld [vmem:[%s424 + $0x98] sm:$0xff]
        %v513 = vld [vmem:[%s424 + $0xa0] sm:$0xff]
        %v514 = vld [vmem:[%s424 + $0xa8] sm:$0xff]
        %v515 = vld [vmem:[%s424 + $0xb0] sm:$0xff]
        %v516 = vld [vmem:[%s424 + $0xb8] sm:$0xff]
        %v517 = vld [vmem:[%s424 + $0xc0] sm:$0xff]
        %v518 = vld [vmem:[%s424 + $0xc8] sm:$0xff]
        %v519 = vld [vmem:[%s424 + $0xd0] sm:$0xff]
        %v520 = vld [vmem:[%s424 + $0xd8] sm:$0xff]
        %v521 = vld [vmem:[%s424 + $0xe0] sm:$0xff]
        %v522 = vld [vmem:[%s424 + $0xe8] sm:$0xff]
        %v523 = vld [vmem:[%s424 + $0xf0] sm:$0xff]
        %v524 = vld [vmem:[%s424 + $0xf8] sm:$0xff]
        %v525 = vld [vmem:[%s424 + $0x100] sm:$0xff]
        %v526 = vld [vmem:[%s424 + $0x108] sm:$0xff]
        %v527 = vld [vmem:[%s424 + $0x110] sm:$0xff]
        %v528 = vld [vmem:[%s424 + $0x118] sm:$0xff]
        %v529 = vld [vmem:[%s424 + $0x120] sm:$0xff]
        %v530 = vld [vmem:[%s424 + $0x128] sm:$0xff]
        %v531 = vld [vmem:[%s424 + $0x130] sm:$0xff]
        %v532 = vld [vmem:[%s424 + $0x138] sm:$0xff]
        %v533 = vld [vmem:[%s424 + $0x140] sm:$0xff]
        %v534 = vld [vmem:[%s424 + $0x148] sm:$0xff]
        %v535 = vld [vmem:[%s424 + $0x150] sm:$0xff]
        %v536 = vld [vmem:[%s424 + $0x158] sm:$0xff]
        %v537 = vld [vmem:[%s424 + $0x160] sm:$0xff]
        %v538 = vld [vmem:[%s424 + $0x168] sm:$0xff]
        %v539 = vld [vmem:[%s424 + $0x170] sm:$0xff]
        %v540 = vld [vmem:[%s424 + $0x178] sm:$0xff]
        %v541 = vld [vmem:[%s424 + $0x180] sm:$0xff]
        %v542 = vld [vmem:[%s424 + $0x188] sm:$0xff]
        %v543 = vld [vmem:[%s424 + $0x190] sm:$0xff]
        %v544 = vld [vmem:[%s424 + $0x198] sm:$0xff]
        %v545 = vld [vmem:[%s424 + $0x1a0] sm:$0xff]
        %v546 = vld [vmem:[%s424 + $0x1a8] sm:$0xff]
        %v547 = vld [vmem:[%s424 + $0x1b0] sm:$0xff]
        %v548 = vld [vmem:[%s424 + $0x1b8] sm:$0xff]
        %v549 = vld [vmem:[%s424 + $0x1c0] sm:$0xff]
        %v550 = vld [vmem:[%s424 + $0x1c8] sm:$0xff]
        %v551 = vld [vmem:[%s424 + $0x1d0] sm:$0xff]
        %v552 = vld [vmem:[%s424 + $0x1d8] sm:$0xff]
        %v553 = vld [vmem:[%s424 + $0x1e0] sm:$0xff]
        %v554 = vld [vmem:[%s424 + $0x1e8] sm:$0xff]
        %v555 = vld [vmem:[%s424 + $0x1f0] sm:$0xff]
        %v556 = vld [vmem:[%s424 + $0x1f8] sm:$0xff]
        %v621 = vcombine.high %v493, %v493
        %v623 = vunpack.c.l.s4 1983009808
        %v624 = vunpack.c.0.s8 %v623
        %v625 = vlaneseq
        %v626 = vshrl.u32 %v625, 7
        %v627 = vsub.s32 %v624, %v626
        %v628 = vrot.slane %v493, %v627
        %v630 = vunpack.c.l.s4 1983009808
        %v631 = vunpack.c.0.s8 %v630
        %v632 = vlaneseq
        %v633 = vshrl.u32 %v632, 7
        %v634 = vsub.s32 %v631, %v633
        %v635 = vrot.slane %v621, %v634
        %v636 = vcombine.high %v628, %v628
        %v637 = vcombine.high %v635, %v635
        %v638 = vcombine.high %v494, %v494
        %v640 = vunpack.c.l.s4 1983009808
        %v641 = vunpack.c.0.s8 %v640
        %v642 = vlaneseq
        %v643 = vshrl.u32 %v642, 7
        %v644 = vsub.s32 %v641, %v643
        %v645 = vrot.slane %v494, %v644
        %v647 = vunpack.c.l.s4 1983009808
        %v648 = vunpack.c.0.s8 %v647
        %v649 = vlaneseq
        %v650 = vshrl.u32 %v649, 7
        %v651 = vsub.s32 %v648, %v650
        %v652 = vrot.slane %v638, %v651
        %v653 = vcombine.high %v645, %v645
        %v654 = vcombine.high %v652, %v652
        %v655 = vcombine.high %v495, %v495
        %v657 = vunpack.c.l.s4 1983009808
        %v658 = vunpack.c.0.s8 %v657
        %v659 = vlaneseq
        %v660 = vshrl.u32 %v659, 7
        %v661 = vsub.s32 %v658, %v660
        %v662 = vrot.slane %v495, %v661
        %v664 = vunpack.c.l.s4 1983009808
        %v665 = vunpack.c.0.s8 %v664
        %v666 = vlaneseq
        %v667 = vshrl.u32 %v666, 7
        %v668 = vsub.s32 %v665, %v667
        %v669 = vrot.slane %v655, %v668
        %v670 = vcombine.high %v662, %v662
        %v671 = vcombine.high %v669, %v669
        %v672 = vcombine.high %v496, %v496
        %v674 = vunpack.c.l.s4 1983009808
        %v675 = vunpack.c.0.s8 %v674
        %v676 = vlaneseq
        %v677 = vshrl.u32 %v676, 7
        %v678 = vsub.s32 %v675, %v677
        %v679 = vrot.slane %v496, %v678
        %v681 = vunpack.c.l.s4 1983009808
        %v682 = vunpack.c.0.s8 %v681
        %v683 = vlaneseq
        %v684 = vshrl.u32 %v683, 7
        %v685 = vsub.s32 %v682, %v684
        %v686 = vrot.slane %v672, %v685
        %v687 = vcombine.high %v679, %v679
        %v688 = vcombine.high %v686, %v686
        %v689 = vcombine.high %v497, %v497
        %v691 = vunpack.c.l.s4 1983009808
        %v692 = vunpack.c.0.s8 %v691
        %v693 = vlaneseq
        %v694 = vshrl.u32 %v693, 7
        %v695 = vsub.s32 %v692, %v694
        %v696 = vrot.slane %v497, %v695
        %v698 = vunpack.c.l.s4 1983009808
        %v699 = vunpack.c.0.s8 %v698
        %v700 = vlaneseq
        %v701 = vshrl.u32 %v700, 7
        %v702 = vsub.s32 %v699, %v701
        %v703 = vrot.slane %v689, %v702
        %v704 = vcombine.high %v696, %v696
        %v705 = vcombine.high %v703, %v703
        %v706 = vcombine.high %v498, %v498
        %v708 = vunpack.c.l.s4 1983009808
        %v709 = vunpack.c.0.s8 %v708
        %v710 = vlaneseq
        %v711 = vshrl.u32 %v710, 7
        %v712 = vsub.s32 %v709, %v711
        %v713 = vrot.slane %v498, %v712
        %v715 = vunpack.c.l.s4 1983009808
        %v716 = vunpack.c.0.s8 %v715
        %v717 = vlaneseq
        %v718 = vshrl.u32 %v717, 7
        %v719 = vsub.s32 %v716, %v718
        %v720 = vrot.slane %v706, %v719
        %v721 = vcombine.high %v713, %v713
        %v722 = vcombine.high %v720, %v720
        %v723 = vcombine.high %v499, %v499
        %v725 = vunpack.c.l.s4 1983009808
        %v726 = vunpack.c.0.s8 %v725
        %v727 = vlaneseq
        %v728 = vshrl.u32 %v727, 7
        %v729 = vsub.s32 %v726, %v728
        %v730 = vrot.slane %v499, %v729
        %v732 = vunpack.c.l.s4 1983009808
        %v733 = vunpack.c.0.s8 %v732
        %v734 = vlaneseq
        %v735 = vshrl.u32 %v734, 7
        %v736 = vsub.s32 %v733, %v735
        %v737 = vrot.slane %v723, %v736
        %v738 = vcombine.high %v730, %v730
        %v739 = vcombine.high %v737, %v737
        %v740 = vcombine.high %v500, %v500
        %v742 = vunpack.c.l.s4 1983009808
        %v743 = vunpack.c.0.s8 %v742
        %v744 = vlaneseq
        %v745 = vshrl.u32 %v744, 7
        %v746 = vsub.s32 %v743, %v745
        %v747 = vrot.slane %v500, %v746
        %v749 = vunpack.c.l.s4 1983009808
        %v750 = vunpack.c.0.s8 %v749
        %v751 = vlaneseq
        %v752 = vshrl.u32 %v751, 7
        %v753 = vsub.s32 %v750, %v752
        %v754 = vrot.slane %v740, %v753
        %v755 = vcombine.high %v747, %v747
        %v756 = vcombine.high %v754, %v754
        %v757 = vcombine.high %v501, %v501
        %v759 = vunpack.c.l.s4 1983009808
        %v760 = vunpack.c.0.s8 %v759
        %v761 = vlaneseq
        %v762 = vshrl.u32 %v761, 7
        %v763 = vsub.s32 %v760, %v762
        %v764 = vrot.slane %v501, %v763
        %v766 = vunpack.c.l.s4 1983009808
        %v767 = vunpack.c.0.s8 %v766
        %v768 = vlaneseq
        %v769 = vshrl.u32 %v768, 7
        %v770 = vsub.s32 %v767, %v769
        %v771 = vrot.slane %v757, %v770
        %v772 = vcombine.high %v764, %v764
        %v773 = vcombine.high %v771, %v771
        %v774 = vcombine.high %v502, %v502
        %v776 = vunpack.c.l.s4 1983009808
        %v777 = vunpack.c.0.s8 %v776
        %v778 = vlaneseq
        %v779 = vshrl.u32 %v778, 7
        %v780 = vsub.s32 %v777, %v779
        %v781 = vrot.slane %v502, %v780
        %v783 = vunpack.c.l.s4 1983009808
        %v784 = vunpack.c.0.s8 %v783
        %v785 = vlaneseq
        %v786 = vshrl.u32 %v785, 7
        %v787 = vsub.s32 %v784, %v786
        %v788 = vrot.slane %v774, %v787
        %v789 = vcombine.high %v781, %v781
        %v790 = vcombine.high %v788, %v788
        %v791 = vcombine.high %v503, %v503
        %v793 = vunpack.c.l.s4 1983009808
        %v794 = vunpack.c.0.s8 %v793
        %v795 = vlaneseq
        %v796 = vshrl.u32 %v795, 7
        %v797 = vsub.s32 %v794, %v796
        %v798 = vrot.slane %v503, %v797
        %v800 = vunpack.c.l.s4 1983009808
        %v801 = vunpack.c.0.s8 %v800
        %v802 = vlaneseq
        %v803 = vshrl.u32 %v802, 7
        %v804 = vsub.s32 %v801, %v803
        %v805 = vrot.slane %v791, %v804
        %v806 = vcombine.high %v798, %v798
        %v807 = vcombine.high %v805, %v805
        %v808 = vcombine.high %v504, %v504
        %v810 = vunpack.c.l.s4 1983009808
        %v811 = vunpack.c.0.s8 %v810
        %v812 = vlaneseq
        %v813 = vshrl.u32 %v812, 7
        %v814 = vsub.s32 %v811, %v813
        %v815 = vrot.slane %v504, %v814
        %v817 = vunpack.c.l.s4 1983009808
        %v818 = vunpack.c.0.s8 %v817
        %v819 = vlaneseq
        %v820 = vshrl.u32 %v819, 7
        %v821 = vsub.s32 %v818, %v820
        %v822 = vrot.slane %v808, %v821
        %v823 = vcombine.high %v815, %v815
        %v824 = vcombine.high %v822, %v822
        %v825 = vcombine.high %v505, %v505
        %v827 = vunpack.c.l.s4 1983009808
        %v828 = vunpack.c.0.s8 %v827
        %v829 = vlaneseq
        %v830 = vshrl.u32 %v829, 7
        %v831 = vsub.s32 %v828, %v830
        %v832 = vrot.slane %v505, %v831
        %v834 = vunpack.c.l.s4 1983009808
        %v835 = vunpack.c.0.s8 %v834
        %v836 = vlaneseq
        %v837 = vshrl.u32 %v836, 7
        %v838 = vsub.s32 %v835, %v837
        %v839 = vrot.slane %v825, %v838
        %v840 = vcombine.high %v832, %v832
        %v841 = vcombine.high %v839, %v839
        %v842 = vcombine.high %v506, %v506
        %v844 = vunpack.c.l.s4 1983009808
        %v845 = vunpack.c.0.s8 %v844
        %v846 = vlaneseq
        %v847 = vshrl.u32 %v846, 7
        %v848 = vsub.s32 %v845, %v847
        %v849 = vrot.slane %v506, %v848
        %v851 = vunpack.c.l.s4 1983009808
        %v852 = vunpack.c.0.s8 %v851
        %v853 = vlaneseq
        %v854 = vshrl.u32 %v853, 7
        %v855 = vsub.s32 %v852, %v854
        %v856 = vrot.slane %v842, %v855
        %v857 = vcombine.high %v849, %v849
        %v858 = vcombine.high %v856, %v856
        %v859 = vcombine.high %v507, %v507
        %v861 = vunpack.c.l.s4 1983009808
        %v862 = vunpack.c.0.s8 %v861
        %v863 = vlaneseq
        %v864 = vshrl.u32 %v863, 7
        %v865 = vsub.s32 %v862, %v864
        %v866 = vrot.slane %v507, %v865
        %v868 = vunpack.c.l.s4 1983009808
        %v869 = vunpack.c.0.s8 %v868
        %v870 = vlaneseq
        %v871 = vshrl.u32 %v870, 7
        %v872 = vsub.s32 %v869, %v871
        %v873 = vrot.slane %v859, %v872
        %v874 = vcombine.high %v866, %v866
        %v875 = vcombine.high %v873, %v873
        %v876 = vcombine.high %v508, %v508
        %v878 = vunpack.c.l.s4 1983009808
        %v879 = vunpack.c.0.s8 %v878
        %v880 = vlaneseq
        %v881 = vshrl.u32 %v880, 7
        %v882 = vsub.s32 %v879, %v881
        %v883 = vrot.slane %v508, %v882
        %v885 = vunpack.c.l.s4 1983009808
        %v886 = vunpack.c.0.s8 %v885
        %v887 = vlaneseq
        %v888 = vshrl.u32 %v887, 7
        %v889 = vsub.s32 %v886, %v888
        %v890 = vrot.slane %v876, %v889
        %v891 = vcombine.high %v883, %v883
        %v892 = vcombine.high %v890, %v890
        %v893 = vcombine.high %v509, %v509
        %v895 = vunpack.c.l.s4 1983009808
        %v896 = vunpack.c.0.s8 %v895
        %v897 = vlaneseq
        %v898 = vshrl.u32 %v897, 7
        %v899 = vsub.s32 %v896, %v898
        %v900 = vrot.slane %v509, %v899
        %v902 = vunpack.c.l.s4 1983009808
        %v903 = vunpack.c.0.s8 %v902
        %v904 = vlaneseq
        %v905 = vshrl.u32 %v904, 7
        %v906 = vsub.s32 %v903, %v905
        %v907 = vrot.slane %v893, %v906
        %v908 = vcombine.high %v900, %v900
        %v909 = vcombine.high %v907, %v907
        %v910 = vcombine.high %v510, %v510
        %v912 = vunpack.c.l.s4 1983009808
        %v913 = vunpack.c.0.s8 %v912
        %v914 = vlaneseq
        %v915 = vshrl.u32 %v914, 7
        %v916 = vsub.s32 %v913, %v915
        %v917 = vrot.slane %v510, %v916
        %v919 = vunpack.c.l.s4 1983009808
        %v920 = vunpack.c.0.s8 %v919
        %v921 = vlaneseq
        %v922 = vshrl.u32 %v921, 7
        %v923 = vsub.s32 %v920, %v922
        %v924 = vrot.slane %v910, %v923
        %v925 = vcombine.high %v917, %v917
        %v926 = vcombine.high %v924, %v924
        %v927 = vcombine.high %v511, %v511
        %v929 = vunpack.c.l.s4 1983009808
        %v930 = vunpack.c.0.s8 %v929
        %v931 = vlaneseq
        %v932 = vshrl.u32 %v931, 7
        %v933 = vsub.s32 %v930, %v932
        %v934 = vrot.slane %v511, %v933
        %v936 = vunpack.c.l.s4 1983009808
        %v937 = vunpack.c.0.s8 %v936
        %v938 = vlaneseq
        %v939 = vshrl.u32 %v938, 7
        %v940 = vsub.s32 %v937, %v939
        %v941 = vrot.slane %v927, %v940
        %v942 = vcombine.high %v934, %v934
        %v943 = vcombine.high %v941, %v941
        %v944 = vcombine.high %v512, %v512
        %v946 = vunpack.c.l.s4 1983009808
        %v947 = vunpack.c.0.s8 %v946
        %v948 = vlaneseq
        %v949 = vshrl.u32 %v948, 7
        %v950 = vsub.s32 %v947, %v949
        %v951 = vrot.slane %v512, %v950
        %v953 = vunpack.c.l.s4 1983009808
        %v954 = vunpack.c.0.s8 %v953
        %v955 = vlaneseq
        %v956 = vshrl.u32 %v955, 7
        %v957 = vsub.s32 %v954, %v956
        %v958 = vrot.slane %v944, %v957
        %v959 = vcombine.high %v951, %v951
        %v960 = vcombine.high %v958, %v958
        %v961 = vcombine.high %v513, %v513
        %v963 = vunpack.c.l.s4 1983009808
        %v964 = vunpack.c.0.s8 %v963
        %v965 = vlaneseq
        %v966 = vshrl.u32 %v965, 7
        %v967 = vsub.s32 %v964, %v966
        %v968 = vrot.slane %v513, %v967
        %v970 = vunpack.c.l.s4 1983009808
        %v971 = vunpack.c.0.s8 %v970
        %v972 = vlaneseq
        %v973 = vshrl.u32 %v972, 7
        %v974 = vsub.s32 %v971, %v973
        %v975 = vrot.slane %v961, %v974
        %v976 = vcombine.high %v968, %v968
        %v977 = vcombine.high %v975, %v975
        %v978 = vcombine.high %v514, %v514
        %v980 = vunpack.c.l.s4 1983009808
        %v981 = vunpack.c.0.s8 %v980
        %v982 = vlaneseq
        %v983 = vshrl.u32 %v982, 7
        %v984 = vsub.s32 %v981, %v983
        %v985 = vrot.slane %v514, %v984
        %v987 = vunpack.c.l.s4 1983009808
        %v988 = vunpack.c.0.s8 %v987
        %v989 = vlaneseq
        %v990 = vshrl.u32 %v989, 7
        %v991 = vsub.s32 %v988, %v990
        %v992 = vrot.slane %v978, %v991
        %v993 = vcombine.high %v985, %v985
        %v994 = vcombine.high %v992, %v992
        %v995 = vcombine.high %v515, %v515
        %v997 = vunpack.c.l.s4 1983009808
        %v998 = vunpack.c.0.s8 %v997
        %v999 = vlaneseq
        %v1000 = vshrl.u32 %v999, 7
        %v1001 = vsub.s32 %v998, %v1000
        %v1002 = vrot.slane %v515, %v1001
        %v1004 = vunpack.c.l.s4 1983009808
        %v1005 = vunpack.c.0.s8 %v1004
        %v1006 = vlaneseq
        %v1007 = vshrl.u32 %v1006, 7
        %v1008 = vsub.s32 %v1005, %v1007
        %v1009 = vrot.slane %v995, %v1008
        %v1010 = vcombine.high %v1002, %v1002
        %v1011 = vcombine.high %v1009, %v1009
        %v1012 = vcombine.high %v516, %v516
        %v1014 = vunpack.c.l.s4 1983009808
        %v1015 = vunpack.c.0.s8 %v1014
        %v1016 = vlaneseq
        %v1017 = vshrl.u32 %v1016, 7
        %v1018 = vsub.s32 %v1015, %v1017
        %v1019 = vrot.slane %v516, %v1018
        %v1021 = vunpack.c.l.s4 1983009808
        %v1022 = vunpack.c.0.s8 %v1021
        %v1023 = vlaneseq
        %v1024 = vshrl.u32 %v1023, 7
        %v1025 = vsub.s32 %v1022, %v1024
        %v1026 = vrot.slane %v1012, %v1025
        %v1027 = vcombine.high %v1019, %v1019
        %v1028 = vcombine.high %v1026, %v1026
        %v1029 = vcombine.high %v517, %v517
        %v1031 = vunpack.c.l.s4 1983009808
        %v1032 = vunpack.c.0.s8 %v1031
        %v1033 = vlaneseq
        %v1034 = vshrl.u32 %v1033, 7
        %v1035 = vsub.s32 %v1032, %v1034
        %v1036 = vrot.slane %v517, %v1035
        %v1038 = vunpack.c.l.s4 1983009808
        %v1039 = vunpack.c.0.s8 %v1038
        %v1040 = vlaneseq
        %v1041 = vshrl.u32 %v1040, 7
        %v1042 = vsub.s32 %v1039, %v1041
        %v1043 = vrot.slane %v1029, %v1042
        %v1044 = vcombine.high %v1036, %v1036
        %v1045 = vcombine.high %v1043, %v1043
        %v1046 = vcombine.high %v518, %v518
        %v1048 = vunpack.c.l.s4 1983009808
        %v1049 = vunpack.c.0.s8 %v1048
        %v1050 = vlaneseq
        %v1051 = vshrl.u32 %v1050, 7
        %v1052 = vsub.s32 %v1049, %v1051
        %v1053 = vrot.slane %v518, %v1052
        %v1055 = vunpack.c.l.s4 1983009808
        %v1056 = vunpack.c.0.s8 %v1055
        %v1057 = vlaneseq
        %v1058 = vshrl.u32 %v1057, 7
        %v1059 = vsub.s32 %v1056, %v1058
        %v1060 = vrot.slane %v1046, %v1059
        %v1061 = vcombine.high %v1053, %v1053
        %v1062 = vcombine.high %v1060, %v1060
        %v1063 = vcombine.high %v519, %v519
        %v1065 = vunpack.c.l.s4 1983009808
        %v1066 = vunpack.c.0.s8 %v1065
        %v1067 = vlaneseq
        %v1068 = vshrl.u32 %v1067, 7
        %v1069 = vsub.s32 %v1066, %v1068
        %v1070 = vrot.slane %v519, %v1069
        %v1072 = vunpack.c.l.s4 1983009808
        %v1073 = vunpack.c.0.s8 %v1072
        %v1074 = vlaneseq
        %v1075 = vshrl.u32 %v1074, 7
        %v1076 = vsub.s32 %v1073, %v1075
        %v1077 = vrot.slane %v1063, %v1076
        %v1078 = vcombine.high %v1070, %v1070
        %v1079 = vcombine.high %v1077, %v1077
        %v1080 = vcombine.high %v520, %v520
        %v1082 = vunpack.c.l.s4 1983009808
        %v1083 = vunpack.c.0.s8 %v1082
        %v1084 = vlaneseq
        %v1085 = vshrl.u32 %v1084, 7
        %v1086 = vsub.s32 %v1083, %v1085
        %v1087 = vrot.slane %v520, %v1086
        %v1089 = vunpack.c.l.s4 1983009808
        %v1090 = vunpack.c.0.s8 %v1089
        %v1091 = vlaneseq
        %v1092 = vshrl.u32 %v1091, 7
        %v1093 = vsub.s32 %v1090, %v1092
        %v1094 = vrot.slane %v1080, %v1093
        %v1095 = vcombine.high %v1087, %v1087
        %v1096 = vcombine.high %v1094, %v1094
        %v1097 = vcombine.high %v521, %v521
        %v1099 = vunpack.c.l.s4 1983009808
        %v1100 = vunpack.c.0.s8 %v1099
        %v1101 = vlaneseq
        %v1102 = vshrl.u32 %v1101, 7
        %v1103 = vsub.s32 %v1100, %v1102
        %v1104 = vrot.slane %v521, %v1103
        %v1106 = vunpack.c.l.s4 1983009808
        %v1107 = vunpack.c.0.s8 %v1106
        %v1108 = vlaneseq
        %v1109 = vshrl.u32 %v1108, 7
        %v1110 = vsub.s32 %v1107, %v1109
        %v1111 = vrot.slane %v1097, %v1110
        %v1112 = vcombine.high %v1104, %v1104
        %v1113 = vcombine.high %v1111, %v1111
        %v1114 = vcombine.high %v522, %v522
        %v1116 = vunpack.c.l.s4 1983009808
        %v1117 = vunpack.c.0.s8 %v1116
        %v1118 = vlaneseq
        %v1119 = vshrl.u32 %v1118, 7
        %v1120 = vsub.s32 %v1117, %v1119
        %v1121 = vrot.slane %v522, %v1120
        %v1123 = vunpack.c.l.s4 1983009808
        %v1124 = vunpack.c.0.s8 %v1123
        %v1125 = vlaneseq
        %v1126 = vshrl.u32 %v1125, 7
        %v1127 = vsub.s32 %v1124, %v1126
        %v1128 = vrot.slane %v1114, %v1127
        %v1129 = vcombine.high %v1121, %v1121
        %v1130 = vcombine.high %v1128, %v1128
        %v1131 = vcombine.high %v523, %v523
        %v1133 = vunpack.c.l.s4 1983009808
        %v1134 = vunpack.c.0.s8 %v1133
        %v1135 = vlaneseq
        %v1136 = vshrl.u32 %v1135, 7
        %v1137 = vsub.s32 %v1134, %v1136
        %v1138 = vrot.slane %v523, %v1137
        %v1140 = vunpack.c.l.s4 1983009808
        %v1141 = vunpack.c.0.s8 %v1140
        %v1142 = vlaneseq
        %v1143 = vshrl.u32 %v1142, 7
        %v1144 = vsub.s32 %v1141, %v1143
        %v1145 = vrot.slane %v1131, %v1144
        %v1146 = vcombine.high %v1138, %v1138
        %v1147 = vcombine.high %v1145, %v1145
        %v1148 = vcombine.high %v524, %v524
        %v1150 = vunpack.c.l.s4 1983009808
        %v1151 = vunpack.c.0.s8 %v1150
        %v1152 = vlaneseq
        %v1153 = vshrl.u32 %v1152, 7
        %v1154 = vsub.s32 %v1151, %v1153
        %v1155 = vrot.slane %v524, %v1154
        %v1157 = vunpack.c.l.s4 1983009808
        %v1158 = vunpack.c.0.s8 %v1157
        %v1159 = vlaneseq
        %v1160 = vshrl.u32 %v1159, 7
        %v1161 = vsub.s32 %v1158, %v1160
        %v1162 = vrot.slane %v1148, %v1161
        %v1163 = vcombine.high %v1155, %v1155
        %v1164 = vcombine.high %v1162, %v1162
        %v1165 = vcombine.high %v525, %v525
        %v1167 = vunpack.c.l.s4 1983009808
        %v1168 = vunpack.c.0.s8 %v1167
        %v1169 = vlaneseq
        %v1170 = vshrl.u32 %v1169, 7
        %v1171 = vsub.s32 %v1168, %v1170
        %v1172 = vrot.slane %v525, %v1171
        %v1174 = vunpack.c.l.s4 1983009808
        %v1175 = vunpack.c.0.s8 %v1174
        %v1176 = vlaneseq
        %v1177 = vshrl.u32 %v1176, 7
        %v1178 = vsub.s32 %v1175, %v1177
        %v1179 = vrot.slane %v1165, %v1178
        %v1180 = vcombine.high %v1172, %v1172
        %v1181 = vcombine.high %v1179, %v1179
        %v1182 = vcombine.high %v526, %v526
        %v1184 = vunpack.c.l.s4 1983009808
        %v1185 = vunpack.c.0.s8 %v1184
        %v1186 = vlaneseq
        %v1187 = vshrl.u32 %v1186, 7
        %v1188 = vsub.s32 %v1185, %v1187
        %v1189 = vrot.slane %v526, %v1188
        %v1191 = vunpack.c.l.s4 1983009808
        %v1192 = vunpack.c.0.s8 %v1191
        %v1193 = vlaneseq
        %v1194 = vshrl.u32 %v1193, 7
        %v1195 = vsub.s32 %v1192, %v1194
        %v1196 = vrot.slane %v1182, %v1195
        %v1197 = vcombine.high %v1189, %v1189
        %v1198 = vcombine.high %v1196, %v1196
        %v1199 = vcombine.high %v527, %v527
        %v1201 = vunpack.c.l.s4 1983009808
        %v1202 = vunpack.c.0.s8 %v1201
        %v1203 = vlaneseq
        %v1204 = vshrl.u32 %v1203, 7
        %v1205 = vsub.s32 %v1202, %v1204
        %v1206 = vrot.slane %v527, %v1205
        %v1208 = vunpack.c.l.s4 1983009808
        %v1209 = vunpack.c.0.s8 %v1208
        %v1210 = vlaneseq
        %v1211 = vshrl.u32 %v1210, 7
        %v1212 = vsub.s32 %v1209, %v1211
        %v1213 = vrot.slane %v1199, %v1212
        %v1214 = vcombine.high %v1206, %v1206
        %v1215 = vcombine.high %v1213, %v1213
        %v1216 = vcombine.high %v528, %v528
        %v1218 = vunpack.c.l.s4 1983009808
        %v1219 = vunpack.c.0.s8 %v1218
        %v1220 = vlaneseq
        %v1221 = vshrl.u32 %v1220, 7
        %v1222 = vsub.s32 %v1219, %v1221
        %v1223 = vrot.slane %v528, %v1222
        %v1225 = vunpack.c.l.s4 1983009808
        %v1226 = vunpack.c.0.s8 %v1225
        %v1227 = vlaneseq
        %v1228 = vshrl.u32 %v1227, 7
        %v1229 = vsub.s32 %v1226, %v1228
        %v1230 = vrot.slane %v1216, %v1229
        %v1231 = vcombine.high %v1223, %v1223
        %v1232 = vcombine.high %v1230, %v1230
        %v1233 = vcombine.high %v529, %v529
        %v1235 = vunpack.c.l.s4 1983009808
        %v1236 = vunpack.c.0.s8 %v1235
        %v1237 = vlaneseq
        %v1238 = vshrl.u32 %v1237, 7
        %v1239 = vsub.s32 %v1236, %v1238
        %v1240 = vrot.slane %v529, %v1239
        %v1242 = vunpack.c.l.s4 1983009808
        %v1243 = vunpack.c.0.s8 %v1242
        %v1244 = vlaneseq
        %v1245 = vshrl.u32 %v1244, 7
        %v1246 = vsub.s32 %v1243, %v1245
        %v1247 = vrot.slane %v1233, %v1246
        %v1248 = vcombine.high %v1240, %v1240
        %v1249 = vcombine.high %v1247, %v1247
        %v1250 = vcombine.high %v530, %v530
        %v1252 = vunpack.c.l.s4 1983009808
        %v1253 = vunpack.c.0.s8 %v1252
        %v1254 = vlaneseq
        %v1255 = vshrl.u32 %v1254, 7
        %v1256 = vsub.s32 %v1253, %v1255
        %v1257 = vrot.slane %v530, %v1256
        %v1259 = vunpack.c.l.s4 1983009808
        %v1260 = vunpack.c.0.s8 %v1259
        %v1261 = vlaneseq
        %v1262 = vshrl.u32 %v1261, 7
        %v1263 = vsub.s32 %v1260, %v1262
        %v1264 = vrot.slane %v1250, %v1263
        %v1265 = vcombine.high %v1257, %v1257
        %v1266 = vcombine.high %v1264, %v1264
        %v1267 = vcombine.high %v531, %v531
        %v1269 = vunpack.c.l.s4 1983009808
        %v1270 = vunpack.c.0.s8 %v1269
        %v1271 = vlaneseq
        %v1272 = vshrl.u32 %v1271, 7
        %v1273 = vsub.s32 %v1270, %v1272
        %v1274 = vrot.slane %v531, %v1273
        %v1276 = vunpack.c.l.s4 1983009808
        %v1277 = vunpack.c.0.s8 %v1276
        %v1278 = vlaneseq
        %v1279 = vshrl.u32 %v1278, 7
        %v1280 = vsub.s32 %v1277, %v1279
        %v1281 = vrot.slane %v1267, %v1280
        %v1282 = vcombine.high %v1274, %v1274
        %v1283 = vcombine.high %v1281, %v1281
        %v1284 = vcombine.high %v532, %v532
        %v1286 = vunpack.c.l.s4 1983009808
        %v1287 = vunpack.c.0.s8 %v1286
        %v1288 = vlaneseq
        %v1289 = vshrl.u32 %v1288, 7
        %v1290 = vsub.s32 %v1287, %v1289
        %v1291 = vrot.slane %v532, %v1290
        %v1293 = vunpack.c.l.s4 1983009808
        %v1294 = vunpack.c.0.s8 %v1293
        %v1295 = vlaneseq
        %v1296 = vshrl.u32 %v1295, 7
        %v1297 = vsub.s32 %v1294, %v1296
        %v1298 = vrot.slane %v1284, %v1297
        %v1299 = vcombine.high %v1291, %v1291
        %v1300 = vcombine.high %v1298, %v1298
        %v1301 = vcombine.high %v533, %v533
        %v1303 = vunpack.c.l.s4 1983009808
        %v1304 = vunpack.c.0.s8 %v1303
        %v1305 = vlaneseq
        %v1306 = vshrl.u32 %v1305, 7
        %v1307 = vsub.s32 %v1304, %v1306
        %v1308 = vrot.slane %v533, %v1307
        %v1310 = vunpack.c.l.s4 1983009808
        %v1311 = vunpack.c.0.s8 %v1310
        %v1312 = vlaneseq
        %v1313 = vshrl.u32 %v1312, 7
        %v1314 = vsub.s32 %v1311, %v1313
        %v1315 = vrot.slane %v1301, %v1314
        %v1316 = vcombine.high %v1308, %v1308
        %v1317 = vcombine.high %v1315, %v1315
        %v1318 = vcombine.high %v534, %v534
        %v1320 = vunpack.c.l.s4 1983009808
        %v1321 = vunpack.c.0.s8 %v1320
        %v1322 = vlaneseq
        %v1323 = vshrl.u32 %v1322, 7
        %v1324 = vsub.s32 %v1321, %v1323
        %v1325 = vrot.slane %v534, %v1324
        %v1327 = vunpack.c.l.s4 1983009808
        %v1328 = vunpack.c.0.s8 %v1327
        %v1329 = vlaneseq
        %v1330 = vshrl.u32 %v1329, 7
        %v1331 = vsub.s32 %v1328, %v1330
        %v1332 = vrot.slane %v1318, %v1331
        %v1333 = vcombine.high %v1325, %v1325
        %v1334 = vcombine.high %v1332, %v1332
        %v1335 = vcombine.high %v535, %v535
        %v1337 = vunpack.c.l.s4 1983009808
        %v1338 = vunpack.c.0.s8 %v1337
        %v1339 = vlaneseq
        %v1340 = vshrl.u32 %v1339, 7
        %v1341 = vsub.s32 %v1338, %v1340
        %v1342 = vrot.slane %v535, %v1341
        %v1344 = vunpack.c.l.s4 1983009808
        %v1345 = vunpack.c.0.s8 %v1344
        %v1346 = vlaneseq
        %v1347 = vshrl.u32 %v1346, 7
        %v1348 = vsub.s32 %v1345, %v1347
        %v1349 = vrot.slane %v1335, %v1348
        %v1350 = vcombine.high %v1342, %v1342
        %v1351 = vcombine.high %v1349, %v1349
        %v1352 = vcombine.high %v536, %v536
        %v1354 = vunpack.c.l.s4 1983009808
        %v1355 = vunpack.c.0.s8 %v1354
        %v1356 = vlaneseq
        %v1357 = vshrl.u32 %v1356, 7
        %v1358 = vsub.s32 %v1355, %v1357
        %v1359 = vrot.slane %v536, %v1358
        %v1361 = vunpack.c.l.s4 1983009808
        %v1362 = vunpack.c.0.s8 %v1361
        %v1363 = vlaneseq
        %v1364 = vshrl.u32 %v1363, 7
        %v1365 = vsub.s32 %v1362, %v1364
        %v1366 = vrot.slane %v1352, %v1365
        %v1367 = vcombine.high %v1359, %v1359
        %v1368 = vcombine.high %v1366, %v1366
        %v1369 = vcombine.high %v537, %v537
        %v1371 = vunpack.c.l.s4 1983009808
        %v1372 = vunpack.c.0.s8 %v1371
        %v1373 = vlaneseq
        %v1374 = vshrl.u32 %v1373, 7
        %v1375 = vsub.s32 %v1372, %v1374
        %v1376 = vrot.slane %v537, %v1375
        %v1378 = vunpack.c.l.s4 1983009808
        %v1379 = vunpack.c.0.s8 %v1378
        %v1380 = vlaneseq
        %v1381 = vshrl.u32 %v1380, 7
        %v1382 = vsub.s32 %v1379, %v1381
        %v1383 = vrot.slane %v1369, %v1382
        %v1384 = vcombine.high %v1376, %v1376
        %v1385 = vcombine.high %v1383, %v1383
        %v1386 = vcombine.high %v538, %v538
        %v1388 = vunpack.c.l.s4 1983009808
        %v1389 = vunpack.c.0.s8 %v1388
        %v1390 = vlaneseq
        %v1391 = vshrl.u32 %v1390, 7
        %v1392 = vsub.s32 %v1389, %v1391
        %v1393 = vrot.slane %v538, %v1392
        %v1395 = vunpack.c.l.s4 1983009808
        %v1396 = vunpack.c.0.s8 %v1395
        %v1397 = vlaneseq
        %v1398 = vshrl.u32 %v1397, 7
        %v1399 = vsub.s32 %v1396, %v1398
        %v1400 = vrot.slane %v1386, %v1399
        %v1401 = vcombine.high %v1393, %v1393
        %v1402 = vcombine.high %v1400, %v1400
        %v1403 = vcombine.high %v539, %v539
        %v1405 = vunpack.c.l.s4 1983009808
        %v1406 = vunpack.c.0.s8 %v1405
        %v1407 = vlaneseq
        %v1408 = vshrl.u32 %v1407, 7
        %v1409 = vsub.s32 %v1406, %v1408
        %v1410 = vrot.slane %v539, %v1409
        %v1412 = vunpack.c.l.s4 1983009808
        %v1413 = vunpack.c.0.s8 %v1412
        %v1414 = vlaneseq
        %v1415 = vshrl.u32 %v1414, 7
        %v1416 = vsub.s32 %v1413, %v1415
        %v1417 = vrot.slane %v1403, %v1416
        %v1418 = vcombine.high %v1410, %v1410
        %v1419 = vcombine.high %v1417, %v1417
        %v1420 = vcombine.high %v540, %v540
        %v1422 = vunpack.c.l.s4 1983009808
        %v1423 = vunpack.c.0.s8 %v1422
        %v1424 = vlaneseq
        %v1425 = vshrl.u32 %v1424, 7
        %v1426 = vsub.s32 %v1423, %v1425
        %v1427 = vrot.slane %v540, %v1426
        %v1429 = vunpack.c.l.s4 1983009808
        %v1430 = vunpack.c.0.s8 %v1429
        %v1431 = vlaneseq
        %v1432 = vshrl.u32 %v1431, 7
        %v1433 = vsub.s32 %v1430, %v1432
        %v1434 = vrot.slane %v1420, %v1433
        %v1435 = vcombine.high %v1427, %v1427
        %v1436 = vcombine.high %v1434, %v1434
        %v1437 = vcombine.high %v541, %v541
        %v1439 = vunpack.c.l.s4 1983009808
        %v1440 = vunpack.c.0.s8 %v1439
        %v1441 = vlaneseq
        %v1442 = vshrl.u32 %v1441, 7
        %v1443 = vsub.s32 %v1440, %v1442
        %v1444 = vrot.slane %v541, %v1443
        %v1446 = vunpack.c.l.s4 1983009808
        %v1447 = vunpack.c.0.s8 %v1446
        %v1448 = vlaneseq
        %v1449 = vshrl.u32 %v1448, 7
        %v1450 = vsub.s32 %v1447, %v1449
        %v1451 = vrot.slane %v1437, %v1450
        %v1452 = vcombine.high %v1444, %v1444
        %v1453 = vcombine.high %v1451, %v1451
        %v1454 = vcombine.high %v542, %v542
        %v1456 = vunpack.c.l.s4 1983009808
        %v1457 = vunpack.c.0.s8 %v1456
        %v1458 = vlaneseq
        %v1459 = vshrl.u32 %v1458, 7
        %v1460 = vsub.s32 %v1457, %v1459
        %v1461 = vrot.slane %v542, %v1460
        %v1463 = vunpack.c.l.s4 1983009808
        %v1464 = vunpack.c.0.s8 %v1463
        %v1465 = vlaneseq
        %v1466 = vshrl.u32 %v1465, 7
        %v1467 = vsub.s32 %v1464, %v1466
        %v1468 = vrot.slane %v1454, %v1467
        %v1469 = vcombine.high %v1461, %v1461
        %v1470 = vcombine.high %v1468, %v1468
        %v1471 = vcombine.high %v543, %v543
        %v1473 = vunpack.c.l.s4 1983009808
        %v1474 = vunpack.c.0.s8 %v1473
        %v1475 = vlaneseq
        %v1476 = vshrl.u32 %v1475, 7
        %v1477 = vsub.s32 %v1474, %v1476
        %v1478 = vrot.slane %v543, %v1477
        %v1480 = vunpack.c.l.s4 1983009808
        %v1481 = vunpack.c.0.s8 %v1480
        %v1482 = vlaneseq
        %v1483 = vshrl.u32 %v1482, 7
        %v1484 = vsub.s32 %v1481, %v1483
        %v1485 = vrot.slane %v1471, %v1484
        %v1486 = vcombine.high %v1478, %v1478
        %v1487 = vcombine.high %v1485, %v1485
        %v1488 = vcombine.high %v544, %v544
        %v1490 = vunpack.c.l.s4 1983009808
        %v1491 = vunpack.c.0.s8 %v1490
        %v1492 = vlaneseq
        %v1493 = vshrl.u32 %v1492, 7
        %v1494 = vsub.s32 %v1491, %v1493
        %v1495 = vrot.slane %v544, %v1494
        %v1497 = vunpack.c.l.s4 1983009808
        %v1498 = vunpack.c.0.s8 %v1497
        %v1499 = vlaneseq
        %v1500 = vshrl.u32 %v1499, 7
        %v1501 = vsub.s32 %v1498, %v1500
        %v1502 = vrot.slane %v1488, %v1501
        %v1503 = vcombine.high %v1495, %v1495
        %v1504 = vcombine.high %v1502, %v1502
        %v1505 = vcombine.high %v545, %v545
        %v1507 = vunpack.c.l.s4 1983009808
        %v1508 = vunpack.c.0.s8 %v1507
        %v1509 = vlaneseq
        %v1510 = vshrl.u32 %v1509, 7
        %v1511 = vsub.s32 %v1508, %v1510
        %v1512 = vrot.slane %v545, %v1511
        %v1514 = vunpack.c.l.s4 1983009808
        %v1515 = vunpack.c.0.s8 %v1514
        %v1516 = vlaneseq
        %v1517 = vshrl.u32 %v1516, 7
        %v1518 = vsub.s32 %v1515, %v1517
        %v1519 = vrot.slane %v1505, %v1518
        %v1520 = vcombine.high %v1512, %v1512
        %v1521 = vcombine.high %v1519, %v1519
        %v1522 = vcombine.high %v546, %v546
        %v1524 = vunpack.c.l.s4 1983009808
        %v1525 = vunpack.c.0.s8 %v1524
        %v1526 = vlaneseq
        %v1527 = vshrl.u32 %v1526, 7
        %v1528 = vsub.s32 %v1525, %v1527
        %v1529 = vrot.slane %v546, %v1528
        %v1531 = vunpack.c.l.s4 1983009808
        %v1532 = vunpack.c.0.s8 %v1531
        %v1533 = vlaneseq
        %v1534 = vshrl.u32 %v1533, 7
        %v1535 = vsub.s32 %v1532, %v1534
        %v1536 = vrot.slane %v1522, %v1535
        %v1537 = vcombine.high %v1529, %v1529
        %v1538 = vcombine.high %v1536, %v1536
        %v1539 = vcombine.high %v547, %v547
        %v1541 = vunpack.c.l.s4 1983009808
        %v1542 = vunpack.c.0.s8 %v1541
        %v1543 = vlaneseq
        %v1544 = vshrl.u32 %v1543, 7
        %v1545 = vsub.s32 %v1542, %v1544
        %v1546 = vrot.slane %v547, %v1545
        %v1548 = vunpack.c.l.s4 1983009808
        %v1549 = vunpack.c.0.s8 %v1548
        %v1550 = vlaneseq
        %v1551 = vshrl.u32 %v1550, 7
        %v1552 = vsub.s32 %v1549, %v1551
        %v1553 = vrot.slane %v1539, %v1552
        %v1554 = vcombine.high %v1546, %v1546
        %v1555 = vcombine.high %v1553, %v1553
        %v1556 = vcombine.high %v548, %v548
        %v1558 = vunpack.c.l.s4 1983009808
        %v1559 = vunpack.c.0.s8 %v1558
        %v1560 = vlaneseq
        %v1561 = vshrl.u32 %v1560, 7
        %v1562 = vsub.s32 %v1559, %v1561
        %v1563 = vrot.slane %v548, %v1562
        %v1565 = vunpack.c.l.s4 1983009808
        %v1566 = vunpack.c.0.s8 %v1565
        %v1567 = vlaneseq
        %v1568 = vshrl.u32 %v1567, 7
        %v1569 = vsub.s32 %v1566, %v1568
        %v1570 = vrot.slane %v1556, %v1569
        %v1571 = vcombine.high %v1563, %v1563
        %v1572 = vcombine.high %v1570, %v1570
        %v1573 = vcombine.high %v549, %v549
        %v1575 = vunpack.c.l.s4 1983009808
        %v1576 = vunpack.c.0.s8 %v1575
        %v1577 = vlaneseq
        %v1578 = vshrl.u32 %v1577, 7
        %v1579 = vsub.s32 %v1576, %v1578
        %v1580 = vrot.slane %v549, %v1579
        %v1582 = vunpack.c.l.s4 1983009808
        %v1583 = vunpack.c.0.s8 %v1582
        %v1584 = vlaneseq
        %v1585 = vshrl.u32 %v1584, 7
        %v1586 = vsub.s32 %v1583, %v1585
        %v1587 = vrot.slane %v1573, %v1586
        %v1588 = vcombine.high %v1580, %v1580
        %v1589 = vcombine.high %v1587, %v1587
        %v1590 = vcombine.high %v550, %v550
        %v1592 = vunpack.c.l.s4 1983009808
        %v1593 = vunpack.c.0.s8 %v1592
        %v1594 = vlaneseq
        %v1595 = vshrl.u32 %v1594, 7
        %v1596 = vsub.s32 %v1593, %v1595
        %v1597 = vrot.slane %v550, %v1596
        %v1599 = vunpack.c.l.s4 1983009808
        %v1600 = vunpack.c.0.s8 %v1599
        %v1601 = vlaneseq
        %v1602 = vshrl.u32 %v1601, 7
        %v1603 = vsub.s32 %v1600, %v1602
        %v1604 = vrot.slane %v1590, %v1603
        %v1605 = vcombine.high %v1597, %v1597
        %v1606 = vcombine.high %v1604, %v1604
        %v1607 = vcombine.high %v551, %v551
        %v1609 = vunpack.c.l.s4 1983009808
        %v1610 = vunpack.c.0.s8 %v1609
        %v1611 = vlaneseq
        %v1612 = vshrl.u32 %v1611, 7
        %v1613 = vsub.s32 %v1610, %v1612
        %v1614 = vrot.slane %v551, %v1613
        %v1616 = vunpack.c.l.s4 1983009808
        %v1617 = vunpack.c.0.s8 %v1616
        %v1618 = vlaneseq
        %v1619 = vshrl.u32 %v1618, 7
        %v1620 = vsub.s32 %v1617, %v1619
        %v1621 = vrot.slane %v1607, %v1620
        %v1622 = vcombine.high %v1614, %v1614
        %v1623 = vcombine.high %v1621, %v1621
        %v1624 = vcombine.high %v552, %v552
        %v1626 = vunpack.c.l.s4 1983009808
        %v1627 = vunpack.c.0.s8 %v1626
        %v1628 = vlaneseq
        %v1629 = vshrl.u32 %v1628, 7
        %v1630 = vsub.s32 %v1627, %v1629
        %v1631 = vrot.slane %v552, %v1630
        %v1633 = vunpack.c.l.s4 1983009808
        %v1634 = vunpack.c.0.s8 %v1633
        %v1635 = vlaneseq
        %v1636 = vshrl.u32 %v1635, 7
        %v1637 = vsub.s32 %v1634, %v1636
        %v1638 = vrot.slane %v1624, %v1637
        %v1639 = vcombine.high %v1631, %v1631
        %v1640 = vcombine.high %v1638, %v1638
        %v1641 = vcombine.high %v553, %v553
        %v1643 = vunpack.c.l.s4 1983009808
        %v1644 = vunpack.c.0.s8 %v1643
        %v1645 = vlaneseq
        %v1646 = vshrl.u32 %v1645, 7
        %v1647 = vsub.s32 %v1644, %v1646
        %v1648 = vrot.slane %v553, %v1647
        %v1650 = vunpack.c.l.s4 1983009808
        %v1651 = vunpack.c.0.s8 %v1650
        %v1652 = vlaneseq
        %v1653 = vshrl.u32 %v1652, 7
        %v1654 = vsub.s32 %v1651, %v1653
        %v1655 = vrot.slane %v1641, %v1654
        %v1656 = vcombine.high %v1648, %v1648
        %v1657 = vcombine.high %v1655, %v1655
        %v1658 = vcombine.high %v554, %v554
        %v1660 = vunpack.c.l.s4 1983009808
        %v1661 = vunpack.c.0.s8 %v1660
        %v1662 = vlaneseq
        %v1663 = vshrl.u32 %v1662, 7
        %v1664 = vsub.s32 %v1661, %v1663
        %v1665 = vrot.slane %v554, %v1664
        %v1667 = vunpack.c.l.s4 1983009808
        %v1668 = vunpack.c.0.s8 %v1667
        %v1669 = vlaneseq
        %v1670 = vshrl.u32 %v1669, 7
        %v1671 = vsub.s32 %v1668, %v1670
        %v1672 = vrot.slane %v1658, %v1671
        %v1673 = vcombine.high %v1665, %v1665
        %v1674 = vcombine.high %v1672, %v1672
        %v1675 = vcombine.high %v555, %v555
        %v1677 = vunpack.c.l.s4 1983009808
        %v1678 = vunpack.c.0.s8 %v1677
        %v1679 = vlaneseq
        %v1680 = vshrl.u32 %v1679, 7
        %v1681 = vsub.s32 %v1678, %v1680
        %v1682 = vrot.slane %v555, %v1681
        %v1684 = vunpack.c.l.s4 1983009808
        %v1685 = vunpack.c.0.s8 %v1684
        %v1686 = vlaneseq
        %v1687 = vshrl.u32 %v1686, 7
        %v1688 = vsub.s32 %v1685, %v1687
        %v1689 = vrot.slane %v1675, %v1688
        %v1690 = vcombine.high %v1682, %v1682
        %v1691 = vcombine.high %v1689, %v1689
        %v1692 = vcombine.high %v556, %v556
        %v1694 = vunpack.c.l.s4 1983009808
        %v1695 = vunpack.c.0.s8 %v1694
        %v1696 = vlaneseq
        %v1697 = vshrl.u32 %v1696, 7
        %v1698 = vsub.s32 %v1695, %v1697
        %v1699 = vrot.slane %v556, %v1698
        %v1701 = vunpack.c.l.s4 1983009808
        %v1702 = vunpack.c.0.s8 %v1701
        %v1703 = vlaneseq
        %v1704 = vshrl.u32 %v1703, 7
        %v1705 = vsub.s32 %v1702, %v1704
        %v1706 = vrot.slane %v1692, %v1705
        %v1707 = vcombine.high %v1699, %v1699
        %v1708 = vcombine.high %v1706, %v1706
        %v1965 = vrot.slane %v628, 7
        %v1966 = vrot.slane %v1965, 2
        %v1967 = vrot.slane %v636, 7
        %v1968 = vrot.slane %v1967, 2
        %v1969 = vrot.slane %v635, 7
        %v1970 = vrot.slane %v1969, 2
        %v1971 = vrot.slane %v637, 7
        %v1972 = vrot.slane %v1971, 2
        %v1973 = vrot.slane %v645, 7
        %v1974 = vrot.slane %v1973, 2
        %v1975 = vrot.slane %v653, 7
        %v1976 = vrot.slane %v1975, 2
        %v1977 = vrot.slane %v652, 7
        %v1978 = vrot.slane %v1977, 2
        %v1979 = vrot.slane %v654, 7
        %v1980 = vrot.slane %v1979, 2
        %v1981 = vrot.slane %v662, 7
        %v1982 = vrot.slane %v1981, 2
        %v1983 = vrot.slane %v670, 7
        %v1984 = vrot.slane %v1983, 2
        %v1985 = vrot.slane %v669, 7
        %v1986 = vrot.slane %v1985, 2
        %v1987 = vrot.slane %v671, 7
        %v1988 = vrot.slane %v1987, 2
        %v1989 = vrot.slane %v679, 7
        %v1990 = vrot.slane %v1989, 2
        %v1991 = vrot.slane %v687, 7
        %v1992 = vrot.slane %v1991, 2
        %v1993 = vrot.slane %v686, 7
        %v1994 = vrot.slane %v1993, 2
        %v1995 = vrot.slane %v688, 7
        %v1996 = vrot.slane %v1995, 2
        %v1997 = vrot.slane %v696, 7
        %v1998 = vrot.slane %v1997, 2
        %v1999 = vrot.slane %v704, 7
        %v2000 = vrot.slane %v1999, 2
        %v2001 = vrot.slane %v703, 7
        %v2002 = vrot.slane %v2001, 2
        %v2003 = vrot.slane %v705, 7
        %v2004 = vrot.slane %v2003, 2
        %v2005 = vrot.slane %v713, 7
        %v2006 = vrot.slane %v2005, 2
        %v2007 = vrot.slane %v721, 7
        %v2008 = vrot.slane %v2007, 2
        %v2009 = vrot.slane %v720, 7
        %v2010 = vrot.slane %v2009, 2
        %v2011 = vrot.slane %v722, 7
        %v2012 = vrot.slane %v2011, 2
        %v2013 = vrot.slane %v730, 7
        %v2014 = vrot.slane %v2013, 2
        %v2015 = vrot.slane %v738, 7
        %v2016 = vrot.slane %v2015, 2
        %v2017 = vrot.slane %v737, 7
        %v2018 = vrot.slane %v2017, 2
        %v2019 = vrot.slane %v739, 7
        %v2020 = vrot.slane %v2019, 2
        %v2021 = vrot.slane %v747, 7
        %v2022 = vrot.slane %v2021, 2
        %v2023 = vrot.slane %v755, 7
        %v2024 = vrot.slane %v2023, 2
        %v2025 = vrot.slane %v754, 7
        %v2026 = vrot.slane %v2025, 2
        %v2027 = vrot.slane %v756, 7
        %v2028 = vrot.slane %v2027, 2
        %v2029 = vrot.slane %v764, 7
        %v2030 = vrot.slane %v2029, 2
        %v2031 = vrot.slane %v772, 7
        %v2032 = vrot.slane %v2031, 2
        %v2033 = vrot.slane %v771, 7
        %v2034 = vrot.slane %v2033, 2
        %v2035 = vrot.slane %v773, 7
        %v2036 = vrot.slane %v2035, 2
        %v2037 = vrot.slane %v781, 7
        %v2038 = vrot.slane %v2037, 2
        %v2039 = vrot.slane %v789, 7
        %v2040 = vrot.slane %v2039, 2
        %v2041 = vrot.slane %v788, 7
        %v2042 = vrot.slane %v2041, 2
        %v2043 = vrot.slane %v790, 7
        %v2044 = vrot.slane %v2043, 2
        %v2045 = vrot.slane %v798, 7
        %v2046 = vrot.slane %v2045, 2
        %v2047 = vrot.slane %v806, 7
        %v2048 = vrot.slane %v2047, 2
        %v2049 = vrot.slane %v805, 7
        %v2050 = vrot.slane %v2049, 2
        %v2051 = vrot.slane %v807, 7
        %v2052 = vrot.slane %v2051, 2
        %v2053 = vrot.slane %v815, 7
        %v2054 = vrot.slane %v2053, 2
        %v2055 = vrot.slane %v823, 7
        %v2056 = vrot.slane %v2055, 2
        %v2057 = vrot.slane %v822, 7
        %v2058 = vrot.slane %v2057, 2
        %v2059 = vrot.slane %v824, 7
        %v2060 = vrot.slane %v2059, 2
        %v2061 = vrot.slane %v832, 7
        %v2062 = vrot.slane %v2061, 2
        %v2063 = vrot.slane %v840, 7
        %v2064 = vrot.slane %v2063, 2
        %v2065 = vrot.slane %v839, 7
        %v2066 = vrot.slane %v2065, 2
        %v2067 = vrot.slane %v841, 7
        %v2068 = vrot.slane %v2067, 2
        %v2069 = vrot.slane %v849, 7
        %v2070 = vrot.slane %v2069, 2
        %v2071 = vrot.slane %v857, 7
        %v2072 = vrot.slane %v2071, 2
        %v2073 = vrot.slane %v856, 7
        %v2074 = vrot.slane %v2073, 2
        %v2075 = vrot.slane %v858, 7
        %v2076 = vrot.slane %v2075, 2
        %v2077 = vrot.slane %v866, 7
        %v2078 = vrot.slane %v2077, 2
        %v2079 = vrot.slane %v874, 7
        %v2080 = vrot.slane %v2079, 2
        %v2081 = vrot.slane %v873, 7
        %v2082 = vrot.slane %v2081, 2
        %v2083 = vrot.slane %v875, 7
        %v2084 = vrot.slane %v2083, 2
        %v2085 = vrot.slane %v883, 7
        %v2086 = vrot.slane %v2085, 2
        %v2087 = vrot.slane %v891, 7
        %v2088 = vrot.slane %v2087, 2
        %v2089 = vrot.slane %v890, 7
        %v2090 = vrot.slane %v2089, 2
        %v2091 = vrot.slane %v892, 7
        %v2092 = vrot.slane %v2091, 2
        %v2093 = vrot.slane %v900, 7
        %v2094 = vrot.slane %v2093, 2
        %v2095 = vrot.slane %v908, 7
        %v2096 = vrot.slane %v2095, 2
        %v2097 = vrot.slane %v907, 7
        %v2098 = vrot.slane %v2097, 2
        %v2099 = vrot.slane %v909, 7
        %v2100 = vrot.slane %v2099, 2
        %v2101 = vrot.slane %v917, 7
        %v2102 = vrot.slane %v2101, 2
        %v2103 = vrot.slane %v925, 7
        %v2104 = vrot.slane %v2103, 2
        %v2105 = vrot.slane %v924, 7
        %v2106 = vrot.slane %v2105, 2
        %v2107 = vrot.slane %v926, 7
        %v2108 = vrot.slane %v2107, 2
        %v2109 = vrot.slane %v934, 7
        %v2110 = vrot.slane %v2109, 2
        %v2111 = vrot.slane %v942, 7
        %v2112 = vrot.slane %v2111, 2
        %v2113 = vrot.slane %v941, 7
        %v2114 = vrot.slane %v2113, 2
        %v2115 = vrot.slane %v943, 7
        %v2116 = vrot.slane %v2115, 2
        %v2117 = vrot.slane %v951, 7
        %v2118 = vrot.slane %v2117, 2
        %v2119 = vrot.slane %v959, 7
        %v2120 = vrot.slane %v2119, 2
        %v2121 = vrot.slane %v958, 7
        %v2122 = vrot.slane %v2121, 2
        %v2123 = vrot.slane %v960, 7
        %v2124 = vrot.slane %v2123, 2
        %v2125 = vrot.slane %v968, 7
        %v2126 = vrot.slane %v2125, 2
        %v2127 = vrot.slane %v976, 7
        %v2128 = vrot.slane %v2127, 2
        %v2129 = vrot.slane %v975, 7
        %v2130 = vrot.slane %v2129, 2
        %v2131 = vrot.slane %v977, 7
        %v2132 = vrot.slane %v2131, 2
        %v2133 = vrot.slane %v985, 7
        %v2134 = vrot.slane %v2133, 2
        %v2135 = vrot.slane %v993, 7
        %v2136 = vrot.slane %v2135, 2
        %v2137 = vrot.slane %v992, 7
        %v2138 = vrot.slane %v2137, 2
        %v2139 = vrot.slane %v994, 7
        %v2140 = vrot.slane %v2139, 2
        %v2141 = vrot.slane %v1002, 7
        %v2142 = vrot.slane %v2141, 2
        %v2143 = vrot.slane %v1010, 7
        %v2144 = vrot.slane %v2143, 2
        %v2145 = vrot.slane %v1009, 7
        %v2146 = vrot.slane %v2145, 2
        %v2147 = vrot.slane %v1011, 7
        %v2148 = vrot.slane %v2147, 2
        %v2149 = vrot.slane %v1019, 7
        %v2150 = vrot.slane %v2149, 2
        %v2151 = vrot.slane %v1027, 7
        %v2152 = vrot.slane %v2151, 2
        %v2153 = vrot.slane %v1026, 7
        %v2154 = vrot.slane %v2153, 2
        %v2155 = vrot.slane %v1028, 7
        %v2156 = vrot.slane %v2155, 2
        %v2157 = vrot.slane %v1036, 7
        %v2158 = vrot.slane %v2157, 2
        %v2159 = vrot.slane %v1044, 7
        %v2160 = vrot.slane %v2159, 2
        %v2161 = vrot.slane %v1043, 7
        %v2162 = vrot.slane %v2161, 2
        %v2163 = vrot.slane %v1045, 7
        %v2164 = vrot.slane %v2163, 2
        %v2165 = vrot.slane %v1053, 7
        %v2166 = vrot.slane %v2165, 2
        %v2167 = vrot.slane %v1061, 7
        %v2168 = vrot.slane %v2167, 2
        %v2169 = vrot.slane %v1060, 7
        %v2170 = vrot.slane %v2169, 2
        %v2171 = vrot.slane %v1062, 7
        %v2172 = vrot.slane %v2171, 2
        %v2173 = vrot.slane %v1070, 7
        %v2174 = vrot.slane %v2173, 2
        %v2175 = vrot.slane %v1078, 7
        %v2176 = vrot.slane %v2175, 2
        %v2177 = vrot.slane %v1077, 7
        %v2178 = vrot.slane %v2177, 2
        %v2179 = vrot.slane %v1079, 7
        %v2180 = vrot.slane %v2179, 2
        %v2181 = vrot.slane %v1087, 7
        %v2182 = vrot.slane %v2181, 2
        %v2183 = vrot.slane %v1095, 7
        %v2184 = vrot.slane %v2183, 2
        %v2185 = vrot.slane %v1094, 7
        %v2186 = vrot.slane %v2185, 2
        %v2187 = vrot.slane %v1096, 7
        %v2188 = vrot.slane %v2187, 2
        %v2189 = vrot.slane %v1104, 7
        %v2190 = vrot.slane %v2189, 2
        %v2191 = vrot.slane %v1112, 7
        %v2192 = vrot.slane %v2191, 2
        %v2193 = vrot.slane %v1111, 7
        %v2194 = vrot.slane %v2193, 2
        %v2195 = vrot.slane %v1113, 7
        %v2196 = vrot.slane %v2195, 2
        %v2197 = vrot.slane %v1121, 7
        %v2198 = vrot.slane %v2197, 2
        %v2199 = vrot.slane %v1129, 7
        %v2200 = vrot.slane %v2199, 2
        %v2201 = vrot.slane %v1128, 7
        %v2202 = vrot.slane %v2201, 2
        %v2203 = vrot.slane %v1130, 7
        %v2204 = vrot.slane %v2203, 2
        %v2205 = vrot.slane %v1138, 7
        %v2206 = vrot.slane %v2205, 2
        %v2207 = vrot.slane %v1146, 7
        %v2208 = vrot.slane %v2207, 2
        %v2209 = vrot.slane %v1145, 7
        %v2210 = vrot.slane %v2209, 2
        %v2211 = vrot.slane %v1147, 7
        %v2212 = vrot.slane %v2211, 2
        %v2213 = vrot.slane %v1155, 7
        %v2214 = vrot.slane %v2213, 2
        %v2215 = vrot.slane %v1163, 7
        %v2216 = vrot.slane %v2215, 2
        %v2217 = vrot.slane %v1162, 7
        %v2218 = vrot.slane %v2217, 2
        %v2219 = vrot.slane %v1164, 7
        %v2220 = vrot.slane %v2219, 2
        %v2221 = vrot.slane %v1172, 7
        %v2222 = vrot.slane %v2221, 2
        %v2223 = vrot.slane %v1180, 7
        %v2224 = vrot.slane %v2223, 2
        %v2225 = vrot.slane %v1179, 7
        %v2226 = vrot.slane %v2225, 2
        %v2227 = vrot.slane %v1181, 7
        %v2228 = vrot.slane %v2227, 2
        %v2229 = vrot.slane %v1189, 7
        %v2230 = vrot.slane %v2229, 2
        %v2231 = vrot.slane %v1197, 7
        %v2232 = vrot.slane %v2231, 2
        %v2233 = vrot.slane %v1196, 7
        %v2234 = vrot.slane %v2233, 2
        %v2235 = vrot.slane %v1198, 7
        %v2236 = vrot.slane %v2235, 2
        %v2237 = vrot.slane %v1206, 7
        %v2238 = vrot.slane %v2237, 2
        %v2239 = vrot.slane %v1214, 7
        %v2240 = vrot.slane %v2239, 2
        %v2241 = vrot.slane %v1213, 7
        %v2242 = vrot.slane %v2241, 2
        %v2243 = vrot.slane %v1215, 7
        %v2244 = vrot.slane %v2243, 2
        %v2245 = vrot.slane %v1223, 7
        %v2246 = vrot.slane %v2245, 2
        %v2247 = vrot.slane %v1231, 7
        %v2248 = vrot.slane %v2247, 2
        %v2249 = vrot.slane %v1230, 7
        %v2250 = vrot.slane %v2249, 2
        %v2251 = vrot.slane %v1232, 7
        %v2252 = vrot.slane %v2251, 2
        %v2253 = vrot.slane %v1240, 7
        %v2254 = vrot.slane %v2253, 2
        %v2255 = vrot.slane %v1248, 7
        %v2256 = vrot.slane %v2255, 2
        %v2257 = vrot.slane %v1247, 7
        %v2258 = vrot.slane %v2257, 2
        %v2259 = vrot.slane %v1249, 7
        %v2260 = vrot.slane %v2259, 2
        %v2261 = vrot.slane %v1257, 7
        %v2262 = vrot.slane %v2261, 2
        %v2263 = vrot.slane %v1265, 7
        %v2264 = vrot.slane %v2263, 2
        %v2265 = vrot.slane %v1264, 7
        %v2266 = vrot.slane %v2265, 2
        %v2267 = vrot.slane %v1266, 7
        %v2268 = vrot.slane %v2267, 2
        %v2269 = vrot.slane %v1274, 7
        %v2270 = vrot.slane %v2269, 2
        %v2271 = vrot.slane %v1282, 7
        %v2272 = vrot.slane %v2271, 2
        %v2273 = vrot.slane %v1281, 7
        %v2274 = vrot.slane %v2273, 2
        %v2275 = vrot.slane %v1283, 7
        %v2276 = vrot.slane %v2275, 2
        %v2277 = vrot.slane %v1291, 7
        %v2278 = vrot.slane %v2277, 2
        %v2279 = vrot.slane %v1299, 7
        %v2280 = vrot.slane %v2279, 2
        %v2281 = vrot.slane %v1298, 7
        %v2282 = vrot.slane %v2281, 2
        %v2283 = vrot.slane %v1300, 7
        %v2284 = vrot.slane %v2283, 2
        %v2285 = vrot.slane %v1308, 7
        %v2286 = vrot.slane %v2285, 2
        %v2287 = vrot.slane %v1316, 7
        %v2288 = vrot.slane %v2287, 2
        %v2289 = vrot.slane %v1315, 7
        %v2290 = vrot.slane %v2289, 2
        %v2291 = vrot.slane %v1317, 7
        %v2292 = vrot.slane %v2291, 2
        %v2293 = vrot.slane %v1325, 7
        %v2294 = vrot.slane %v2293, 2
        %v2295 = vrot.slane %v1333, 7
        %v2296 = vrot.slane %v2295, 2
        %v2297 = vrot.slane %v1332, 7
        %v2298 = vrot.slane %v2297, 2
        %v2299 = vrot.slane %v1334, 7
        %v2300 = vrot.slane %v2299, 2
        %v2301 = vrot.slane %v1342, 7
        %v2302 = vrot.slane %v2301, 2
        %v2303 = vrot.slane %v1350, 7
        %v2304 = vrot.slane %v2303, 2
        %v2305 = vrot.slane %v1349, 7
        %v2306 = vrot.slane %v2305, 2
        %v2307 = vrot.slane %v1351, 7
        %v2308 = vrot.slane %v2307, 2
        %v2309 = vrot.slane %v1359, 7
        %v2310 = vrot.slane %v2309, 2
        %v2311 = vrot.slane %v1367, 7
        %v2312 = vrot.slane %v2311, 2
        %v2313 = vrot.slane %v1366, 7
        %v2314 = vrot.slane %v2313, 2
        %v2315 = vrot.slane %v1368, 7
        %v2316 = vrot.slane %v2315, 2
        %v2317 = vrot.slane %v1376, 7
        %v2318 = vrot.slane %v2317, 2
        %v2319 = vrot.slane %v1384, 7
        %v2320 = vrot.slane %v2319, 2
        %v2321 = vrot.slane %v1383, 7
        %v2322 = vrot.slane %v2321, 2
        %v2323 = vrot.slane %v1385, 7
        %v2324 = vrot.slane %v2323, 2
        %v2325 = vrot.slane %v1393, 7
        %v2326 = vrot.slane %v2325, 2
        %v2327 = vrot.slane %v1401, 7
        %v2328 = vrot.slane %v2327, 2
        %v2329 = vrot.slane %v1400, 7
        %v2330 = vrot.slane %v2329, 2
        %v2331 = vrot.slane %v1402, 7
        %v2332 = vrot.slane %v2331, 2
        %v2333 = vrot.slane %v1410, 7
        %v2334 = vrot.slane %v2333, 2
        %v2335 = vrot.slane %v1418, 7
        %v2336 = vrot.slane %v2335, 2
        %v2337 = vrot.slane %v1417, 7
        %v2338 = vrot.slane %v2337, 2
        %v2339 = vrot.slane %v1419, 7
        %v2340 = vrot.slane %v2339, 2
        %v2341 = vrot.slane %v1427, 7
        %v2342 = vrot.slane %v2341, 2
        %v2343 = vrot.slane %v1435, 7
        %v2344 = vrot.slane %v2343, 2
        %v2345 = vrot.slane %v1434, 7
        %v2346 = vrot.slane %v2345, 2
        %v2347 = vrot.slane %v1436, 7
        %v2348 = vrot.slane %v2347, 2
        %v2349 = vrot.slane %v1444, 7
        %v2350 = vrot.slane %v2349, 2
        %v2351 = vrot.slane %v1452, 7
        %v2352 = vrot.slane %v2351, 2
        %v2353 = vrot.slane %v1451, 7
        %v2354 = vrot.slane %v2353, 2
        %v2355 = vrot.slane %v1453, 7
        %v2356 = vrot.slane %v2355, 2
        %v2357 = vrot.slane %v1461, 7
        %v2358 = vrot.slane %v2357, 2
        %v2359 = vrot.slane %v1469, 7
        %v2360 = vrot.slane %v2359, 2
        %v2361 = vrot.slane %v1468, 7
        %v2362 = vrot.slane %v2361, 2
        %v2363 = vrot.slane %v1470, 7
        %v2364 = vrot.slane %v2363, 2
        %v2365 = vrot.slane %v1478, 7
        %v2366 = vrot.slane %v2365, 2
        %v2367 = vrot.slane %v1486, 7
        %v2368 = vrot.slane %v2367, 2
        %v2369 = vrot.slane %v1485, 7
        %v2370 = vrot.slane %v2369, 2
        %v2371 = vrot.slane %v1487, 7
        %v2372 = vrot.slane %v2371, 2
        %v2373 = vrot.slane %v1495, 7
        %v2374 = vrot.slane %v2373, 2
        %v2375 = vrot.slane %v1503, 7
        %v2376 = vrot.slane %v2375, 2
        %v2377 = vrot.slane %v1502, 7
        %v2378 = vrot.slane %v2377, 2
        %v2379 = vrot.slane %v1504, 7
        %v2380 = vrot.slane %v2379, 2
        %v2381 = vrot.slane %v1512, 7
        %v2382 = vrot.slane %v2381, 2
        %v2383 = vrot.slane %v1520, 7
        %v2384 = vrot.slane %v2383, 2
        %v2385 = vrot.slane %v1519, 7
        %v2386 = vrot.slane %v2385, 2
        %v2387 = vrot.slane %v1521, 7
        %v2388 = vrot.slane %v2387, 2
        %v2389 = vrot.slane %v1529, 7
        %v2390 = vrot.slane %v2389, 2
        %v2391 = vrot.slane %v1537, 7
        %v2392 = vrot.slane %v2391, 2
        %v2393 = vrot.slane %v1536, 7
        %v2394 = vrot.slane %v2393, 2
        %v2395 = vrot.slane %v1538, 7
        %v2396 = vrot.slane %v2395, 2
        %v2397 = vrot.slane %v1546, 7
        %v2398 = vrot.slane %v2397, 2
        %v2399 = vrot.slane %v1554, 7
        %v2400 = vrot.slane %v2399, 2
        %v2401 = vrot.slane %v1553, 7
        %v2402 = vrot.slane %v2401, 2
        %v2403 = vrot.slane %v1555, 7
        %v2404 = vrot.slane %v2403, 2
        %v2405 = vrot.slane %v1563, 7
        %v2406 = vrot.slane %v2405, 2
        %v2407 = vrot.slane %v1571, 7
        %v2408 = vrot.slane %v2407, 2
        %v2409 = vrot.slane %v1570, 7
        %v2410 = vrot.slane %v2409, 2
        %v2411 = vrot.slane %v1572, 7
        %v2412 = vrot.slane %v2411, 2
        %v2413 = vrot.slane %v1580, 7
        %v2414 = vrot.slane %v2413, 2
        %v2415 = vrot.slane %v1588, 7
        %v2416 = vrot.slane %v2415, 2
        %v2417 = vrot.slane %v1587, 7
        %v2418 = vrot.slane %v2417, 2
        %v2419 = vrot.slane %v1589, 7
        %v2420 = vrot.slane %v2419, 2
        %v2421 = vrot.slane %v1597, 7
        %v2422 = vrot.slane %v2421, 2
        %v2423 = vrot.slane %v1605, 7
        %v2424 = vrot.slane %v2423, 2
        %v2425 = vrot.slane %v1604, 7
        %v2426 = vrot.slane %v2425, 2
        %v2427 = vrot.slane %v1606, 7
        %v2428 = vrot.slane %v2427, 2
        %v2429 = vrot.slane %v1614, 7
        %v2430 = vrot.slane %v2429, 2
        %v2431 = vrot.slane %v1622, 7
        %v2432 = vrot.slane %v2431, 2
        %v2433 = vrot.slane %v1621, 7
        %v2434 = vrot.slane %v2433, 2
        %v2435 = vrot.slane %v1623, 7
        %v2436 = vrot.slane %v2435, 2
        %v2437 = vrot.slane %v1631, 7
        %v2438 = vrot.slane %v2437, 2
        %v2439 = vrot.slane %v1639, 7
        %v2440 = vrot.slane %v2439, 2
        %v2441 = vrot.slane %v1638, 7
        %v2442 = vrot.slane %v2441, 2
        %v2443 = vrot.slane %v1640, 7
        %v2444 = vrot.slane %v2443, 2
        %v2445 = vrot.slane %v1648, 7
        %v2446 = vrot.slane %v2445, 2
        %v2447 = vrot.slane %v1656, 7
        %v2448 = vrot.slane %v2447, 2
        %v2449 = vrot.slane %v1655, 7
        %v2450 = vrot.slane %v2449, 2
        %v2451 = vrot.slane %v1657, 7
        %v2452 = vrot.slane %v2451, 2
        %v2453 = vrot.slane %v1665, 7
        %v2454 = vrot.slane %v2453, 2
        %v2455 = vrot.slane %v1673, 7
        %v2456 = vrot.slane %v2455, 2
        %v2457 = vrot.slane %v1672, 7
        %v2458 = vrot.slane %v2457, 2
        %v2459 = vrot.slane %v1674, 7
        %v2460 = vrot.slane %v2459, 2
        %v2461 = vrot.slane %v1682, 7
        %v2462 = vrot.slane %v2461, 2
        %v2463 = vrot.slane %v1690, 7
        %v2464 = vrot.slane %v2463, 2
        %v2465 = vrot.slane %v1689, 7
        %v2466 = vrot.slane %v2465, 2
        %v2467 = vrot.slane %v1691, 7
        %v2468 = vrot.slane %v2467, 2
        %v2469 = vrot.slane %v1699, 7
        %v2470 = vrot.slane %v2469, 2
        %v2471 = vrot.slane %v1707, 7
        %v2472 = vrot.slane %v2471, 2
        %v2473 = vrot.slane %v1706, 7
        %v2474 = vrot.slane %v2473, 2
        %v2475 = vrot.slane %v1708, 7
        %v2476 = vrot.slane %v2475, 2
        %v2733 = vmax.f32 %v628, %v1966
        %v2734 = vmax.f32 %v636, %v1968
        %v2735 = vmax.f32 %v635, %v1970
        %v2736 = vmax.f32 %v637, %v1972
        %v2737 = vmax.f32 %v645, %v1974
        %v2738 = vmax.f32 %v653, %v1976
        %v2739 = vmax.f32 %v652, %v1978
        %v2740 = vmax.f32 %v654, %v1980
        %v2741 = vmax.f32 %v662, %v1982
        %v2742 = vmax.f32 %v670, %v1984
        %v2743 = vmax.f32 %v669, %v1986
        %v2744 = vmax.f32 %v671, %v1988
        %v2745 = vmax.f32 %v679, %v1990
        %v2746 = vmax.f32 %v687, %v1992
        %v2747 = vmax.f32 %v686, %v1994
        %v2748 = vmax.f32 %v688, %v1996
        %v2749 = vmax.f32 %v696, %v1998
        %v2750 = vmax.f32 %v704, %v2000
        %v2751 = vmax.f32 %v703, %v2002
        %v2752 = vmax.f32 %v705, %v2004
        %v2753 = vmax.f32 %v713, %v2006
        %v2754 = vmax.f32 %v721, %v2008
        %v2755 = vmax.f32 %v720, %v2010
        %v2756 = vmax.f32 %v722, %v2012
        %v2757 = vmax.f32 %v730, %v2014
        %v2758 = vmax.f32 %v738, %v2016
        %v2759 = vmax.f32 %v737, %v2018
        %v2760 = vmax.f32 %v739, %v2020
        %v2761 = vmax.f32 %v747, %v2022
        %v2762 = vmax.f32 %v755, %v2024
        %v2763 = vmax.f32 %v754, %v2026
        %v2764 = vmax.f32 %v756, %v2028
        %v2765 = vmax.f32 %v764, %v2030
        %v2766 = vmax.f32 %v772, %v2032
        %v2767 = vmax.f32 %v771, %v2034
        %v2768 = vmax.f32 %v773, %v2036
        %v2769 = vmax.f32 %v781, %v2038
        %v2770 = vmax.f32 %v789, %v2040
        %v2771 = vmax.f32 %v788, %v2042
        %v2772 = vmax.f32 %v790, %v2044
        %v2773 = vmax.f32 %v798, %v2046
        %v2774 = vmax.f32 %v806, %v2048
        %v2775 = vmax.f32 %v805, %v2050
        %v2776 = vmax.f32 %v807, %v2052
        %v2777 = vmax.f32 %v815, %v2054
        %v2778 = vmax.f32 %v823, %v2056
        %v2779 = vmax.f32 %v822, %v2058
        %v2780 = vmax.f32 %v824, %v2060
        %v2781 = vmax.f32 %v832, %v2062
        %v2782 = vmax.f32 %v840, %v2064
        %v2783 = vmax.f32 %v839, %v2066
        %v2784 = vmax.f32 %v841, %v2068
        %v2785 = vmax.f32 %v849, %v2070
        %v2786 = vmax.f32 %v857, %v2072
        %v2787 = vmax.f32 %v856, %v2074
        %v2788 = vmax.f32 %v858, %v2076
        %v2789 = vmax.f32 %v866, %v2078
        %v2790 = vmax.f32 %v874, %v2080
        %v2791 = vmax.f32 %v873, %v2082
        %v2792 = vmax.f32 %v875, %v2084
        %v2793 = vmax.f32 %v883, %v2086
        %v2794 = vmax.f32 %v891, %v2088
        %v2795 = vmax.f32 %v890, %v2090
        %v2796 = vmax.f32 %v892, %v2092
        %v2797 = vmax.f32 %v900, %v2094
        %v2798 = vmax.f32 %v908, %v2096
        %v2799 = vmax.f32 %v907, %v2098
        %v2800 = vmax.f32 %v909, %v2100
        %v2801 = vmax.f32 %v917, %v2102
        %v2802 = vmax.f32 %v925, %v2104
        %v2803 = vmax.f32 %v924, %v2106
        %v2804 = vmax.f32 %v926, %v2108
        %v2805 = vmax.f32 %v934, %v2110
        %v2806 = vmax.f32 %v942, %v2112
        %v2807 = vmax.f32 %v941, %v2114
        %v2808 = vmax.f32 %v943, %v2116
        %v2809 = vmax.f32 %v951, %v2118
        %v2810 = vmax.f32 %v959, %v2120
        %v2811 = vmax.f32 %v958, %v2122
        %v2812 = vmax.f32 %v960, %v2124
        %v2813 = vmax.f32 %v968, %v2126
        %v2814 = vmax.f32 %v976, %v2128
        %v2815 = vmax.f32 %v975, %v2130
        %v2816 = vmax.f32 %v977, %v2132
        %v2817 = vmax.f32 %v985, %v2134
        %v2818 = vmax.f32 %v993, %v2136
        %v2819 = vmax.f32 %v992, %v2138
        %v2820 = vmax.f32 %v994, %v2140
        %v2821 = vmax.f32 %v1002, %v2142
        %v2822 = vmax.f32 %v1010, %v2144
        %v2823 = vmax.f32 %v1009, %v2146
        %v2824 = vmax.f32 %v1011, %v2148
        %v2825 = vmax.f32 %v1019, %v2150
        %v2826 = vmax.f32 %v1027, %v2152
        %v2827 = vmax.f32 %v1026, %v2154
        %v2828 = vmax.f32 %v1028, %v2156
        %v2829 = vmax.f32 %v1036, %v2158
        %v2830 = vmax.f32 %v1044, %v2160
        %v2831 = vmax.f32 %v1043, %v2162
        %v2832 = vmax.f32 %v1045, %v2164
        %v2833 = vmax.f32 %v1053, %v2166
        %v2834 = vmax.f32 %v1061, %v2168
        %v2835 = vmax.f32 %v1060, %v2170
        %v2836 = vmax.f32 %v1062, %v2172
        %v2837 = vmax.f32 %v1070, %v2174
        %v2838 = vmax.f32 %v1078, %v2176
        %v2839 = vmax.f32 %v1077, %v2178
        %v2840 = vmax.f32 %v1079, %v2180
        %v2841 = vmax.f32 %v1087, %v2182
        %v2842 = vmax.f32 %v1095, %v2184
        %v2843 = vmax.f32 %v1094, %v2186
        %v2844 = vmax.f32 %v1096, %v2188
        %v2845 = vmax.f32 %v1104, %v2190
        %v2846 = vmax.f32 %v1112, %v2192
        %v2847 = vmax.f32 %v1111, %v2194
        %v2848 = vmax.f32 %v1113, %v2196
        %v2849 = vmax.f32 %v1121, %v2198
        %v2850 = vmax.f32 %v1129, %v2200
        %v2851 = vmax.f32 %v1128, %v2202
        %v2852 = vmax.f32 %v1130, %v2204
        %v2853 = vmax.f32 %v1138, %v2206
        %v2854 = vmax.f32 %v1146, %v2208
        %v2855 = vmax.f32 %v1145, %v2210
        %v2856 = vmax.f32 %v1147, %v2212
        %v2857 = vmax.f32 %v1155, %v2214
        %v2858 = vmax.f32 %v1163, %v2216
        %v2859 = vmax.f32 %v1162, %v2218
        %v2860 = vmax.f32 %v1164, %v2220
        %v2861 = vmax.f32 %v1172, %v2222
        %v2862 = vmax.f32 %v1180, %v2224
        %v2863 = vmax.f32 %v1179, %v2226
        %v2864 = vmax.f32 %v1181, %v2228
        %v2865 = vmax.f32 %v1189, %v2230
        %v2866 = vmax.f32 %v1197, %v2232
        %v2867 = vmax.f32 %v1196, %v2234
        %v2868 = vmax.f32 %v1198, %v2236
        %v2869 = vmax.f32 %v1206, %v2238
        %v2870 = vmax.f32 %v1214, %v2240
        %v2871 = vmax.f32 %v1213, %v2242
        %v2872 = vmax.f32 %v1215, %v2244
        %v2873 = vmax.f32 %v1223, %v2246
        %v2874 = vmax.f32 %v1231, %v2248
        %v2875 = vmax.f32 %v1230, %v2250
        %v2876 = vmax.f32 %v1232, %v2252
        %v2877 = vmax.f32 %v1240, %v2254
        %v2878 = vmax.f32 %v1248, %v2256
        %v2879 = vmax.f32 %v1247, %v2258
        %v2880 = vmax.f32 %v1249, %v2260
        %v2881 = vmax.f32 %v1257, %v2262
        %v2882 = vmax.f32 %v1265, %v2264
        %v2883 = vmax.f32 %v1264, %v2266
        %v2884 = vmax.f32 %v1266, %v2268
        %v2885 = vmax.f32 %v1274, %v2270
        %v2886 = vmax.f32 %v1282, %v2272
        %v2887 = vmax.f32 %v1281, %v2274
        %v2888 = vmax.f32 %v1283, %v2276
        %v2889 = vmax.f32 %v1291, %v2278
        %v2890 = vmax.f32 %v1299, %v2280
        %v2891 = vmax.f32 %v1298, %v2282
        %v2892 = vmax.f32 %v1300, %v2284
        %v2893 = vmax.f32 %v1308, %v2286
        %v2894 = vmax.f32 %v1316, %v2288
        %v2895 = vmax.f32 %v1315, %v2290
        %v2896 = vmax.f32 %v1317, %v2292
        %v2897 = vmax.f32 %v1325, %v2294
        %v2898 = vmax.f32 %v1333, %v2296
        %v2899 = vmax.f32 %v1332, %v2298
        %v2900 = vmax.f32 %v1334, %v2300
        %v2901 = vmax.f32 %v1342, %v2302
        %v2902 = vmax.f32 %v1350, %v2304
        %v2903 = vmax.f32 %v1349, %v2306
        %v2904 = vmax.f32 %v1351, %v2308
        %v2905 = vmax.f32 %v1359, %v2310
        %v2906 = vmax.f32 %v1367, %v2312
        %v2907 = vmax.f32 %v1366, %v2314
        %v2908 = vmax.f32 %v1368, %v2316
        %v2909 = vmax.f32 %v1376, %v2318
        %v2910 = vmax.f32 %v1384, %v2320
        %v2911 = vmax.f32 %v1383, %v2322
        %v2912 = vmax.f32 %v1385, %v2324
        %v2913 = vmax.f32 %v1393, %v2326
        %v2914 = vmax.f32 %v1401, %v2328
        %v2915 = vmax.f32 %v1400, %v2330
        %v2916 = vmax.f32 %v1402, %v2332
        %v2917 = vmax.f32 %v1410, %v2334
        %v2918 = vmax.f32 %v1418, %v2336
        %v2919 = vmax.f32 %v1417, %v2338
        %v2920 = vmax.f32 %v1419, %v2340
        %v2921 = vmax.f32 %v1427, %v2342
        %v2922 = vmax.f32 %v1435, %v2344
        %v2923 = vmax.f32 %v1434, %v2346
        %v2924 = vmax.f32 %v1436, %v2348
        %v2925 = vmax.f32 %v1444, %v2350
        %v2926 = vmax.f32 %v1452, %v2352
        %v2927 = vmax.f32 %v1451, %v2354
        %v2928 = vmax.f32 %v1453, %v2356
        %v2929 = vmax.f32 %v1461, %v2358
        %v2930 = vmax.f32 %v1469, %v2360
        %v2931 = vmax.f32 %v1468, %v2362
        %v2932 = vmax.f32 %v1470, %v2364
        %v2933 = vmax.f32 %v1478, %v2366
        %v2934 = vmax.f32 %v1486, %v2368
        %v2935 = vmax.f32 %v1485, %v2370
        %v2936 = vmax.f32 %v1487, %v2372
        %v2937 = vmax.f32 %v1495, %v2374
        %v2938 = vmax.f32 %v1503, %v2376
        %v2939 = vmax.f32 %v1502, %v2378
        %v2940 = vmax.f32 %v1504, %v2380
        %v2941 = vmax.f32 %v1512, %v2382
        %v2942 = vmax.f32 %v1520, %v2384
        %v2943 = vmax.f32 %v1519, %v2386
        %v2944 = vmax.f32 %v1521, %v2388
        %v2945 = vmax.f32 %v1529, %v2390
        %v2946 = vmax.f32 %v1537, %v2392
        %v2947 = vmax.f32 %v1536, %v2394
        %v2948 = vmax.f32 %v1538, %v2396
        %v2949 = vmax.f32 %v1546, %v2398
        %v2950 = vmax.f32 %v1554, %v2400
        %v2951 = vmax.f32 %v1553, %v2402
        %v2952 = vmax.f32 %v1555, %v2404
        %v2953 = vmax.f32 %v1563, %v2406
        %v2954 = vmax.f32 %v1571, %v2408
        %v2955 = vmax.f32 %v1570, %v2410
        %v2956 = vmax.f32 %v1572, %v2412
        %v2957 = vmax.f32 %v1580, %v2414
        %v2958 = vmax.f32 %v1588, %v2416
        %v2959 = vmax.f32 %v1587, %v2418
        %v2960 = vmax.f32 %v1589, %v2420
        %v2961 = vmax.f32 %v1597, %v2422
        %v2962 = vmax.f32 %v1605, %v2424
        %v2963 = vmax.f32 %v1604, %v2426
        %v2964 = vmax.f32 %v1606, %v2428
        %v2965 = vmax.f32 %v1614, %v2430
        %v2966 = vmax.f32 %v1622, %v2432
        %v2967 = vmax.f32 %v1621, %v2434
        %v2968 = vmax.f32 %v1623, %v2436
        %v2969 = vmax.f32 %v1631, %v2438
        %v2970 = vmax.f32 %v1639, %v2440
        %v2971 = vmax.f32 %v1638, %v2442
        %v2972 = vmax.f32 %v1640, %v2444
        %v2973 = vmax.f32 %v1648, %v2446
        %v2974 = vmax.f32 %v1656, %v2448
        %v2975 = vmax.f32 %v1655, %v2450
        %v2976 = vmax.f32 %v1657, %v2452
        %v2977 = vmax.f32 %v1665, %v2454
        %v2978 = vmax.f32 %v1673, %v2456
        %v2979 = vmax.f32 %v1672, %v2458
        %v2980 = vmax.f32 %v1674, %v2460
        %v2981 = vmax.f32 %v1682, %v2462
        %v2982 = vmax.f32 %v1690, %v2464
        %v2983 = vmax.f32 %v1689, %v2466
        %v2984 = vmax.f32 %v1691, %v2468
        %v2985 = vmax.f32 %v1699, %v2470
        %v2986 = vmax.f32 %v1707, %v2472
        %v2987 = vmax.f32 %v1706, %v2474
        %v2988 = vmax.f32 %v1708, %v2476
        %v2989 = vmax.f32 %v2733, %v2749
        %v2990 = vmax.f32 %v2734, %v2750
        %v2991 = vmax.f32 %v2735, %v2751
        %v2992 = vmax.f32 %v2736, %v2752
        %v2993 = vmax.f32 %v2737, %v2753
        %v2994 = vmax.f32 %v2738, %v2754
        %v2995 = vmax.f32 %v2739, %v2755
        %v2996 = vmax.f32 %v2740, %v2756
        %v2997 = vmax.f32 %v2741, %v2757
        %v2998 = vmax.f32 %v2742, %v2758
        %v2999 = vmax.f32 %v2743, %v2759
        %v3000 = vmax.f32 %v2744, %v2760
        %v3001 = vmax.f32 %v2745, %v2761
        %v3002 = vmax.f32 %v2746, %v2762
        %v3003 = vmax.f32 %v2747, %v2763
        %v3004 = vmax.f32 %v2748, %v2764
        %v3005 = vmax.f32 %v2765, %v2781
        %v3006 = vmax.f32 %v2766, %v2782
        %v3007 = vmax.f32 %v2767, %v2783
        %v3008 = vmax.f32 %v2768, %v2784
        %v3009 = vmax.f32 %v2769, %v2785
        %v3010 = vmax.f32 %v2770, %v2786
        %v3011 = vmax.f32 %v2771, %v2787
        %v3012 = vmax.f32 %v2772, %v2788
        %v3013 = vmax.f32 %v2773, %v2789
        %v3014 = vmax.f32 %v2774, %v2790
        %v3015 = vmax.f32 %v2775, %v2791
        %v3016 = vmax.f32 %v2776, %v2792
        %v3017 = vmax.f32 %v2777, %v2793
        %v3018 = vmax.f32 %v2778, %v2794
        %v3019 = vmax.f32 %v2779, %v2795
        %v3020 = vmax.f32 %v2780, %v2796
        %v3021 = vmax.f32 %v2797, %v2813
        %v3022 = vmax.f32 %v2798, %v2814
        %v3023 = vmax.f32 %v2799, %v2815
        %v3024 = vmax.f32 %v2800, %v2816
        %v3025 = vmax.f32 %v2801, %v2817
        %v3026 = vmax.f32 %v2802, %v2818
        %v3027 = vmax.f32 %v2803, %v2819
        %v3028 = vmax.f32 %v2804, %v2820
        %v3029 = vmax.f32 %v2805, %v2821
        %v3030 = vmax.f32 %v2806, %v2822
        %v3031 = vmax.f32 %v2807, %v2823
        %v3032 = vmax.f32 %v2808, %v2824
        %v3033 = vmax.f32 %v2809, %v2825
        %v3034 = vmax.f32 %v2810, %v2826
        %v3035 = vmax.f32 %v2811, %v2827
        %v3036 = vmax.f32 %v2812, %v2828
        %v3037 = vmax.f32 %v2829, %v2845
        %v3038 = vmax.f32 %v2830, %v2846
        %v3039 = vmax.f32 %v2831, %v2847
        %v3040 = vmax.f32 %v2832, %v2848
        %v3041 = vmax.f32 %v2833, %v2849
        %v3042 = vmax.f32 %v2834, %v2850
        %v3043 = vmax.f32 %v2835, %v2851
        %v3044 = vmax.f32 %v2836, %v2852
        %v3045 = vmax.f32 %v2837, %v2853
        %v3046 = vmax.f32 %v2838, %v2854
        %v3047 = vmax.f32 %v2839, %v2855
        %v3048 = vmax.f32 %v2840, %v2856
        %v3049 = vmax.f32 %v2841, %v2857
        %v3050 = vmax.f32 %v2842, %v2858
        %v3051 = vmax.f32 %v2843, %v2859
        %v3052 = vmax.f32 %v2844, %v2860
        %v3053 = vmax.f32 %v2861, %v2877
        %v3054 = vmax.f32 %v2862, %v2878
        %v3055 = vmax.f32 %v2863, %v2879
        %v3056 = vmax.f32 %v2864, %v2880
        %v3057 = vmax.f32 %v2865, %v2881
        %v3058 = vmax.f32 %v2866, %v2882
        %v3059 = vmax.f32 %v2867, %v2883
        %v3060 = vmax.f32 %v2868, %v2884
        %v3061 = vmax.f32 %v2869, %v2885
        %v3062 = vmax.f32 %v2870, %v2886
        %v3063 = vmax.f32 %v2871, %v2887
        %v3064 = vmax.f32 %v2872, %v2888
        %v3065 = vmax.f32 %v2873, %v2889
        %v3066 = vmax.f32 %v2874, %v2890
        %v3067 = vmax.f32 %v2875, %v2891
        %v3068 = vmax.f32 %v2876, %v2892
        %v3069 = vmax.f32 %v2893, %v2909
        %v3070 = vmax.f32 %v2894, %v2910
        %v3071 = vmax.f32 %v2895, %v2911
        %v3072 = vmax.f32 %v2896, %v2912
        %v3073 = vmax.f32 %v2897, %v2913
        %v3074 = vmax.f32 %v2898, %v2914
        %v3075 = vmax.f32 %v2899, %v2915
        %v3076 = vmax.f32 %v2900, %v2916
        %v3077 = vmax.f32 %v2901, %v2917
        %v3078 = vmax.f32 %v2902, %v2918
        %v3079 = vmax.f32 %v2903, %v2919
        %v3080 = vmax.f32 %v2904, %v2920
        %v3081 = vmax.f32 %v2905, %v2921
        %v3082 = vmax.f32 %v2906, %v2922
        %v3083 = vmax.f32 %v2907, %v2923
        %v3084 = vmax.f32 %v2908, %v2924
        %v3085 = vmax.f32 %v2925, %v2941
        %v3086 = vmax.f32 %v2926, %v2942
        %v3087 = vmax.f32 %v2927, %v2943
        %v3088 = vmax.f32 %v2928, %v2944
        %v3089 = vmax.f32 %v2929, %v2945
        %v3090 = vmax.f32 %v2930, %v2946
        %v3091 = vmax.f32 %v2931, %v2947
        %v3092 = vmax.f32 %v2932, %v2948
        %v3093 = vmax.f32 %v2933, %v2949
        %v3094 = vmax.f32 %v2934, %v2950
        %v3095 = vmax.f32 %v2935, %v2951
        %v3096 = vmax.f32 %v2936, %v2952
        %v3097 = vmax.f32 %v2937, %v2953
        %v3098 = vmax.f32 %v2938, %v2954
        %v3099 = vmax.f32 %v2939, %v2955
        %v3100 = vmax.f32 %v2940, %v2956
        %v3101 = vmax.f32 %v2957, %v2973
        %v3102 = vmax.f32 %v2958, %v2974
        %v3103 = vmax.f32 %v2959, %v2975
        %v3104 = vmax.f32 %v2960, %v2976
        %v3105 = vmax.f32 %v2961, %v2977
        %v3106 = vmax.f32 %v2962, %v2978
        %v3107 = vmax.f32 %v2963, %v2979
        %v3108 = vmax.f32 %v2964, %v2980
        %v3109 = vmax.f32 %v2965, %v2981
        %v3110 = vmax.f32 %v2966, %v2982
        %v3111 = vmax.f32 %v2967, %v2983
        %v3112 = vmax.f32 %v2968, %v2984
        %v3113 = vmax.f32 %v2969, %v2985
        %v3114 = vmax.f32 %v2970, %v2986
        %v3115 = vmax.f32 %v2971, %v2987
        %v3116 = vmax.f32 %v2972, %v2988
        %v3245 = vlaneseq
        %v3246 = vshrl.u32 %v3245, 7
        %v3247 = vsub.s32 0, %v3246
        %v3248 = vrot.slane %v2989, %v3247
        %v3249 = vlaneseq
        %v3250 = vshrl.u32 %v3249, 7
        %v3251 = vsub.s32 0, %v3250
        %v3252 = vrot.slane %v2990, %v3251
        %v3253 = vlaneseq
        %v3254 = vshrl.u32 %v3253, 7
        %v3255 = vsub.s32 0, %v3254
        %v3256 = vrot.slane %v2991, %v3255
        %v3257 = vlaneseq
        %v3258 = vshrl.u32 %v3257, 7
        %v3259 = vsub.s32 0, %v3258
        %v3260 = vrot.slane %v2992, %v3259
        %v3261 = vlaneseq
        %v3262 = vshrl.u32 %v3261, 7
        %v3263 = vsub.s32 0, %v3262
        %v3264 = vrot.slane %v2993, %v3263
        %v3265 = vlaneseq
        %v3266 = vshrl.u32 %v3265, 7
        %v3267 = vsub.s32 0, %v3266
        %v3268 = vrot.slane %v2994, %v3267
        %v3269 = vlaneseq
        %v3270 = vshrl.u32 %v3269, 7
        %v3271 = vsub.s32 0, %v3270
        %v3272 = vrot.slane %v2995, %v3271
        %v3273 = vlaneseq
        %v3274 = vshrl.u32 %v3273, 7
        %v3275 = vsub.s32 0, %v3274
        %v3276 = vrot.slane %v2996, %v3275
        %v3277 = vlaneseq
        %v3278 = vshrl.u32 %v3277, 7
        %v3279 = vsub.s32 0, %v3278
        %v3280 = vrot.slane %v2997, %v3279
        %v3281 = vlaneseq
        %v3282 = vshrl.u32 %v3281, 7
        %v3283 = vsub.s32 0, %v3282
        %v3284 = vrot.slane %v2998, %v3283
        %v3285 = vlaneseq
        %v3286 = vshrl.u32 %v3285, 7
        %v3287 = vsub.s32 0, %v3286
        %v3288 = vrot.slane %v2999, %v3287
        %v3289 = vlaneseq
        %v3290 = vshrl.u32 %v3289, 7
        %v3291 = vsub.s32 0, %v3290
        %v3292 = vrot.slane %v3000, %v3291
        %v3293 = vlaneseq
        %v3294 = vshrl.u32 %v3293, 7
        %v3295 = vsub.s32 0, %v3294
        %v3296 = vrot.slane %v3001, %v3295
        %v3297 = vlaneseq
        %v3298 = vshrl.u32 %v3297, 7
        %v3299 = vsub.s32 0, %v3298
        %v3300 = vrot.slane %v3002, %v3299
        %v3301 = vlaneseq
        %v3302 = vshrl.u32 %v3301, 7
        %v3303 = vsub.s32 0, %v3302
        %v3304 = vrot.slane %v3003, %v3303
        %v3305 = vlaneseq
        %v3306 = vshrl.u32 %v3305, 7
        %v3307 = vsub.s32 0, %v3306
        %v3308 = vrot.slane %v3004, %v3307
        %v3309 = vlaneseq
        %v3310 = vshrl.u32 %v3309, 7
        %v3311 = vsub.s32 0, %v3310
        %v3312 = vrot.slane %v3005, %v3311
        %v3313 = vlaneseq
        %v3314 = vshrl.u32 %v3313, 7
        %v3315 = vsub.s32 0, %v3314
        %v3316 = vrot.slane %v3006, %v3315
        %v3317 = vlaneseq
        %v3318 = vshrl.u32 %v3317, 7
        %v3319 = vsub.s32 0, %v3318
        %v3320 = vrot.slane %v3007, %v3319
        %v3321 = vlaneseq
        %v3322 = vshrl.u32 %v3321, 7
        %v3323 = vsub.s32 0, %v3322
        %v3324 = vrot.slane %v3008, %v3323
        %v3325 = vlaneseq
        %v3326 = vshrl.u32 %v3325, 7
        %v3327 = vsub.s32 0, %v3326
        %v3328 = vrot.slane %v3009, %v3327
        %v3329 = vlaneseq
        %v3330 = vshrl.u32 %v3329, 7
        %v3331 = vsub.s32 0, %v3330
        %v3332 = vrot.slane %v3010, %v3331
        %v3333 = vlaneseq
        %v3334 = vshrl.u32 %v3333, 7
        %v3335 = vsub.s32 0, %v3334
        %v3336 = vrot.slane %v3011, %v3335
        %v3337 = vlaneseq
        %v3338 = vshrl.u32 %v3337, 7
        %v3339 = vsub.s32 0, %v3338
        %v3340 = vrot.slane %v3012, %v3339
        %v3341 = vlaneseq
        %v3342 = vshrl.u32 %v3341, 7
        %v3343 = vsub.s32 0, %v3342
        %v3344 = vrot.slane %v3013, %v3343
        %v3345 = vlaneseq
        %v3346 = vshrl.u32 %v3345, 7
        %v3347 = vsub.s32 0, %v3346
        %v3348 = vrot.slane %v3014, %v3347
        %v3349 = vlaneseq
        %v3350 = vshrl.u32 %v3349, 7
        %v3351 = vsub.s32 0, %v3350
        %v3352 = vrot.slane %v3015, %v3351
        %v3353 = vlaneseq
        %v3354 = vshrl.u32 %v3353, 7
        %v3355 = vsub.s32 0, %v3354
        %v3356 = vrot.slane %v3016, %v3355
        %v3357 = vlaneseq
        %v3358 = vshrl.u32 %v3357, 7
        %v3359 = vsub.s32 0, %v3358
        %v3360 = vrot.slane %v3017, %v3359
        %v3361 = vlaneseq
        %v3362 = vshrl.u32 %v3361, 7
        %v3363 = vsub.s32 0, %v3362
        %v3364 = vrot.slane %v3018, %v3363
        %v3365 = vlaneseq
        %v3366 = vshrl.u32 %v3365, 7
        %v3367 = vsub.s32 0, %v3366
        %v3368 = vrot.slane %v3019, %v3367
        %v3369 = vlaneseq
        %v3370 = vshrl.u32 %v3369, 7
        %v3371 = vsub.s32 0, %v3370
        %v3372 = vrot.slane %v3020, %v3371
        %v3373 = vlaneseq
        %v3374 = vshrl.u32 %v3373, 7
        %v3375 = vsub.s32 0, %v3374
        %v3376 = vrot.slane %v3021, %v3375
        %v3377 = vlaneseq
        %v3378 = vshrl.u32 %v3377, 7
        %v3379 = vsub.s32 0, %v3378
        %v3380 = vrot.slane %v3022, %v3379
        %v3381 = vlaneseq
        %v3382 = vshrl.u32 %v3381, 7
        %v3383 = vsub.s32 0, %v3382
        %v3384 = vrot.slane %v3023, %v3383
        %v3385 = vlaneseq
        %v3386 = vshrl.u32 %v3385, 7
        %v3387 = vsub.s32 0, %v3386
        %v3388 = vrot.slane %v3024, %v3387
        %v3389 = vlaneseq
        %v3390 = vshrl.u32 %v3389, 7
        %v3391 = vsub.s32 0, %v3390
        %v3392 = vrot.slane %v3025, %v3391
        %v3393 = vlaneseq
        %v3394 = vshrl.u32 %v3393, 7
        %v3395 = vsub.s32 0, %v3394
        %v3396 = vrot.slane %v3026, %v3395
        %v3397 = vlaneseq
        %v3398 = vshrl.u32 %v3397, 7
        %v3399 = vsub.s32 0, %v3398
        %v3400 = vrot.slane %v3027, %v3399
        %v3401 = vlaneseq
        %v3402 = vshrl.u32 %v3401, 7
        %v3403 = vsub.s32 0, %v3402
        %v3404 = vrot.slane %v3028, %v3403
        %v3405 = vlaneseq
        %v3406 = vshrl.u32 %v3405, 7
        %v3407 = vsub.s32 0, %v3406
        %v3408 = vrot.slane %v3029, %v3407
        %v3409 = vlaneseq
        %v3410 = vshrl.u32 %v3409, 7
        %v3411 = vsub.s32 0, %v3410
        %v3412 = vrot.slane %v3030, %v3411
        %v3413 = vlaneseq
        %v3414 = vshrl.u32 %v3413, 7
        %v3415 = vsub.s32 0, %v3414
        %v3416 = vrot.slane %v3031, %v3415
        %v3417 = vlaneseq
        %v3418 = vshrl.u32 %v3417, 7
        %v3419 = vsub.s32 0, %v3418
        %v3420 = vrot.slane %v3032, %v3419
        %v3421 = vlaneseq
        %v3422 = vshrl.u32 %v3421, 7
        %v3423 = vsub.s32 0, %v3422
        %v3424 = vrot.slane %v3033, %v3423
        %v3425 = vlaneseq
        %v3426 = vshrl.u32 %v3425, 7
        %v3427 = vsub.s32 0, %v3426
        %v3428 = vrot.slane %v3034, %v3427
        %v3429 = vlaneseq
        %v3430 = vshrl.u32 %v3429, 7
        %v3431 = vsub.s32 0, %v3430
        %v3432 = vrot.slane %v3035, %v3431
        %v3433 = vlaneseq
        %v3434 = vshrl.u32 %v3433, 7
        %v3435 = vsub.s32 0, %v3434
        %v3436 = vrot.slane %v3036, %v3435
        %v3437 = vlaneseq
        %v3438 = vshrl.u32 %v3437, 7
        %v3439 = vsub.s32 0, %v3438
        %v3440 = vrot.slane %v3037, %v3439
        %v3441 = vlaneseq
        %v3442 = vshrl.u32 %v3441, 7
        %v3443 = vsub.s32 0, %v3442
        %v3444 = vrot.slane %v3038, %v3443
        %v3445 = vlaneseq
        %v3446 = vshrl.u32 %v3445, 7
        %v3447 = vsub.s32 0, %v3446
        %v3448 = vrot.slane %v3039, %v3447
        %v3449 = vlaneseq
        %v3450 = vshrl.u32 %v3449, 7
        %v3451 = vsub.s32 0, %v3450
        %v3452 = vrot.slane %v3040, %v3451
        %v3453 = vlaneseq
        %v3454 = vshrl.u32 %v3453, 7
        %v3455 = vsub.s32 0, %v3454
        %v3456 = vrot.slane %v3041, %v3455
        %v3457 = vlaneseq
        %v3458 = vshrl.u32 %v3457, 7
        %v3459 = vsub.s32 0, %v3458
        %v3460 = vrot.slane %v3042, %v3459
        %v3461 = vlaneseq
        %v3462 = vshrl.u32 %v3461, 7
        %v3463 = vsub.s32 0, %v3462
        %v3464 = vrot.slane %v3043, %v3463
        %v3465 = vlaneseq
        %v3466 = vshrl.u32 %v3465, 7
        %v3467 = vsub.s32 0, %v3466
        %v3468 = vrot.slane %v3044, %v3467
        %v3469 = vlaneseq
        %v3470 = vshrl.u32 %v3469, 7
        %v3471 = vsub.s32 0, %v3470
        %v3472 = vrot.slane %v3045, %v3471
        %v3473 = vlaneseq
        %v3474 = vshrl.u32 %v3473, 7
        %v3475 = vsub.s32 0, %v3474
        %v3476 = vrot.slane %v3046, %v3475
        %v3477 = vlaneseq
        %v3478 = vshrl.u32 %v3477, 7
        %v3479 = vsub.s32 0, %v3478
        %v3480 = vrot.slane %v3047, %v3479
        %v3481 = vlaneseq
        %v3482 = vshrl.u32 %v3481, 7
        %v3483 = vsub.s32 0, %v3482
        %v3484 = vrot.slane %v3048, %v3483
        %v3485 = vlaneseq
        %v3486 = vshrl.u32 %v3485, 7
        %v3487 = vsub.s32 0, %v3486
        %v3488 = vrot.slane %v3049, %v3487
        %v3489 = vlaneseq
        %v3490 = vshrl.u32 %v3489, 7
        %v3491 = vsub.s32 0, %v3490
        %v3492 = vrot.slane %v3050, %v3491
        %v3493 = vlaneseq
        %v3494 = vshrl.u32 %v3493, 7
        %v3495 = vsub.s32 0, %v3494
        %v3496 = vrot.slane %v3051, %v3495
        %v3497 = vlaneseq
        %v3498 = vshrl.u32 %v3497, 7
        %v3499 = vsub.s32 0, %v3498
        %v3500 = vrot.slane %v3052, %v3499
        %v3501 = vlaneseq
        %v3502 = vshrl.u32 %v3501, 7
        %v3503 = vsub.s32 0, %v3502
        %v3504 = vrot.slane %v3053, %v3503
        %v3505 = vlaneseq
        %v3506 = vshrl.u32 %v3505, 7
        %v3507 = vsub.s32 0, %v3506
        %v3508 = vrot.slane %v3054, %v3507
        %v3509 = vlaneseq
        %v3510 = vshrl.u32 %v3509, 7
        %v3511 = vsub.s32 0, %v3510
        %v3512 = vrot.slane %v3055, %v3511
        %v3513 = vlaneseq
        %v3514 = vshrl.u32 %v3513, 7
        %v3515 = vsub.s32 0, %v3514
        %v3516 = vrot.slane %v3056, %v3515
        %v3517 = vlaneseq
        %v3518 = vshrl.u32 %v3517, 7
        %v3519 = vsub.s32 0, %v3518
        %v3520 = vrot.slane %v3057, %v3519
        %v3521 = vlaneseq
        %v3522 = vshrl.u32 %v3521, 7
        %v3523 = vsub.s32 0, %v3522
        %v3524 = vrot.slane %v3058, %v3523
        %v3525 = vlaneseq
        %v3526 = vshrl.u32 %v3525, 7
        %v3527 = vsub.s32 0, %v3526
        %v3528 = vrot.slane %v3059, %v3527
        %v3529 = vlaneseq
        %v3530 = vshrl.u32 %v3529, 7
        %v3531 = vsub.s32 0, %v3530
        %v3532 = vrot.slane %v3060, %v3531
        %v3533 = vlaneseq
        %v3534 = vshrl.u32 %v3533, 7
        %v3535 = vsub.s32 0, %v3534
        %v3536 = vrot.slane %v3061, %v3535
        %v3537 = vlaneseq
        %v3538 = vshrl.u32 %v3537, 7
        %v3539 = vsub.s32 0, %v3538
        %v3540 = vrot.slane %v3062, %v3539
        %v3541 = vlaneseq
        %v3542 = vshrl.u32 %v3541, 7
        %v3543 = vsub.s32 0, %v3542
        %v3544 = vrot.slane %v3063, %v3543
        %v3545 = vlaneseq
        %v3546 = vshrl.u32 %v3545, 7
        %v3547 = vsub.s32 0, %v3546
        %v3548 = vrot.slane %v3064, %v3547
        %v3549 = vlaneseq
        %v3550 = vshrl.u32 %v3549, 7
        %v3551 = vsub.s32 0, %v3550
        %v3552 = vrot.slane %v3065, %v3551
        %v3553 = vlaneseq
        %v3554 = vshrl.u32 %v3553, 7
        %v3555 = vsub.s32 0, %v3554
        %v3556 = vrot.slane %v3066, %v3555
        %v3557 = vlaneseq
        %v3558 = vshrl.u32 %v3557, 7
        %v3559 = vsub.s32 0, %v3558
        %v3560 = vrot.slane %v3067, %v3559
        %v3561 = vlaneseq
        %v3562 = vshrl.u32 %v3561, 7
        %v3563 = vsub.s32 0, %v3562
        %v3564 = vrot.slane %v3068, %v3563
        %v3565 = vlaneseq
        %v3566 = vshrl.u32 %v3565, 7
        %v3567 = vsub.s32 0, %v3566
        %v3568 = vrot.slane %v3069, %v3567
        %v3569 = vlaneseq
        %v3570 = vshrl.u32 %v3569, 7
        %v3571 = vsub.s32 0, %v3570
        %v3572 = vrot.slane %v3070, %v3571
        %v3573 = vlaneseq
        %v3574 = vshrl.u32 %v3573, 7
        %v3575 = vsub.s32 0, %v3574
        %v3576 = vrot.slane %v3071, %v3575
        %v3577 = vlaneseq
        %v3578 = vshrl.u32 %v3577, 7
        %v3579 = vsub.s32 0, %v3578
        %v3580 = vrot.slane %v3072, %v3579
        %v3581 = vlaneseq
        %v3582 = vshrl.u32 %v3581, 7
        %v3583 = vsub.s32 0, %v3582
        %v3584 = vrot.slane %v3073, %v3583
        %v3585 = vlaneseq
        %v3586 = vshrl.u32 %v3585, 7
        %v3587 = vsub.s32 0, %v3586
        %v3588 = vrot.slane %v3074, %v3587
        %v3589 = vlaneseq
        %v3590 = vshrl.u32 %v3589, 7
        %v3591 = vsub.s32 0, %v3590
        %v3592 = vrot.slane %v3075, %v3591
        %v3593 = vlaneseq
        %v3594 = vshrl.u32 %v3593, 7
        %v3595 = vsub.s32 0, %v3594
        %v3596 = vrot.slane %v3076, %v3595
        %v3597 = vlaneseq
        %v3598 = vshrl.u32 %v3597, 7
        %v3599 = vsub.s32 0, %v3598
        %v3600 = vrot.slane %v3077, %v3599
        %v3601 = vlaneseq
        %v3602 = vshrl.u32 %v3601, 7
        %v3603 = vsub.s32 0, %v3602
        %v3604 = vrot.slane %v3078, %v3603
        %v3605 = vlaneseq
        %v3606 = vshrl.u32 %v3605, 7
        %v3607 = vsub.s32 0, %v3606
        %v3608 = vrot.slane %v3079, %v3607
        %v3609 = vlaneseq
        %v3610 = vshrl.u32 %v3609, 7
        %v3611 = vsub.s32 0, %v3610
        %v3612 = vrot.slane %v3080, %v3611
        %v3613 = vlaneseq
        %v3614 = vshrl.u32 %v3613, 7
        %v3615 = vsub.s32 0, %v3614
        %v3616 = vrot.slane %v3081, %v3615
        %v3617 = vlaneseq
        %v3618 = vshrl.u32 %v3617, 7
        %v3619 = vsub.s32 0, %v3618
        %v3620 = vrot.slane %v3082, %v3619
        %v3621 = vlaneseq
        %v3622 = vshrl.u32 %v3621, 7
        %v3623 = vsub.s32 0, %v3622
        %v3624 = vrot.slane %v3083, %v3623
        %v3625 = vlaneseq
        %v3626 = vshrl.u32 %v3625, 7
        %v3627 = vsub.s32 0, %v3626
        %v3628 = vrot.slane %v3084, %v3627
        %v3629 = vlaneseq
        %v3630 = vshrl.u32 %v3629, 7
        %v3631 = vsub.s32 0, %v3630
        %v3632 = vrot.slane %v3085, %v3631
        %v3633 = vlaneseq
        %v3634 = vshrl.u32 %v3633, 7
        %v3635 = vsub.s32 0, %v3634
        %v3636 = vrot.slane %v3086, %v3635
        %v3637 = vlaneseq
        %v3638 = vshrl.u32 %v3637, 7
        %v3639 = vsub.s32 0, %v3638
        %v3640 = vrot.slane %v3087, %v3639
        %v3641 = vlaneseq
        %v3642 = vshrl.u32 %v3641, 7
        %v3643 = vsub.s32 0, %v3642
        %v3644 = vrot.slane %v3088, %v3643
        %v3645 = vlaneseq
        %v3646 = vshrl.u32 %v3645, 7
        %v3647 = vsub.s32 0, %v3646
        %v3648 = vrot.slane %v3089, %v3647
        %v3649 = vlaneseq
        %v3650 = vshrl.u32 %v3649, 7
        %v3651 = vsub.s32 0, %v3650
        %v3652 = vrot.slane %v3090, %v3651
        %v3653 = vlaneseq
        %v3654 = vshrl.u32 %v3653, 7
        %v3655 = vsub.s32 0, %v3654
        %v3656 = vrot.slane %v3091, %v3655
        %v3657 = vlaneseq
        %v3658 = vshrl.u32 %v3657, 7
        %v3659 = vsub.s32 0, %v3658
        %v3660 = vrot.slane %v3092, %v3659
        %v3661 = vlaneseq
        %v3662 = vshrl.u32 %v3661, 7
        %v3663 = vsub.s32 0, %v3662
        %v3664 = vrot.slane %v3093, %v3663
        %v3665 = vlaneseq
        %v3666 = vshrl.u32 %v3665, 7
        %v3667 = vsub.s32 0, %v3666
        %v3668 = vrot.slane %v3094, %v3667
        %v3669 = vlaneseq
        %v3670 = vshrl.u32 %v3669, 7
        %v3671 = vsub.s32 0, %v3670
        %v3672 = vrot.slane %v3095, %v3671
        %v3673 = vlaneseq
        %v3674 = vshrl.u32 %v3673, 7
        %v3675 = vsub.s32 0, %v3674
        %v3676 = vrot.slane %v3096, %v3675
        %v3677 = vlaneseq
        %v3678 = vshrl.u32 %v3677, 7
        %v3679 = vsub.s32 0, %v3678
        %v3680 = vrot.slane %v3097, %v3679
        %v3681 = vlaneseq
        %v3682 = vshrl.u32 %v3681, 7
        %v3683 = vsub.s32 0, %v3682
        %v3684 = vrot.slane %v3098, %v3683
        %v3685 = vlaneseq
        %v3686 = vshrl.u32 %v3685, 7
        %v3687 = vsub.s32 0, %v3686
        %v3688 = vrot.slane %v3099, %v3687
        %v3689 = vlaneseq
        %v3690 = vshrl.u32 %v3689, 7
        %v3691 = vsub.s32 0, %v3690
        %v3692 = vrot.slane %v3100, %v3691
        %v3693 = vlaneseq
        %v3694 = vshrl.u32 %v3693, 7
        %v3695 = vsub.s32 0, %v3694
        %v3696 = vrot.slane %v3101, %v3695
        %v3697 = vlaneseq
        %v3698 = vshrl.u32 %v3697, 7
        %v3699 = vsub.s32 0, %v3698
        %v3700 = vrot.slane %v3102, %v3699
        %v3701 = vlaneseq
        %v3702 = vshrl.u32 %v3701, 7
        %v3703 = vsub.s32 0, %v3702
        %v3704 = vrot.slane %v3103, %v3703
        %v3705 = vlaneseq
        %v3706 = vshrl.u32 %v3705, 7
        %v3707 = vsub.s32 0, %v3706
        %v3708 = vrot.slane %v3104, %v3707
        %v3709 = vlaneseq
        %v3710 = vshrl.u32 %v3709, 7
        %v3711 = vsub.s32 0, %v3710
        %v3712 = vrot.slane %v3105, %v3711
        %v3713 = vlaneseq
        %v3714 = vshrl.u32 %v3713, 7
        %v3715 = vsub.s32 0, %v3714
        %v3716 = vrot.slane %v3106, %v3715
        %v3717 = vlaneseq
        %v3718 = vshrl.u32 %v3717, 7
        %v3719 = vsub.s32 0, %v3718
        %v3720 = vrot.slane %v3107, %v3719
        %v3721 = vlaneseq
        %v3722 = vshrl.u32 %v3721, 7
        %v3723 = vsub.s32 0, %v3722
        %v3724 = vrot.slane %v3108, %v3723
        %v3725 = vlaneseq
        %v3726 = vshrl.u32 %v3725, 7
        %v3727 = vsub.s32 0, %v3726
        %v3728 = vrot.slane %v3109, %v3727
        %v3729 = vlaneseq
        %v3730 = vshrl.u32 %v3729, 7
        %v3731 = vsub.s32 0, %v3730
        %v3732 = vrot.slane %v3110, %v3731
        %v3733 = vlaneseq
        %v3734 = vshrl.u32 %v3733, 7
        %v3735 = vsub.s32 0, %v3734
        %v3736 = vrot.slane %v3111, %v3735
        %v3737 = vlaneseq
        %v3738 = vshrl.u32 %v3737, 7
        %v3739 = vsub.s32 0, %v3738
        %v3740 = vrot.slane %v3112, %v3739
        %v3741 = vlaneseq
        %v3742 = vshrl.u32 %v3741, 7
        %v3743 = vsub.s32 0, %v3742
        %v3744 = vrot.slane %v3113, %v3743
        %v3745 = vlaneseq
        %v3746 = vshrl.u32 %v3745, 7
        %v3747 = vsub.s32 0, %v3746
        %v3748 = vrot.slane %v3114, %v3747
        %v3749 = vlaneseq
        %v3750 = vshrl.u32 %v3749, 7
        %v3751 = vsub.s32 0, %v3750
        %v3752 = vrot.slane %v3115, %v3751
        %v3753 = vlaneseq
        %v3754 = vshrl.u32 %v3753, 7
        %v3755 = vsub.s32 0, %v3754
        %v3756 = vrot.slane %v3116, %v3755
        %vm3757 = vcmask 1041409
        %v3758 = vsel %vm3757, %v3252, %v3248
        %vm3759 = vcmask 1042434
        %v3760 = vsel %vm3759, %v3256, %v3758
        %vm3761 = vcmask 1043459
        %v3762 = vsel %vm3761, %v3260, %v3760
        %vm3763 = vcmask 1044484
        %v3764 = vsel %vm3763, %v3264, %v3762
        %vm3765 = vcmask 1045509
        %v3766 = vsel %vm3765, %v3268, %v3764
        %vm3767 = vcmask 1046534
        %v3768 = vsel %vm3767, %v3272, %v3766
        %vm3769 = vcmask 1047559
        %v3770 = vsel %vm3769, %v3276, %v3768
        %v3771 = vsel %vm3757, %v3284, %v3280
        %v3772 = vsel %vm3759, %v3288, %v3771
        %v3773 = vsel %vm3761, %v3292, %v3772
        %v3774 = vsel %vm3763, %v3296, %v3773
        %v3775 = vsel %vm3765, %v3300, %v3774
        %v3776 = vsel %vm3767, %v3304, %v3775
        %v3777 = vsel %vm3769, %v3308, %v3776
        %v3778 = vsel %vm3757, %v3316, %v3312
        %v3779 = vsel %vm3759, %v3320, %v3778
        %v3780 = vsel %vm3761, %v3324, %v3779
        %v3781 = vsel %vm3763, %v3328, %v3780
        %v3782 = vsel %vm3765, %v3332, %v3781
        %v3783 = vsel %vm3767, %v3336, %v3782
        %v3784 = vsel %vm3769, %v3340, %v3783
        %v3785 = vsel %vm3757, %v3348, %v3344
        %v3786 = vsel %vm3759, %v3352, %v3785
        %v3787 = vsel %vm3761, %v3356, %v3786
        %v3788 = vsel %vm3763, %v3360, %v3787
        %v3789 = vsel %vm3765, %v3364, %v3788
        %v3790 = vsel %vm3767, %v3368, %v3789
        %v3791 = vsel %vm3769, %v3372, %v3790
        %v3792 = vsel %vm3757, %v3380, %v3376
        %v3793 = vsel %vm3759, %v3384, %v3792
        %v3794 = vsel %vm3761, %v3388, %v3793
        %v3795 = vsel %vm3763, %v3392, %v3794
        %v3796 = vsel %vm3765, %v3396, %v3795
        %v3797 = vsel %vm3767, %v3400, %v3796
        %v3798 = vsel %vm3769, %v3404, %v3797
        %v3799 = vsel %vm3757, %v3412, %v3408
        %v3800 = vsel %vm3759, %v3416, %v3799
        %v3801 = vsel %vm3761, %v3420, %v3800
        %v3802 = vsel %vm3763, %v3424, %v3801
        %v3803 = vsel %vm3765, %v3428, %v3802
        %v3804 = vsel %vm3767, %v3432, %v3803
        %v3805 = vsel %vm3769, %v3436, %v3804
        %v3806 = vsel %vm3757, %v3444, %v3440
        %v3807 = vsel %vm3759, %v3448, %v3806
        %v3808 = vsel %vm3761, %v3452, %v3807
        %v3809 = vsel %vm3763, %v3456, %v3808
        %v3810 = vsel %vm3765, %v3460, %v3809
        %v3811 = vsel %vm3767, %v3464, %v3810
        %v3812 = vsel %vm3769, %v3468, %v3811
        %v3813 = vsel %vm3757, %v3476, %v3472
        %v3814 = vsel %vm3759, %v3480, %v3813
        %v3815 = vsel %vm3761, %v3484, %v3814
        %v3816 = vsel %vm3763, %v3488, %v3815
        %v3817 = vsel %vm3765, %v3492, %v3816
        %v3818 = vsel %vm3767, %v3496, %v3817
        %v3819 = vsel %vm3769, %v3500, %v3818
        %v3820 = vsel %vm3757, %v3508, %v3504
        %v3821 = vsel %vm3759, %v3512, %v3820
        %v3822 = vsel %vm3761, %v3516, %v3821
        %v3823 = vsel %vm3763, %v3520, %v3822
        %v3824 = vsel %vm3765, %v3524, %v3823
        %v3825 = vsel %vm3767, %v3528, %v3824
        %v3826 = vsel %vm3769, %v3532, %v3825
        %v3827 = vsel %vm3757, %v3540, %v3536
        %v3828 = vsel %vm3759, %v3544, %v3827
        %v3829 = vsel %vm3761, %v3548, %v3828
        %v3830 = vsel %vm3763, %v3552, %v3829
        %v3831 = vsel %vm3765, %v3556, %v3830
        %v3832 = vsel %vm3767, %v3560, %v3831
        %v3833 = vsel %vm3769, %v3564, %v3832
        %v3834 = vsel %vm3757, %v3572, %v3568
        %v3835 = vsel %vm3759, %v3576, %v3834
        %v3836 = vsel %vm3761, %v3580, %v3835
        %v3837 = vsel %vm3763, %v3584, %v3836
        %v3838 = vsel %vm3765, %v3588, %v3837
        %v3839 = vsel %vm3767, %v3592, %v3838
        %v3840 = vsel %vm3769, %v3596, %v3839
        %v3841 = vsel %vm3757, %v3604, %v3600
        %v3842 = vsel %vm3759, %v3608, %v3841
        %v3843 = vsel %vm3761, %v3612, %v3842
        %v3844 = vsel %vm3763, %v3616, %v3843
        %v3845 = vsel %vm3765, %v3620, %v3844
        %v3846 = vsel %vm3767, %v3624, %v3845
        %v3847 = vsel %vm3769, %v3628, %v3846
        %v3848 = vsel %vm3757, %v3636, %v3632
        %v3849 = vsel %vm3759, %v3640, %v3848
        %v3850 = vsel %vm3761, %v3644, %v3849
        %v3851 = vsel %vm3763, %v3648, %v3850
        %v3852 = vsel %vm3765, %v3652, %v3851
        %v3853 = vsel %vm3767, %v3656, %v3852
        %v3854 = vsel %vm3769, %v3660, %v3853
        %v3855 = vsel %vm3757, %v3668, %v3664
        %v3856 = vsel %vm3759, %v3672, %v3855
        %v3857 = vsel %vm3761, %v3676, %v3856
        %v3858 = vsel %vm3763, %v3680, %v3857
        %v3859 = vsel %vm3765, %v3684, %v3858
        %v3860 = vsel %vm3767, %v3688, %v3859
        %v3861 = vsel %vm3769, %v3692, %v3860
        %v3862 = vsel %vm3757, %v3700, %v3696
        %v3863 = vsel %vm3759, %v3704, %v3862
        %v3864 = vsel %vm3761, %v3708, %v3863
        %v3865 = vsel %vm3763, %v3712, %v3864
        %v3866 = vsel %vm3765, %v3716, %v3865
        %v3867 = vsel %vm3767, %v3720, %v3866
        %v3868 = vsel %vm3769, %v3724, %v3867
        %v3869 = vsel %vm3757, %v3732, %v3728
        %v3870 = vsel %vm3759, %v3736, %v3869
        %v3871 = vsel %vm3761, %v3740, %v3870
        %v3872 = vsel %vm3763, %v3744, %v3871
        %v3873 = vsel %vm3765, %v3748, %v3872
        %v3874 = vsel %vm3767, %v3752, %v3873
        %v3875 = vsel %vm3769, %v3756, %v3874
        %3892 = vst.msk [vmem:[%s475 + $0x1] sm:$0xff] %vm466, %v3770
        %3893 = vst.msk [vmem:[%s475 + $0x9] sm:$0xff] %vm466, %v3777
        %3894 = vst.msk [vmem:[%s475 + $0x19] sm:$0xff] %vm466, %v3784
        %3895 = vst.msk [vmem:[%s475 + $0x21] sm:$0xff] %vm466, %v3791
        %3896 = vst.msk [vmem:[%s475 + $0x31] sm:$0xff] %vm466, %v3798
        %3897 = vst.msk [vmem:[%s475 + $0x39] sm:$0xff] %vm466, %v3805
        %3898 = vst.msk [vmem:[%s475 + $0x49] sm:$0xff] %vm466, %v3812
        %3899 = vst.msk [vmem:[%s475 + $0x51] sm:$0xff] %vm466, %v3819
        %3900 = vst.msk [vmem:[%s475 + $0x61] sm:$0xff] %vm466, %v3826
        %3901 = vst.msk [vmem:[%s475 + $0x69] sm:$0xff] %vm466, %v3833
        %3902 = vst.msk [vmem:[%s475 + $0x79] sm:$0xff] %vm466, %v3840
        %3903 = vst.msk [vmem:[%s475 + $0x81] sm:$0xff] %vm466, %v3847
        %3904 = vst.msk [vmem:[%s475 + $0x91] sm:$0xff] %vm466, %v3854
        %3905 = vst.msk [vmem:[%s475 + $0x99] sm:$0xff] %vm466, %v3861
        %3906 = vst.msk [vmem:[%s475 + $0xa9] sm:$0xff] %vm466, %v3868
        %3907 = vst.msk [vmem:[%s475 + $0xb1] sm:$0xff] %vm466, %v3875
        %p3908 = scmp.gt.s32.totalorder %s30, 0
        // Predicated region
        $region41: #{tpu_custom_call.1} parent=39 // pred_check
          %p3909 = pneg %p3908
        $region42: #{tpu_custom_call.1} parent=39 // pred_check_branch
          %3911 = sbr.rel (%p3909) target = $region44
        $region43: #{tpu_custom_call.1} parent=39 // pred_region
          %s3912 = scalar_lea.vmem %s439, 192
          %v3913 = vld [vmem:[%s3912] sm:$0xff]
          %v3914 = vld [vmem:[%s3912 + $0x8] sm:$0xff]
          %v3915 = vld [vmem:[%s3912 + $0x10] sm:$0xff]
          %v3916 = vld [vmem:[%s3912 + $0x18] sm:$0xff]
          %v3917 = vld [vmem:[%s3912 + $0x20] sm:$0xff]
          %v3918 = vld [vmem:[%s3912 + $0x28] sm:$0xff]
          %v3919 = vld [vmem:[%s3912 + $0x30] sm:$0xff]
          %v3920 = vld [vmem:[%s3912 + $0x38] sm:$0xff]
          %v3929 = vcombine.high %v3913, %v3913
          %v3931 = vunpack.c.l.s4 1983009808
          %v3932 = vunpack.c.0.s8 %v3931
          %v3933 = vlaneseq
          %v3934 = vshrl.u32 %v3933, 7
          %v3935 = vsub.s32 %v3932, %v3934
          %v3936 = vrot.slane %v3913, %v3935
          %v3938 = vunpack.c.l.s4 1983009808
          %v3939 = vunpack.c.0.s8 %v3938
          %v3940 = vlaneseq
          %v3941 = vshrl.u32 %v3940, 7
          %v3942 = vsub.s32 %v3939, %v3941
          %v3943 = vrot.slane %v3929, %v3942
          %v3944 = vcombine.high %v3936, %v3936
          %v3945 = vcombine.high %v3943, %v3943
          %v3946 = vcombine.high %v3914, %v3914
          %v3948 = vunpack.c.l.s4 1983009808
          %v3949 = vunpack.c.0.s8 %v3948
          %v3950 = vlaneseq
          %v3951 = vshrl.u32 %v3950, 7
          %v3952 = vsub.s32 %v3949, %v3951
          %v3953 = vrot.slane %v3914, %v3952
          %v3955 = vunpack.c.l.s4 1983009808
          %v3956 = vunpack.c.0.s8 %v3955
          %v3957 = vlaneseq
          %v3958 = vshrl.u32 %v3957, 7
          %v3959 = vsub.s32 %v3956, %v3958
          %v3960 = vrot.slane %v3946, %v3959
          %v3961 = vcombine.high %v3953, %v3953
          %v3962 = vcombine.high %v3960, %v3960
          %v3963 = vcombine.high %v3915, %v3915
          %v3965 = vunpack.c.l.s4 1983009808
          %v3966 = vunpack.c.0.s8 %v3965
          %v3967 = vlaneseq
          %v3968 = vshrl.u32 %v3967, 7
          %v3969 = vsub.s32 %v3966, %v3968
          %v3970 = vrot.slane %v3915, %v3969
          %v3972 = vunpack.c.l.s4 1983009808
          %v3973 = vunpack.c.0.s8 %v3972
          %v3974 = vlaneseq
          %v3975 = vshrl.u32 %v3974, 7
          %v3976 = vsub.s32 %v3973, %v3975
          %v3977 = vrot.slane %v3963, %v3976
          %v3978 = vcombine.high %v3970, %v3970
          %v3979 = vcombine.high %v3977, %v3977
          %v3980 = vcombine.high %v3916, %v3916
          %v3982 = vunpack.c.l.s4 1983009808
          %v3983 = vunpack.c.0.s8 %v3982
          %v3984 = vlaneseq
          %v3985 = vshrl.u32 %v3984, 7
          %v3986 = vsub.s32 %v3983, %v3985
          %v3987 = vrot.slane %v3916, %v3986
          %v3989 = vunpack.c.l.s4 1983009808
          %v3990 = vunpack.c.0.s8 %v3989
          %v3991 = vlaneseq
          %v3992 = vshrl.u32 %v3991, 7
          %v3993 = vsub.s32 %v3990, %v3992
          %v3994 = vrot.slane %v3980, %v3993
          %v3995 = vcombine.high %v3987, %v3987
          %v3996 = vcombine.high %v3994, %v3994
          %v3997 = vcombine.high %v3917, %v3917
          %v3999 = vunpack.c.l.s4 1983009808
          %v4000 = vunpack.c.0.s8 %v3999
          %v4001 = vlaneseq
          %v4002 = vshrl.u32 %v4001, 7
          %v4003 = vsub.s32 %v4000, %v4002
          %v4004 = vrot.slane %v3917, %v4003
          %v4006 = vunpack.c.l.s4 1983009808
          %v4007 = vunpack.c.0.s8 %v4006
          %v4008 = vlaneseq
          %v4009 = vshrl.u32 %v4008, 7
          %v4010 = vsub.s32 %v4007, %v4009
          %v4011 = vrot.slane %v3997, %v4010
          %v4012 = vcombine.high %v4004, %v4004
          %v4013 = vcombine.high %v4011, %v4011
          %v4014 = vcombine.high %v3918, %v3918
          %v4016 = vunpack.c.l.s4 1983009808
          %v4017 = vunpack.c.0.s8 %v4016
          %v4018 = vlaneseq
          %v4019 = vshrl.u32 %v4018, 7
          %v4020 = vsub.s32 %v4017, %v4019
          %v4021 = vrot.slane %v3918, %v4020
          %v4023 = vunpack.c.l.s4 1983009808
          %v4024 = vunpack.c.0.s8 %v4023
          %v4025 = vlaneseq
          %v4026 = vshrl.u32 %v4025, 7
          %v4027 = vsub.s32 %v4024, %v4026
          %v4028 = vrot.slane %v4014, %v4027
          %v4029 = vcombine.high %v4021, %v4021
          %v4030 = vcombine.high %v4028, %v4028
          %v4031 = vcombine.high %v3919, %v3919
          %v4033 = vunpack.c.l.s4 1983009808
          %v4034 = vunpack.c.0.s8 %v4033
          %v4035 = vlaneseq
          %v4036 = vshrl.u32 %v4035, 7
          %v4037 = vsub.s32 %v4034, %v4036
          %v4038 = vrot.slane %v3919, %v4037
          %v4040 = vunpack.c.l.s4 1983009808
          %v4041 = vunpack.c.0.s8 %v4040
          %v4042 = vlaneseq
          %v4043 = vshrl.u32 %v4042, 7
          %v4044 = vsub.s32 %v4041, %v4043
          %v4045 = vrot.slane %v4031, %v4044
          %v4046 = vcombine.high %v4038, %v4038
          %v4047 = vcombine.high %v4045, %v4045
          %v4048 = vcombine.high %v3920, %v3920
          %v4050 = vunpack.c.l.s4 1983009808
          %v4051 = vunpack.c.0.s8 %v4050
          %v4052 = vlaneseq
          %v4053 = vshrl.u32 %v4052, 7
          %v4054 = vsub.s32 %v4051, %v4053
          %v4055 = vrot.slane %v3920, %v4054
          %v4057 = vunpack.c.l.s4 1983009808
          %v4058 = vunpack.c.0.s8 %v4057
          %v4059 = vlaneseq
          %v4060 = vshrl.u32 %v4059, 7
          %v4061 = vsub.s32 %v4058, %v4060
          %v4062 = vrot.slane %v4048, %v4061
          %v4063 = vcombine.high %v4055, %v4055
          %v4064 = vcombine.high %v4062, %v4062
          %v4097 = vrot.slane %v3936, 7
          %v4098 = vrot.slane %v4097, 2
          %v4099 = vrot.slane %v3944, 7
          %v4100 = vrot.slane %v4099, 2
          %v4101 = vrot.slane %v3943, 7
          %v4102 = vrot.slane %v4101, 2
          %v4103 = vrot.slane %v3945, 7
          %v4104 = vrot.slane %v4103, 2
          %v4105 = vrot.slane %v3953, 7
          %v4106 = vrot.slane %v4105, 2
          %v4107 = vrot.slane %v3961, 7
          %v4108 = vrot.slane %v4107, 2
          %v4109 = vrot.slane %v3960, 7
          %v4110 = vrot.slane %v4109, 2
          %v4111 = vrot.slane %v3962, 7
          %v4112 = vrot.slane %v4111, 2
          %v4113 = vrot.slane %v3970, 7
          %v4114 = vrot.slane %v4113, 2
          %v4115 = vrot.slane %v3978, 7
          %v4116 = vrot.slane %v4115, 2
          %v4117 = vrot.slane %v3977, 7
          %v4118 = vrot.slane %v4117, 2
          %v4119 = vrot.slane %v3979, 7
          %v4120 = vrot.slane %v4119, 2
          %v4121 = vrot.slane %v3987, 7
          %v4122 = vrot.slane %v4121, 2
          %v4123 = vrot.slane %v3995, 7
          %v4124 = vrot.slane %v4123, 2
          %v4125 = vrot.slane %v3994, 7
          %v4126 = vrot.slane %v4125, 2
          %v4127 = vrot.slane %v3996, 7
          %v4128 = vrot.slane %v4127, 2
          %v4129 = vrot.slane %v4004, 7
          %v4130 = vrot.slane %v4129, 2
          %v4131 = vrot.slane %v4012, 7
          %v4132 = vrot.slane %v4131, 2
          %v4133 = vrot.slane %v4011, 7
          %v4134 = vrot.slane %v4133, 2
          %v4135 = vrot.slane %v4013, 7
          %v4136 = vrot.slane %v4135, 2
          %v4137 = vrot.slane %v4021, 7
          %v4138 = vrot.slane %v4137, 2
          %v4139 = vrot.slane %v4029, 7
          %v4140 = vrot.slane %v4139, 2
          %v4141 = vrot.slane %v4028, 7
          %v4142 = vrot.slane %v4141, 2
          %v4143 = vrot.slane %v4030, 7
          %v4144 = vrot.slane %v4143, 2
          %v4145 = vrot.slane %v4038, 7
          %v4146 = vrot.slane %v4145, 2
          %v4147 = vrot.slane %v4046, 7
          %v4148 = vrot.slane %v4147, 2
          %v4149 = vrot.slane %v4045, 7
          %v4150 = vrot.slane %v4149, 2
          %v4151 = vrot.slane %v4047, 7
          %v4152 = vrot.slane %v4151, 2
          %v4153 = vrot.slane %v4055, 7
          %v4154 = vrot.slane %v4153, 2
          %v4155 = vrot.slane %v4063, 7
          %v4156 = vrot.slane %v4155, 2
          %v4157 = vrot.slane %v4062, 7
          %v4158 = vrot.slane %v4157, 2
          %v4159 = vrot.slane %v4064, 7
          %v4160 = vrot.slane %v4159, 2
          %v4193 = vmax.f32 %v3936, %v4098
          %v4194 = vmax.f32 %v3944, %v4100
          %v4195 = vmax.f32 %v3943, %v4102
          %v4196 = vmax.f32 %v3945, %v4104
          %v4197 = vmax.f32 %v3953, %v4106
          %v4198 = vmax.f32 %v3961, %v4108
          %v4199 = vmax.f32 %v3960, %v4110
          %v4200 = vmax.f32 %v3962, %v4112
          %v4201 = vmax.f32 %v3970, %v4114
          %v4202 = vmax.f32 %v3978, %v4116
          %v4203 = vmax.f32 %v3977, %v4118
          %v4204 = vmax.f32 %v3979, %v4120
          %v4205 = vmax.f32 %v3987, %v4122
          %v4206 = vmax.f32 %v3995, %v4124
          %v4207 = vmax.f32 %v3994, %v4126
          %v4208 = vmax.f32 %v3996, %v4128
          %v4209 = vmax.f32 %v4004, %v4130
          %v4210 = vmax.f32 %v4012, %v4132
          %v4211 = vmax.f32 %v4011, %v4134
          %v4212 = vmax.f32 %v4013, %v4136
          %v4213 = vmax.f32 %v4021, %v4138
          %v4214 = vmax.f32 %v4029, %v4140
          %v4215 = vmax.f32 %v4028, %v4142
          %v4216 = vmax.f32 %v4030, %v4144
          %v4217 = vmax.f32 %v4038, %v4146
          %v4218 = vmax.f32 %v4046, %v4148
          %v4219 = vmax.f32 %v4045, %v4150
          %v4220 = vmax.f32 %v4047, %v4152
          %v4221 = vmax.f32 %v4055, %v4154
          %v4222 = vmax.f32 %v4063, %v4156
          %v4223 = vmax.f32 %v4062, %v4158
          %v4224 = vmax.f32 %v4064, %v4160
          %v4225 = vmax.f32 %v4193, %v4209
          %v4226 = vmax.f32 %v4194, %v4210
          %v4227 = vmax.f32 %v4195, %v4211
          %v4228 = vmax.f32 %v4196, %v4212
          %v4229 = vmax.f32 %v4197, %v4213
          %v4230 = vmax.f32 %v4198, %v4214
          %v4231 = vmax.f32 %v4199, %v4215
          %v4232 = vmax.f32 %v4200, %v4216
          %v4233 = vmax.f32 %v4201, %v4217
          %v4234 = vmax.f32 %v4202, %v4218
          %v4235 = vmax.f32 %v4203, %v4219
          %v4236 = vmax.f32 %v4204, %v4220
          %v4237 = vmax.f32 %v4205, %v4221
          %v4238 = vmax.f32 %v4206, %v4222
          %v4239 = vmax.f32 %v4207, %v4223
          %v4240 = vmax.f32 %v4208, %v4224
          %v4257 = vlaneseq
          %v4258 = vshrl.u32 %v4257, 7
          %v4259 = vsub.s32 0, %v4258
          %v4260 = vrot.slane %v4225, %v4259
          %v4261 = vlaneseq
          %v4262 = vshrl.u32 %v4261, 7
          %v4263 = vsub.s32 0, %v4262
          %v4264 = vrot.slane %v4226, %v4263
          %v4265 = vlaneseq
          %v4266 = vshrl.u32 %v4265, 7
          %v4267 = vsub.s32 0, %v4266
          %v4268 = vrot.slane %v4227, %v4267
          %v4269 = vlaneseq
          %v4270 = vshrl.u32 %v4269, 7
          %v4271 = vsub.s32 0, %v4270
          %v4272 = vrot.slane %v4228, %v4271
          %v4273 = vlaneseq
          %v4274 = vshrl.u32 %v4273, 7
          %v4275 = vsub.s32 0, %v4274
          %v4276 = vrot.slane %v4229, %v4275
          %v4277 = vlaneseq
          %v4278 = vshrl.u32 %v4277, 7
          %v4279 = vsub.s32 0, %v4278
          %v4280 = vrot.slane %v4230, %v4279
          %v4281 = vlaneseq
          %v4282 = vshrl.u32 %v4281, 7
          %v4283 = vsub.s32 0, %v4282
          %v4284 = vrot.slane %v4231, %v4283
          %v4285 = vlaneseq
          %v4286 = vshrl.u32 %v4285, 7
          %v4287 = vsub.s32 0, %v4286
          %v4288 = vrot.slane %v4232, %v4287
          %v4289 = vlaneseq
          %v4290 = vshrl.u32 %v4289, 7
          %v4291 = vsub.s32 0, %v4290
          %v4292 = vrot.slane %v4233, %v4291
          %v4293 = vlaneseq
          %v4294 = vshrl.u32 %v4293, 7
          %v4295 = vsub.s32 0, %v4294
          %v4296 = vrot.slane %v4234, %v4295
          %v4297 = vlaneseq
          %v4298 = vshrl.u32 %v4297, 7
          %v4299 = vsub.s32 0, %v4298
          %v4300 = vrot.slane %v4235, %v4299
          %v4301 = vlaneseq
          %v4302 = vshrl.u32 %v4301, 7
          %v4303 = vsub.s32 0, %v4302
          %v4304 = vrot.slane %v4236, %v4303
          %v4305 = vlaneseq
          %v4306 = vshrl.u32 %v4305, 7
          %v4307 = vsub.s32 0, %v4306
          %v4308 = vrot.slane %v4237, %v4307
          %v4309 = vlaneseq
          %v4310 = vshrl.u32 %v4309, 7
          %v4311 = vsub.s32 0, %v4310
          %v4312 = vrot.slane %v4238, %v4311
          %v4313 = vlaneseq
          %v4314 = vshrl.u32 %v4313, 7
          %v4315 = vsub.s32 0, %v4314
          %v4316 = vrot.slane %v4239, %v4315
          %v4317 = vlaneseq
          %v4318 = vshrl.u32 %v4317, 7
          %v4319 = vsub.s32 0, %v4318
          %v4320 = vrot.slane %v4240, %v4319
          %v4321 = vsel %vm3757, %v4264, %v4260
          %v4322 = vsel %vm3759, %v4268, %v4321
          %v4323 = vsel %vm3761, %v4272, %v4322
          %v4324 = vsel %vm3763, %v4276, %v4323
          %v4325 = vsel %vm3765, %v4280, %v4324
          %v4326 = vsel %vm3767, %v4284, %v4325
          %v4327 = vsel %vm3769, %v4288, %v4326
          %v4328 = vsel %vm3757, %v4296, %v4292
          %v4329 = vsel %vm3759, %v4300, %v4328
          %v4330 = vsel %vm3761, %v4304, %v4329
          %v4331 = vsel %vm3763, %v4308, %v4330
          %v4332 = vsel %vm3765, %v4312, %v4331
          %v4333 = vsel %vm3767, %v4316, %v4332
          %v4334 = vsel %vm3769, %v4320, %v4333
          %4337 = vst.msk [vmem:[#allocation2 + $0x1] sm:$0xff] %vm466, %v4327
          %4338 = vst.msk [vmem:[#allocation2 + $0x9] sm:$0xff] %vm466, %v4334
        $region44: #{tpu_custom_call.1} parent=39 // pred_fallthru
          _
        %p4339 = scmp.lt.s32.totalorder %s30, 1
        // Predicated region
        $region45: #{tpu_custom_call.1} parent=39 // pred_check
          %p4340 = pneg %p4339
        $region46: #{tpu_custom_call.1} parent=39 // pred_check_branch
          %4342 = sbr.rel (%p4340) target = $region48
        $region47: #{tpu_custom_call.1} parent=39 // pred_region
          %v4343 = vld [vmem:[%s458] sm:$0xff]
          %v4344 = vld [vmem:[%s458 + $0x8] sm:$0xff]
          %v4345 = vld [vmem:[%s458 + $0x10] sm:$0xff]
          %v4346 = vld [vmem:[%s458 + $0x18] sm:$0xff]
          %v4347 = vld [vmem:[%s458 + $0x20] sm:$0xff]
          %v4348 = vld [vmem:[%s458 + $0x28] sm:$0xff]
          %v4349 = vld [vmem:[%s458 + $0x30] sm:$0xff]
          %v4350 = vld [vmem:[%s458 + $0x38] sm:$0xff]
          %v4359 = vcombine.high %v4343, %v4343
          %v4361 = vunpack.c.l.s4 1983009808
          %v4362 = vunpack.c.0.s8 %v4361
          %v4363 = vlaneseq
          %v4364 = vshrl.u32 %v4363, 7
          %v4365 = vsub.s32 %v4362, %v4364
          %v4366 = vrot.slane %v4343, %v4365
          %v4368 = vunpack.c.l.s4 1983009808
          %v4369 = vunpack.c.0.s8 %v4368
          %v4370 = vlaneseq
          %v4371 = vshrl.u32 %v4370, 7
          %v4372 = vsub.s32 %v4369, %v4371
          %v4373 = vrot.slane %v4359, %v4372
          %v4374 = vcombine.high %v4366, %v4366
          %v4375 = vcombine.high %v4373, %v4373
          %v4376 = vcombine.high %v4344, %v4344
          %v4378 = vunpack.c.l.s4 1983009808
          %v4379 = vunpack.c.0.s8 %v4378
          %v4380 = vlaneseq
          %v4381 = vshrl.u32 %v4380, 7
          %v4382 = vsub.s32 %v4379, %v4381
          %v4383 = vrot.slane %v4344, %v4382
          %v4385 = vunpack.c.l.s4 1983009808
          %v4386 = vunpack.c.0.s8 %v4385
          %v4387 = vlaneseq
          %v4388 = vshrl.u32 %v4387, 7
          %v4389 = vsub.s32 %v4386, %v4388
          %v4390 = vrot.slane %v4376, %v4389
          %v4391 = vcombine.high %v4383, %v4383
          %v4392 = vcombine.high %v4390, %v4390
          %v4393 = vcombine.high %v4345, %v4345
          %v4395 = vunpack.c.l.s4 1983009808
          %v4396 = vunpack.c.0.s8 %v4395
          %v4397 = vlaneseq
          %v4398 = vshrl.u32 %v4397, 7
          %v4399 = vsub.s32 %v4396, %v4398
          %v4400 = vrot.slane %v4345, %v4399
          %v4402 = vunpack.c.l.s4 1983009808
          %v4403 = vunpack.c.0.s8 %v4402
          %v4404 = vlaneseq
          %v4405 = vshrl.u32 %v4404, 7
          %v4406 = vsub.s32 %v4403, %v4405
          %v4407 = vrot.slane %v4393, %v4406
          %v4408 = vcombine.high %v4400, %v4400
          %v4409 = vcombine.high %v4407, %v4407
          %v4410 = vcombine.high %v4346, %v4346
          %v4412 = vunpack.c.l.s4 1983009808
          %v4413 = vunpack.c.0.s8 %v4412
          %v4414 = vlaneseq
          %v4415 = vshrl.u32 %v4414, 7
          %v4416 = vsub.s32 %v4413, %v4415
          %v4417 = vrot.slane %v4346, %v4416
          %v4419 = vunpack.c.l.s4 1983009808
          %v4420 = vunpack.c.0.s8 %v4419
          %v4421 = vlaneseq
          %v4422 = vshrl.u32 %v4421, 7
          %v4423 = vsub.s32 %v4420, %v4422
          %v4424 = vrot.slane %v4410, %v4423
          %v4425 = vcombine.high %v4417, %v4417
          %v4426 = vcombine.high %v4424, %v4424
          %v4427 = vcombine.high %v4347, %v4347
          %v4429 = vunpack.c.l.s4 1983009808
          %v4430 = vunpack.c.0.s8 %v4429
          %v4431 = vlaneseq
          %v4432 = vshrl.u32 %v4431, 7
          %v4433 = vsub.s32 %v4430, %v4432
          %v4434 = vrot.slane %v4347, %v4433
          %v4436 = vunpack.c.l.s4 1983009808
          %v4437 = vunpack.c.0.s8 %v4436
          %v4438 = vlaneseq
          %v4439 = vshrl.u32 %v4438, 7
          %v4440 = vsub.s32 %v4437, %v4439
          %v4441 = vrot.slane %v4427, %v4440
          %v4442 = vcombine.high %v4434, %v4434
          %v4443 = vcombine.high %v4441, %v4441
          %v4444 = vcombine.high %v4348, %v4348
          %v4446 = vunpack.c.l.s4 1983009808
          %v4447 = vunpack.c.0.s8 %v4446
          %v4448 = vlaneseq
          %v4449 = vshrl.u32 %v4448, 7
          %v4450 = vsub.s32 %v4447, %v4449
          %v4451 = vrot.slane %v4348, %v4450
          %v4453 = vunpack.c.l.s4 1983009808
          %v4454 = vunpack.c.0.s8 %v4453
          %v4455 = vlaneseq
          %v4456 = vshrl.u32 %v4455, 7
          %v4457 = vsub.s32 %v4454, %v4456
          %v4458 = vrot.slane %v4444, %v4457
          %v4459 = vcombine.high %v4451, %v4451
          %v4460 = vcombine.high %v4458, %v4458
          %v4461 = vcombine.high %v4349, %v4349
          %v4463 = vunpack.c.l.s4 1983009808
          %v4464 = vunpack.c.0.s8 %v4463
          %v4465 = vlaneseq
          %v4466 = vshrl.u32 %v4465, 7
          %v4467 = vsub.s32 %v4464, %v4466
          %v4468 = vrot.slane %v4349, %v4467
          %v4470 = vunpack.c.l.s4 1983009808
          %v4471 = vunpack.c.0.s8 %v4470
          %v4472 = vlaneseq
          %v4473 = vshrl.u32 %v4472, 7
          %v4474 = vsub.s32 %v4471, %v4473
          %v4475 = vrot.slane %v4461, %v4474
          %v4476 = vcombine.high %v4468, %v4468
          %v4477 = vcombine.high %v4475, %v4475
          %v4478 = vcombine.high %v4350, %v4350
          %v4480 = vunpack.c.l.s4 1983009808
          %v4481 = vunpack.c.0.s8 %v4480
          %v4482 = vlaneseq
          %v4483 = vshrl.u32 %v4482, 7
          %v4484 = vsub.s32 %v4481, %v4483
          %v4485 = vrot.slane %v4350, %v4484
          %v4487 = vunpack.c.l.s4 1983009808
          %v4488 = vunpack.c.0.s8 %v4487
          %v4489 = vlaneseq
          %v4490 = vshrl.u32 %v4489, 7
          %v4491 = vsub.s32 %v4488, %v4490
          %v4492 = vrot.slane %v4478, %v4491
          %v4493 = vcombine.high %v4485, %v4485
          %v4494 = vcombine.high %v4492, %v4492
          %v4527 = vrot.slane %v4366, 7
          %v4528 = vrot.slane %v4527, 2
          %v4529 = vrot.slane %v4374, 7
          %v4530 = vrot.slane %v4529, 2
          %v4531 = vrot.slane %v4373, 7
          %v4532 = vrot.slane %v4531, 2
          %v4533 = vrot.slane %v4375, 7
          %v4534 = vrot.slane %v4533, 2
          %v4535 = vrot.slane %v4383, 7
          %v4536 = vrot.slane %v4535, 2
          %v4537 = vrot.slane %v4391, 7
          %v4538 = vrot.slane %v4537, 2
          %v4539 = vrot.slane %v4390, 7
          %v4540 = vrot.slane %v4539, 2
          %v4541 = vrot.slane %v4392, 7
          %v4542 = vrot.slane %v4541, 2
          %v4543 = vrot.slane %v4400, 7
          %v4544 = vrot.slane %v4543, 2
          %v4545 = vrot.slane %v4408, 7
          %v4546 = vrot.slane %v4545, 2
          %v4547 = vrot.slane %v4407, 7
          %v4548 = vrot.slane %v4547, 2
          %v4549 = vrot.slane %v4409, 7
          %v4550 = vrot.slane %v4549, 2
          %v4551 = vrot.slane %v4417, 7
          %v4552 = vrot.slane %v4551, 2
          %v4553 = vrot.slane %v4425, 7
          %v4554 = vrot.slane %v4553, 2
          %v4555 = vrot.slane %v4424, 7
          %v4556 = vrot.slane %v4555, 2
          %v4557 = vrot.slane %v4426, 7
          %v4558 = vrot.slane %v4557, 2
          %v4559 = vrot.slane %v4434, 7
          %v4560 = vrot.slane %v4559, 2
          %v4561 = vrot.slane %v4442, 7
          %v4562 = vrot.slane %v4561, 2
          %v4563 = vrot.slane %v4441, 7
          %v4564 = vrot.slane %v4563, 2
          %v4565 = vrot.slane %v4443, 7
          %v4566 = vrot.slane %v4565, 2
          %v4567 = vrot.slane %v4451, 7
          %v4568 = vrot.slane %v4567, 2
          %v4569 = vrot.slane %v4459, 7
          %v4570 = vrot.slane %v4569, 2
          %v4571 = vrot.slane %v4458, 7
          %v4572 = vrot.slane %v4571, 2
          %v4573 = vrot.slane %v4460, 7
          %v4574 = vrot.slane %v4573, 2
          %v4575 = vrot.slane %v4468, 7
          %v4576 = vrot.slane %v4575, 2
          %v4577 = vrot.slane %v4476, 7
          %v4578 = vrot.slane %v4577, 2
          %v4579 = vrot.slane %v4475, 7
          %v4580 = vrot.slane %v4579, 2
          %v4581 = vrot.slane %v4477, 7
          %v4582 = vrot.slane %v4581, 2
          %v4583 = vrot.slane %v4485, 7
          %v4584 = vrot.slane %v4583, 2
          %v4585 = vrot.slane %v4493, 7
          %v4586 = vrot.slane %v4585, 2
          %v4587 = vrot.slane %v4492, 7
          %v4588 = vrot.slane %v4587, 2
          %v4589 = vrot.slane %v4494, 7
          %v4590 = vrot.slane %v4589, 2
          %v4623 = vmax.f32 %v4366, %v4528
          %v4624 = vmax.f32 %v4374, %v4530
          %v4625 = vmax.f32 %v4373, %v4532
          %v4626 = vmax.f32 %v4375, %v4534
          %v4627 = vmax.f32 %v4383, %v4536
          %v4628 = vmax.f32 %v4391, %v4538
          %v4629 = vmax.f32 %v4390, %v4540
          %v4630 = vmax.f32 %v4392, %v4542
          %v4631 = vmax.f32 %v4400, %v4544
          %v4632 = vmax.f32 %v4408, %v4546
          %v4633 = vmax.f32 %v4407, %v4548
          %v4634 = vmax.f32 %v4409, %v4550
          %v4635 = vmax.f32 %v4417, %v4552
          %v4636 = vmax.f32 %v4425, %v4554
          %v4637 = vmax.f32 %v4424, %v4556
          %v4638 = vmax.f32 %v4426, %v4558
          %v4639 = vmax.f32 %v4434, %v4560
          %v4640 = vmax.f32 %v4442, %v4562
          %v4641 = vmax.f32 %v4441, %v4564
          %v4642 = vmax.f32 %v4443, %v4566
          %v4643 = vmax.f32 %v4451, %v4568
          %v4644 = vmax.f32 %v4459, %v4570
          %v4645 = vmax.f32 %v4458, %v4572
          %v4646 = vmax.f32 %v4460, %v4574
          %v4647 = vmax.f32 %v4468, %v4576
          %v4648 = vmax.f32 %v4476, %v4578
          %v4649 = vmax.f32 %v4475, %v4580
          %v4650 = vmax.f32 %v4477, %v4582
          %v4651 = vmax.f32 %v4485, %v4584
          %v4652 = vmax.f32 %v4493, %v4586
          %v4653 = vmax.f32 %v4492, %v4588
          %v4654 = vmax.f32 %v4494, %v4590
          %v4655 = vmax.f32 %v4623, %v4639
          %v4656 = vmax.f32 %v4624, %v4640
          %v4657 = vmax.f32 %v4625, %v4641
          %v4658 = vmax.f32 %v4626, %v4642
          %v4659 = vmax.f32 %v4627, %v4643
          %v4660 = vmax.f32 %v4628, %v4644
          %v4661 = vmax.f32 %v4629, %v4645
          %v4662 = vmax.f32 %v4630, %v4646
          %v4663 = vmax.f32 %v4631, %v4647
          %v4664 = vmax.f32 %v4632, %v4648
          %v4665 = vmax.f32 %v4633, %v4649
          %v4666 = vmax.f32 %v4634, %v4650
          %v4667 = vmax.f32 %v4635, %v4651
          %v4668 = vmax.f32 %v4636, %v4652
          %v4669 = vmax.f32 %v4637, %v4653
          %v4670 = vmax.f32 %v4638, %v4654
          %v4687 = vlaneseq
          %v4688 = vshrl.u32 %v4687, 7
          %v4689 = vsub.s32 0, %v4688
          %v4690 = vrot.slane %v4655, %v4689
          %v4691 = vlaneseq
          %v4692 = vshrl.u32 %v4691, 7
          %v4693 = vsub.s32 0, %v4692
          %v4694 = vrot.slane %v4656, %v4693
          %v4695 = vlaneseq
          %v4696 = vshrl.u32 %v4695, 7
          %v4697 = vsub.s32 0, %v4696
          %v4698 = vrot.slane %v4657, %v4697
          %v4699 = vlaneseq
          %v4700 = vshrl.u32 %v4699, 7
          %v4701 = vsub.s32 0, %v4700
          %v4702 = vrot.slane %v4658, %v4701
          %v4703 = vlaneseq
          %v4704 = vshrl.u32 %v4703, 7
          %v4705 = vsub.s32 0, %v4704
          %v4706 = vrot.slane %v4659, %v4705
          %v4707 = vlaneseq
          %v4708 = vshrl.u32 %v4707, 7
          %v4709 = vsub.s32 0, %v4708
          %v4710 = vrot.slane %v4660, %v4709
          %v4711 = vlaneseq
          %v4712 = vshrl.u32 %v4711, 7
          %v4713 = vsub.s32 0, %v4712
          %v4714 = vrot.slane %v4661, %v4713
          %v4715 = vlaneseq
          %v4716 = vshrl.u32 %v4715, 7
          %v4717 = vsub.s32 0, %v4716
          %v4718 = vrot.slane %v4662, %v4717
          %v4719 = vlaneseq
          %v4720 = vshrl.u32 %v4719, 7
          %v4721 = vsub.s32 0, %v4720
          %v4722 = vrot.slane %v4663, %v4721
          %v4723 = vlaneseq
          %v4724 = vshrl.u32 %v4723, 7
          %v4725 = vsub.s32 0, %v4724
          %v4726 = vrot.slane %v4664, %v4725
          %v4727 = vlaneseq
          %v4728 = vshrl.u32 %v4727, 7
          %v4729 = vsub.s32 0, %v4728
          %v4730 = vrot.slane %v4665, %v4729
          %v4731 = vlaneseq
          %v4732 = vshrl.u32 %v4731, 7
          %v4733 = vsub.s32 0, %v4732
          %v4734 = vrot.slane %v4666, %v4733
          %v4735 = vlaneseq
          %v4736 = vshrl.u32 %v4735, 7
          %v4737 = vsub.s32 0, %v4736
          %v4738 = vrot.slane %v4667, %v4737
          %v4739 = vlaneseq
          %v4740 = vshrl.u32 %v4739, 7
          %v4741 = vsub.s32 0, %v4740
          %v4742 = vrot.slane %v4668, %v4741
          %v4743 = vlaneseq
          %v4744 = vshrl.u32 %v4743, 7
          %v4745 = vsub.s32 0, %v4744
          %v4746 = vrot.slane %v4669, %v4745
          %v4747 = vlaneseq
          %v4748 = vshrl.u32 %v4747, 7
          %v4749 = vsub.s32 0, %v4748
          %v4750 = vrot.slane %v4670, %v4749
          %v4751 = vsel %vm3757, %v4694, %v4690
          %v4752 = vsel %vm3759, %v4698, %v4751
          %v4753 = vsel %vm3761, %v4702, %v4752
          %v4754 = vsel %vm3763, %v4706, %v4753
          %v4755 = vsel %vm3765, %v4710, %v4754
          %v4756 = vsel %vm3767, %v4714, %v4755
          %v4757 = vsel %vm3769, %v4718, %v4756
          %v4758 = vsel %vm3757, %v4726, %v4722
          %v4759 = vsel %vm3759, %v4730, %v4758
          %v4760 = vsel %vm3761, %v4734, %v4759
          %v4761 = vsel %vm3763, %v4738, %v4760
          %v4762 = vsel %vm3765, %v4742, %v4761
          %v4763 = vsel %vm3767, %v4746, %v4762
          %v4764 = vsel %vm3769, %v4750, %v4763
          %4767 = vst.msk [vmem:[%s471 + $0x1] sm:$0xff] %vm466, %v4757
          %4768 = vst.msk [vmem:[%s471 + $0x9] sm:$0xff] %vm466, %v4764
        $region48: #{tpu_custom_call.1} parent=39 // pred_fallthru
          _
        %v4769 = vld [vmem:[#allocation2] sm:$0xff]
        %v4770 = vld [vmem:[#allocation2 + $0x8] sm:$0xff]
        %v4771 = vld [vmem:[#allocation2 + $0x18] sm:$0xff]
        %v4772 = vld [vmem:[#allocation2 + $0x20] sm:$0xff]
        %v4773 = vld [vmem:[#allocation2 + $0x30] sm:$0xff]
        %v4774 = vld [vmem:[#allocation2 + $0x38] sm:$0xff]
        %v4775 = vld [vmem:[#allocation2 + $0x48] sm:$0xff]
        %v4776 = vld [vmem:[#allocation2 + $0x50] sm:$0xff]
        %v4777 = vld [vmem:[#allocation2 + $0x60] sm:$0xff]
        %v4778 = vld [vmem:[#allocation2 + $0x68] sm:$0xff]
        %v4779 = vld [vmem:[#allocation2 + $0x78] sm:$0xff]
        %v4780 = vld [vmem:[#allocation2 + $0x80] sm:$0xff]
        %v4781 = vld [vmem:[#allocation2 + $0x90] sm:$0xff]
        %v4782 = vld [vmem:[#allocation2 + $0x98] sm:$0xff]
        %v4783 = vld [vmem:[#allocation2 + $0xa8] sm:$0xff]
        %v4784 = vld [vmem:[#allocation2 + $0xb0] sm:$0xff]
        %v4785 = vpack.c.bf16 %v4770, %v4769
        %v4786 = vpack.c.bf16 %v4772, %v4771
        %v4787 = vpack.c.bf16 %v4774, %v4773
        %v4788 = vpack.c.bf16 %v4776, %v4775
        %v4789 = vpack.c.bf16 %v4778, %v4777
        %v4790 = vpack.c.bf16 %v4780, %v4779
        %v4791 = vpack.c.bf16 %v4782, %v4781
        %v4792 = vpack.c.bf16 %v4784, %v4783
        %v4793 = vld [vmem:[%s3] sm:$0x3]
        %v4794 = vld [vmem:[#allocation2 + $0x1] sm:$0xff]
        %v4795 = vld [vmem:[#allocation2 + $0x9] sm:$0xff]
        %v4796 = vld [vmem:[#allocation2 + $0x19] sm:$0xff]
        %v4797 = vld [vmem:[#allocation2 + $0x21] sm:$0xff]
        %v4798 = vld [vmem:[#allocation2 + $0x31] sm:$0xff]
        %v4799 = vld [vmem:[#allocation2 + $0x39] sm:$0xff]
        %v4800 = vld [vmem:[#allocation2 + $0x49] sm:$0xff]
        %v4801 = vld [vmem:[#allocation2 + $0x51] sm:$0xff]
        %v4802 = vld [vmem:[#allocation2 + $0x61] sm:$0xff]
        %v4803 = vld [vmem:[#allocation2 + $0x69] sm:$0xff]
        %v4804 = vld [vmem:[#allocation2 + $0x79] sm:$0xff]
        %v4805 = vld [vmem:[#allocation2 + $0x81] sm:$0xff]
        %v4806 = vld [vmem:[#allocation2 + $0x91] sm:$0xff]
        %v4807 = vld [vmem:[#allocation2 + $0x99] sm:$0xff]
        %v4808 = vld [vmem:[#allocation2 + $0xa9] sm:$0xff]
        %v4809 = vld [vmem:[#allocation2 + $0xb1] sm:$0xff]
        %v4810 = vpack.c.bf16 %v4795, %v4794
        %v4811 = vpack.c.bf16 %v4797, %v4796
        %v4812 = vpack.c.bf16 %v4799, %v4798
        %v4813 = vpack.c.bf16 %v4801, %v4800
        %v4814 = vpack.c.bf16 %v4803, %v4802
        %v4815 = vpack.c.bf16 %v4805, %v4804
        %v4816 = vpack.c.bf16 %v4807, %v4806
        %v4817 = vpack.c.bf16 %v4809, %v4808
        %s4818 = scalar_lea.vmem %s3, 2
        %v4819 = vld [vmem:[%s4818] sm:$0x3]
        %v4821 = vsel %vm466, %v4810, 0
        %v4824 = vsel %vm466, %v4811, 0
        %v4827 = vsel %vm466, %v4812, 0
        %v4830 = vsel %vm466, %v4813, 0
        %v4833 = vsel %vm466, %v4814, 0
        %v4836 = vsel %vm466, %v4815, 0
        %v4839 = vsel %vm466, %v4816, 0
        %v4842 = vsel %vm466, %v4817, 0
        %vm4844 = vcmask 1041408
        %v4846 = vsel %vm4844, %v4819, 0
        %4848 = vmatprep.subr.bf16.mxu0 0
        %4849 = vmatpush1.bf16.msra.mxu0 0
        %4850 = vmatprep.subr.bf16.mxu0 0
        %4851 = vmatpush1.bf16.msra.mxu0 0
        %4852 = vmatprep.subr.bf16.mxu0 0
        %4853 = vmatpush1.bf16.msra.mxu0 0
        %4854 = vmatprep.subr.bf16.mxu0 0
        %4855 = vmatpush1.bf16.msra.mxu0 0
        %4856 = vmatprep.subr.bf16.mxu0 0
        %4857 = vmatpush1.bf16.msra.mxu0 0
        %4858 = vmatprep.subr.bf16.mxu0 0
        %4859 = vmatpush1.bf16.msra.mxu0 0
        %4860 = vmatprep.subr.bf16.mxu0 0
        %4861 = vmatpush1.bf16.msra.mxu0 0
        %4862 = vmatprep.subr.bf16.mxu0 0
        %4863 = vmatpush1.bf16.msra.mxu0 %v4846
        %4864 = vmatprep.subr.bf16.mxu0 0
        %4865 = vmatpush2.bf16.msra.mxu0 0
        %4866 = vmatprep.subr.bf16.mxu0 0
        %4867 = vmatpush2.bf16.msra.mxu0 0
        %4868 = vmatprep.subr.bf16.mxu0 0
        %4869 = vmatpush2.bf16.msra.mxu0 0
        %4870 = vmatprep.subr.bf16.mxu0 0
        %4871 = vmatpush2.bf16.msra.mxu0 0
        %4872 = vmatprep.subr.bf16.mxu0 0
        %4873 = vmatpush2.bf16.msra.mxu0 0
        %4874 = vmatprep.subr.bf16.mxu0 0
        %4875 = vmatpush2.bf16.msra.mxu0 0
        %4876 = vmatprep.subr.bf16.mxu0 0
        %4877 = vmatpush2.bf16.msra.mxu0 0
        %4878 = vmatprep.subr.bf16.mxu0 0
        %4879 = vmatpush2.bf16.msra.mxu0 0
        %4880 = vmatprep.mubr.bf16.mxu0 0
        %4881 = vmatmul.mubr.bf16.gmra.mxu0 %v4821
        %v4882 = vpop.f32.mrf.mxu0
        %v4883 = vadd.f32 0.0, %v4882
        %v4884 = vpop.f32.mrf.mxu0
        %v4885 = vpop.f32.mrf.mxu0
        %v4886 = vadd.f32 0.0, %v4885
        %v4887 = vpop.f32.mrf.mxu0
        %4888 = vmatprep.mubr.bf16.mxu0 0
        %4889 = vmatmul.mubr.bf16.gmra.mxu0 %v4824
        %v4890 = vpop.f32.mrf.mxu0
        %v4891 = vadd.f32 0.0, %v4890
        %v4892 = vpop.f32.mrf.mxu0
        %v4893 = vpop.f32.mrf.mxu0
        %v4894 = vadd.f32 0.0, %v4893
        %v4895 = vpop.f32.mrf.mxu0
        %4896 = vmatprep.mubr.bf16.mxu0 0
        %4897 = vmatmul.mubr.bf16.gmra.mxu0 %v4827
        %v4898 = vpop.f32.mrf.mxu0
        %v4899 = vadd.f32 0.0, %v4898
        %v4900 = vpop.f32.mrf.mxu0
        %v4901 = vpop.f32.mrf.mxu0
        %v4902 = vadd.f32 0.0, %v4901
        %v4903 = vpop.f32.mrf.mxu0
        %4904 = vmatprep.mubr.bf16.mxu0 0
        %4905 = vmatmul.mubr.bf16.gmra.mxu0 %v4830
        %v4906 = vpop.f32.mrf.mxu0
        %v4907 = vadd.f32 0.0, %v4906
        %v4908 = vpop.f32.mrf.mxu0
        %v4909 = vpop.f32.mrf.mxu0
        %v4910 = vadd.f32 0.0, %v4909
        %v4911 = vpop.f32.mrf.mxu0
        %4912 = vmatprep.mubr.bf16.mxu0 0
        %4913 = vmatmul.mubr.bf16.gmra.mxu0 %v4833
        %v4914 = vpop.f32.mrf.mxu0
        %v4915 = vadd.f32 0.0, %v4914
        %v4916 = vpop.f32.mrf.mxu0
        %v4917 = vpop.f32.mrf.mxu0
        %v4918 = vadd.f32 0.0, %v4917
        %v4919 = vpop.f32.mrf.mxu0
        %4920 = vmatprep.mubr.bf16.mxu0 0
        %4921 = vmatmul.mubr.bf16.gmra.mxu0 %v4836
        %v4922 = vpop.f32.mrf.mxu0
        %v4923 = vadd.f32 0.0, %v4922
        %v4924 = vpop.f32.mrf.mxu0
        %v4925 = vpop.f32.mrf.mxu0
        %v4926 = vadd.f32 0.0, %v4925
        %v4927 = vpop.f32.mrf.mxu0
        %4928 = vmatprep.mubr.bf16.mxu0 0
        %4929 = vmatmul.mubr.bf16.gmra.mxu0 %v4839
        %v4930 = vpop.f32.mrf.mxu0
        %v4931 = vadd.f32 0.0, %v4930
        %v4932 = vpop.f32.mrf.mxu0
        %v4933 = vpop.f32.mrf.mxu0
        %v4934 = vadd.f32 0.0, %v4933
        %v4935 = vpop.f32.mrf.mxu0
        %4936 = vmatprep.mubr.bf16.mxu0 0
        %4937 = vmatmul.mubr.bf16.gmra.mxu0 %v4842
        %v4938 = vpop.f32.mrf.mxu0
        %v4939 = vadd.f32 0.0, %v4938
        %v4940 = vpop.f32.mrf.mxu0
        %v4941 = vpop.f32.mrf.mxu0
        %v4942 = vadd.f32 0.0, %v4941
        %v4943 = vpop.f32.mrf.mxu0
        %4944 = vdwg.mxu0
        %v4946 = vsel %vm466, %v4785, 0
        %v4949 = vsel %vm466, %v4786, 0
        %v4952 = vsel %vm466, %v4787, 0
        %v4955 = vsel %vm466, %v4788, 0
        %v4958 = vsel %vm466, %v4789, 0
        %v4961 = vsel %vm466, %v4790, 0
        %v4964 = vsel %vm466, %v4791, 0
        %v4967 = vsel %vm466, %v4792, 0
        %v4970 = vsel %vm4844, %v4793, 0
        %4972 = vmatprep.subr.bf16.mxu0 0
        %4973 = vmatpush1.bf16.msra.mxu0 0
        %4974 = vmatprep.subr.bf16.mxu0 0
        %4975 = vmatpush1.bf16.msra.mxu0 0
        %4976 = vmatprep.subr.bf16.mxu0 0
        %4977 = vmatpush1.bf16.msra.mxu0 0
        %4978 = vmatprep.subr.bf16.mxu0 0
        %4979 = vmatpush1.bf16.msra.mxu0 0
        %4980 = vmatprep.subr.bf16.mxu0 0
        %4981 = vmatpush1.bf16.msra.mxu0 0
        %4982 = vmatprep.subr.bf16.mxu0 0
        %4983 = vmatpush1.bf16.msra.mxu0 0
        %4984 = vmatprep.subr.bf16.mxu0 0
        %4985 = vmatpush1.bf16.msra.mxu0 0
        %4986 = vmatprep.subr.bf16.mxu0 0
        %4987 = vmatpush1.bf16.msra.mxu0 %v4970
        %4988 = vmatprep.subr.bf16.mxu0 0
        %4989 = vmatpush2.bf16.msra.mxu0 0
        %4990 = vmatprep.subr.bf16.mxu0 0
        %4991 = vmatpush2.bf16.msra.mxu0 0
        %4992 = vmatprep.subr.bf16.mxu0 0
        %4993 = vmatpush2.bf16.msra.mxu0 0
        %4994 = vmatprep.subr.bf16.mxu0 0
        %4995 = vmatpush2.bf16.msra.mxu0 0
        %4996 = vmatprep.subr.bf16.mxu0 0
        %4997 = vmatpush2.bf16.msra.mxu0 0
        %4998 = vmatprep.subr.bf16.mxu0 0
        %4999 = vmatpush2.bf16.msra.mxu0 0
        %5000 = vmatprep.subr.bf16.mxu0 0
        %5001 = vmatpush2.bf16.msra.mxu0 0
        %5002 = vmatprep.subr.bf16.mxu0 0
        %5003 = vmatpush2.bf16.msra.mxu0 0
        %5004 = vmatprep.mubr.bf16.mxu0 0
        %5005 = vmatmul.mubr.bf16.gmra.mxu0 %v4946
        %v5006 = vpop.f32.mrf.mxu0
        %v5007 = vadd.f32 %v4883, %v5006
        %v5008 = vpop.f32.mrf.mxu0
        %v5009 = vpop.f32.mrf.mxu0
        %v5010 = vadd.f32 %v4886, %v5009
        %v5011 = vpop.f32.mrf.mxu0
        %5012 = vmatprep.mubr.bf16.mxu0 0
        %5013 = vmatmul.mubr.bf16.gmra.mxu0 %v4949
        %v5014 = vpop.f32.mrf.mxu0
        %v5015 = vadd.f32 %v4891, %v5014
        %v5016 = vpop.f32.mrf.mxu0
        %v5017 = vpop.f32.mrf.mxu0
        %v5018 = vadd.f32 %v4894, %v5017
        %v5019 = vpop.f32.mrf.mxu0
        %5020 = vmatprep.mubr.bf16.mxu0 0
        %5021 = vmatmul.mubr.bf16.gmra.mxu0 %v4952
        %v5022 = vpop.f32.mrf.mxu0
        %v5023 = vadd.f32 %v4899, %v5022
        %v5024 = vpop.f32.mrf.mxu0
        %v5025 = vpop.f32.mrf.mxu0
        %v5026 = vadd.f32 %v4902, %v5025
        %v5027 = vpop.f32.mrf.mxu0
        %5028 = vmatprep.mubr.bf16.mxu0 0
        %5029 = vmatmul.mubr.bf16.gmra.mxu0 %v4955
        %v5030 = vpop.f32.mrf.mxu0
        %v5031 = vadd.f32 %v4907, %v5030
        %v5032 = vpop.f32.mrf.mxu0
        %v5033 = vpop.f32.mrf.mxu0
        %v5034 = vadd.f32 %v4910, %v5033
        %v5035 = vpop.f32.mrf.mxu0
        %5036 = vmatprep.mubr.bf16.mxu0 0
        %5037 = vmatmul.mubr.bf16.gmra.mxu0 %v4958
        %v5038 = vpop.f32.mrf.mxu0
        %v5039 = vadd.f32 %v4915, %v5038
        %v5040 = vpop.f32.mrf.mxu0
        %v5041 = vpop.f32.mrf.mxu0
        %v5042 = vadd.f32 %v4918, %v5041
        %v5043 = vpop.f32.mrf.mxu0
        %5044 = vmatprep.mubr.bf16.mxu0 0
        %5045 = vmatmul.mubr.bf16.gmra.mxu0 %v4961
        %v5046 = vpop.f32.mrf.mxu0
        %v5047 = vadd.f32 %v4923, %v5046
        %v5048 = vpop.f32.mrf.mxu0
        %v5049 = vpop.f32.mrf.mxu0
        %v5050 = vadd.f32 %v4926, %v5049
        %v5051 = vpop.f32.mrf.mxu0
        %5052 = vmatprep.mubr.bf16.mxu0 0
        %5053 = vmatmul.mubr.bf16.gmra.mxu0 %v4964
        %v5054 = vpop.f32.mrf.mxu0
        %v5055 = vadd.f32 %v4931, %v5054
        %v5056 = vpop.f32.mrf.mxu0
        %v5057 = vpop.f32.mrf.mxu0
        %v5058 = vadd.f32 %v4934, %v5057
        %v5059 = vpop.f32.mrf.mxu0
        %5060 = vmatprep.mubr.bf16.mxu0 0
        %5061 = vmatmul.mubr.bf16.gmra.mxu0 %v4967
        %v5062 = vpop.f32.mrf.mxu0
        %v5063 = vadd.f32 %v4939, %v5062
        %v5064 = vpop.f32.mrf.mxu0
        %v5065 = vpop.f32.mrf.mxu0
        %v5066 = vadd.f32 %v4942, %v5065
        %v5067 = vpop.f32.mrf.mxu0
        %5068 = vdwg.mxu0
        %v5069 = vld [vmem:[#allocation2 + $0x2] sm:$0xff]
        %v5070 = vld [vmem:[#allocation2 + $0xa] sm:$0xff]
        %v5071 = vld [vmem:[#allocation2 + $0x1a] sm:$0xff]
        %v5072 = vld [vmem:[#allocation2 + $0x22] sm:$0xff]
        %v5073 = vld [vmem:[#allocation2 + $0x32] sm:$0xff]
        %v5074 = vld [vmem:[#allocation2 + $0x3a] sm:$0xff]
        %v5075 = vld [vmem:[#allocation2 + $0x4a] sm:$0xff]
        %v5076 = vld [vmem:[#allocation2 + $0x52] sm:$0xff]
        %v5077 = vld [vmem:[#allocation2 + $0x62] sm:$0xff]
        %v5078 = vld [vmem:[#allocation2 + $0x6a] sm:$0xff]
        %v5079 = vld [vmem:[#allocation2 + $0x7a] sm:$0xff]
        %v5080 = vld [vmem:[#allocation2 + $0x82] sm:$0xff]
        %v5081 = vld [vmem:[#allocation2 + $0x92] sm:$0xff]
        %v5082 = vld [vmem:[#allocation2 + $0x9a] sm:$0xff]
        %v5083 = vld [vmem:[#allocation2 + $0xaa] sm:$0xff]
        %v5084 = vld [vmem:[#allocation2 + $0xb2] sm:$0xff]
        %v5085 = vpack.c.bf16 %v5070, %v5069
        %v5086 = vpack.c.bf16 %v5072, %v5071
        %v5087 = vpack.c.bf16 %v5074, %v5073
        %v5088 = vpack.c.bf16 %v5076, %v5075
        %v5089 = vpack.c.bf16 %v5078, %v5077
        %v5090 = vpack.c.bf16 %v5080, %v5079
        %v5091 = vpack.c.bf16 %v5082, %v5081
        %v5092 = vpack.c.bf16 %v5084, %v5083
        %s5093 = scalar_lea.vmem %s3, 4
        %v5094 = vld [vmem:[%s5093] sm:$0x3]
        %v5096 = vsel %vm466, %v5085, 0
        %v5099 = vsel %vm466, %v5086, 0
        %v5102 = vsel %vm466, %v5087, 0
        %v5105 = vsel %vm466, %v5088, 0
        %v5108 = vsel %vm466, %v5089, 0
        %v5111 = vsel %vm466, %v5090, 0
        %v5114 = vsel %vm466, %v5091, 0
        %v5117 = vsel %vm466, %v5092, 0
        %v5120 = vsel %vm4844, %v5094, 0
        %5122 = vmatprep.subr.bf16.mxu0 0
        %5123 = vmatpush1.bf16.msra.mxu0 0
        %5124 = vmatprep.subr.bf16.mxu0 0
        %5125 = vmatpush1.bf16.msra.mxu0 0
        %5126 = vmatprep.subr.bf16.mxu0 0
        %5127 = vmatpush1.bf16.msra.mxu0 0
        %5128 = vmatprep.subr.bf16.mxu0 0
        %5129 = vmatpush1.bf16.msra.mxu0 0
        %5130 = vmatprep.subr.bf16.mxu0 0
        %5131 = vmatpush1.bf16.msra.mxu0 0
        %5132 = vmatprep.subr.bf16.mxu0 0
        %5133 = vmatpush1.bf16.msra.mxu0 0
        %5134 = vmatprep.subr.bf16.mxu0 0
        %5135 = vmatpush1.bf16.msra.mxu0 0
        %5136 = vmatprep.subr.bf16.mxu0 0
        %5137 = vmatpush1.bf16.msra.mxu0 %v5120
        %5138 = vmatprep.subr.bf16.mxu0 0
        %5139 = vmatpush2.bf16.msra.mxu0 0
        %5140 = vmatprep.subr.bf16.mxu0 0
        %5141 = vmatpush2.bf16.msra.mxu0 0
        %5142 = vmatprep.subr.bf16.mxu0 0
        %5143 = vmatpush2.bf16.msra.mxu0 0
        %5144 = vmatprep.subr.bf16.mxu0 0
        %5145 = vmatpush2.bf16.msra.mxu0 0
        %5146 = vmatprep.subr.bf16.mxu0 0
        %5147 = vmatpush2.bf16.msra.mxu0 0
        %5148 = vmatprep.subr.bf16.mxu0 0
        %5149 = vmatpush2.bf16.msra.mxu0 0
        %5150 = vmatprep.subr.bf16.mxu0 0
        %5151 = vmatpush2.bf16.msra.mxu0 0
        %5152 = vmatprep.subr.bf16.mxu0 0
        %5153 = vmatpush2.bf16.msra.mxu0 0
        %5154 = vmatprep.mubr.bf16.mxu0 0
        %5155 = vmatmul.mubr.bf16.gmra.mxu0 %v5096
        %v5156 = vpop.f32.mrf.mxu0
        %v5157 = vadd.f32 0.0, %v5156
        %v5158 = vpop.f32.mrf.mxu0
        %v5159 = vpop.f32.mrf.mxu0
        %v5160 = vadd.f32 0.0, %v5159
        %v5161 = vpop.f32.mrf.mxu0
        %5162 = vmatprep.mubr.bf16.mxu0 0
        %5163 = vmatmul.mubr.bf16.gmra.mxu0 %v5099
        %v5164 = vpop.f32.mrf.mxu0
        %v5165 = vadd.f32 0.0, %v5164
        %v5166 = vpop.f32.mrf.mxu0
        %v5167 = vpop.f32.mrf.mxu0
        %v5168 = vadd.f32 0.0, %v5167
        %v5169 = vpop.f32.mrf.mxu0
        %5170 = vmatprep.mubr.bf16.mxu0 0
        %5171 = vmatmul.mubr.bf16.gmra.mxu0 %v5102
        %v5172 = vpop.f32.mrf.mxu0
        %v5173 = vadd.f32 0.0, %v5172
        %v5174 = vpop.f32.mrf.mxu0
        %v5175 = vpop.f32.mrf.mxu0
        %v5176 = vadd.f32 0.0, %v5175
        %v5177 = vpop.f32.mrf.mxu0
        %5178 = vmatprep.mubr.bf16.mxu0 0
        %5179 = vmatmul.mubr.bf16.gmra.mxu0 %v5105
        %v5180 = vpop.f32.mrf.mxu0
        %v5181 = vadd.f32 0.0, %v5180
        %v5182 = vpop.f32.mrf.mxu0
        %v5183 = vpop.f32.mrf.mxu0
        %v5184 = vadd.f32 0.0, %v5183
        %v5185 = vpop.f32.mrf.mxu0
        %5186 = vmatprep.mubr.bf16.mxu0 0
        %5187 = vmatmul.mubr.bf16.gmra.mxu0 %v5108
        %v5188 = vpop.f32.mrf.mxu0
        %v5189 = vadd.f32 0.0, %v5188
        %v5190 = vpop.f32.mrf.mxu0
        %v5191 = vpop.f32.mrf.mxu0
        %v5192 = vadd.f32 0.0, %v5191
        %v5193 = vpop.f32.mrf.mxu0
        %5194 = vmatprep.mubr.bf16.mxu0 0
        %5195 = vmatmul.mubr.bf16.gmra.mxu0 %v5111
        %v5196 = vpop.f32.mrf.mxu0
        %v5197 = vadd.f32 0.0, %v5196
        %v5198 = vpop.f32.mrf.mxu0
        %v5199 = vpop.f32.mrf.mxu0
        %v5200 = vadd.f32 0.0, %v5199
        %v5201 = vpop.f32.mrf.mxu0
        %5202 = vmatprep.mubr.bf16.mxu0 0
        %5203 = vmatmul.mubr.bf16.gmra.mxu0 %v5114
        %v5204 = vpop.f32.mrf.mxu0
        %v5205 = vadd.f32 0.0, %v5204
        %v5206 = vpop.f32.mrf.mxu0
        %v5207 = vpop.f32.mrf.mxu0
        %v5208 = vadd.f32 0.0, %v5207
        %v5209 = vpop.f32.mrf.mxu0
        %5210 = vmatprep.mubr.bf16.mxu0 0
        %5211 = vmatmul.mubr.bf16.gmra.mxu0 %v5117
        %v5212 = vpop.f32.mrf.mxu0
        %v5213 = vadd.f32 0.0, %v5212
        %v5214 = vpop.f32.mrf.mxu0
        %v5215 = vpop.f32.mrf.mxu0
        %v5216 = vadd.f32 0.0, %v5215
        %v5217 = vpop.f32.mrf.mxu0
        %5218 = vdwg.mxu0
        %v5219 = vadd.f32 %v5007, %v5157
        %v5220 = vadd.f32 %v5010, %v5160
        %v5221 = vadd.f32 %v5015, %v5165
        %v5222 = vadd.f32 %v5018, %v5168
        %v5223 = vadd.f32 %v5023, %v5173
        %v5224 = vadd.f32 %v5026, %v5176
        %v5225 = vadd.f32 %v5031, %v5181
        %v5226 = vadd.f32 %v5034, %v5184
        %v5227 = vadd.f32 %v5039, %v5189
        %v5228 = vadd.f32 %v5042, %v5192
        %v5229 = vadd.f32 %v5047, %v5197
        %v5230 = vadd.f32 %v5050, %v5200
        %v5231 = vadd.f32 %v5055, %v5205
        %v5232 = vadd.f32 %v5058, %v5208
        %v5233 = vadd.f32 %v5063, %v5213
        %v5234 = vadd.f32 %v5066, %v5216
        %v5235 = vld [vmem:[%s475] sm:$0xff]
        %v5236 = vld [vmem:[%s475 + $0x8] sm:$0xff]
        %v5237 = vld [vmem:[%s475 + $0x18] sm:$0xff]
        %v5238 = vld [vmem:[%s475 + $0x20] sm:$0xff]
        %v5239 = vld [vmem:[%s475 + $0x30] sm:$0xff]
        %v5240 = vld [vmem:[%s475 + $0x38] sm:$0xff]
        %v5241 = vld [vmem:[%s475 + $0x48] sm:$0xff]
        %v5242 = vld [vmem:[%s475 + $0x50] sm:$0xff]
        %v5243 = vld [vmem:[%s475 + $0x60] sm:$0xff]
        %v5244 = vld [vmem:[%s475 + $0x68] sm:$0xff]
        %v5245 = vld [vmem:[%s475 + $0x78] sm:$0xff]
        %v5246 = vld [vmem:[%s475 + $0x80] sm:$0xff]
        %v5247 = vld [vmem:[%s475 + $0x90] sm:$0xff]
        %v5248 = vld [vmem:[%s475 + $0x98] sm:$0xff]
        %v5249 = vld [vmem:[%s475 + $0xa8] sm:$0xff]
        %v5250 = vld [vmem:[%s475 + $0xb0] sm:$0xff]
        %v5251 = vpack.c.bf16 %v5236, %v5235
        %v5252 = vpack.c.bf16 %v5238, %v5237
        %v5253 = vpack.c.bf16 %v5240, %v5239
        %v5254 = vpack.c.bf16 %v5242, %v5241
        %v5255 = vpack.c.bf16 %v5244, %v5243
        %v5256 = vpack.c.bf16 %v5246, %v5245
        %v5257 = vpack.c.bf16 %v5248, %v5247
        %v5258 = vpack.c.bf16 %v5250, %v5249
        %s5259 = scalar_lea.vmem %s3, 6
        %v5260 = vld [vmem:[%s5259] sm:$0x3]
        %v5262 = vsel %vm466, %v5251, 0
        %v5265 = vsel %vm466, %v5252, 0
        %v5268 = vsel %vm466, %v5253, 0
        %v5271 = vsel %vm466, %v5254, 0
        %v5274 = vsel %vm466, %v5255, 0
        %v5277 = vsel %vm466, %v5256, 0
        %v5280 = vsel %vm466, %v5257, 0
        %v5283 = vsel %vm466, %v5258, 0
        %v5286 = vsel %vm4844, %v5260, 0
        %5288 = vmatprep.subr.bf16.mxu0 0
        %5289 = vmatpush1.bf16.msra.mxu0 0
        %5290 = vmatprep.subr.bf16.mxu0 0
        %5291 = vmatpush1.bf16.msra.mxu0 0
        %5292 = vmatprep.subr.bf16.mxu0 0
        %5293 = vmatpush1.bf16.msra.mxu0 0
        %5294 = vmatprep.subr.bf16.mxu0 0
        %5295 = vmatpush1.bf16.msra.mxu0 0
        %5296 = vmatprep.subr.bf16.mxu0 0
        %5297 = vmatpush1.bf16.msra.mxu0 0
        %5298 = vmatprep.subr.bf16.mxu0 0
        %5299 = vmatpush1.bf16.msra.mxu0 0
        %5300 = vmatprep.subr.bf16.mxu0 0
        %5301 = vmatpush1.bf16.msra.mxu0 0
        %5302 = vmatprep.subr.bf16.mxu0 0
        %5303 = vmatpush1.bf16.msra.mxu0 %v5286
        %5304 = vmatprep.subr.bf16.mxu0 0
        %5305 = vmatpush2.bf16.msra.mxu0 0
        %5306 = vmatprep.subr.bf16.mxu0 0
        %5307 = vmatpush2.bf16.msra.mxu0 0
        %5308 = vmatprep.subr.bf16.mxu0 0
        %5309 = vmatpush2.bf16.msra.mxu0 0
        %5310 = vmatprep.subr.bf16.mxu0 0
        %5311 = vmatpush2.bf16.msra.mxu0 0
        %5312 = vmatprep.subr.bf16.mxu0 0
        %5313 = vmatpush2.bf16.msra.mxu0 0
        %5314 = vmatprep.subr.bf16.mxu0 0
        %5315 = vmatpush2.bf16.msra.mxu0 0
        %5316 = vmatprep.subr.bf16.mxu0 0
        %5317 = vmatpush2.bf16.msra.mxu0 0
        %5318 = vmatprep.subr.bf16.mxu0 0
        %5319 = vmatpush2.bf16.msra.mxu0 0
        %5320 = vmatprep.mubr.bf16.mxu0 0
        %5321 = vmatmul.mubr.bf16.gmra.mxu0 %v5262
        %v5322 = vpop.f32.mrf.mxu0
        %v5323 = vadd.f32 0.0, %v5322
        %v5324 = vpop.f32.mrf.mxu0
        %v5325 = vpop.f32.mrf.mxu0
        %v5326 = vadd.f32 0.0, %v5325
        %v5327 = vpop.f32.mrf.mxu0
        %5328 = vmatprep.mubr.bf16.mxu0 0
        %5329 = vmatmul.mubr.bf16.gmra.mxu0 %v5265
        %v5330 = vpop.f32.mrf.mxu0
        %v5331 = vadd.f32 0.0, %v5330
        %v5332 = vpop.f32.mrf.mxu0
        %v5333 = vpop.f32.mrf.mxu0
        %v5334 = vadd.f32 0.0, %v5333
        %v5335 = vpop.f32.mrf.mxu0
        %5336 = vmatprep.mubr.bf16.mxu0 0
        %5337 = vmatmul.mubr.bf16.gmra.mxu0 %v5268
        %v5338 = vpop.f32.mrf.mxu0
        %v5339 = vadd.f32 0.0, %v5338
        %v5340 = vpop.f32.mrf.mxu0
        %v5341 = vpop.f32.mrf.mxu0
        %v5342 = vadd.f32 0.0, %v5341
        %v5343 = vpop.f32.mrf.mxu0
        %5344 = vmatprep.mubr.bf16.mxu0 0
        %5345 = vmatmul.mubr.bf16.gmra.mxu0 %v5271
        %v5346 = vpop.f32.mrf.mxu0
        %v5347 = vadd.f32 0.0, %v5346
        %v5348 = vpop.f32.mrf.mxu0
        %v5349 = vpop.f32.mrf.mxu0
        %v5350 = vadd.f32 0.0, %v5349
        %v5351 = vpop.f32.mrf.mxu0
        %5352 = vmatprep.mubr.bf16.mxu0 0
        %5353 = vmatmul.mubr.bf16.gmra.mxu0 %v5274
        %v5354 = vpop.f32.mrf.mxu0
        %v5355 = vadd.f32 0.0, %v5354
        %v5356 = vpop.f32.mrf.mxu0
        %v5357 = vpop.f32.mrf.mxu0
        %v5358 = vadd.f32 0.0, %v5357
        %v5359 = vpop.f32.mrf.mxu0
        %5360 = vmatprep.mubr.bf16.mxu0 0
        %5361 = vmatmul.mubr.bf16.gmra.mxu0 %v5277
        %v5362 = vpop.f32.mrf.mxu0
        %v5363 = vadd.f32 0.0, %v5362
        %v5364 = vpop.f32.mrf.mxu0
        %v5365 = vpop.f32.mrf.mxu0
        %v5366 = vadd.f32 0.0, %v5365
        %v5367 = vpop.f32.mrf.mxu0
        %5368 = vmatprep.mubr.bf16.mxu0 0
        %5369 = vmatmul.mubr.bf16.gmra.mxu0 %v5280
        %v5370 = vpop.f32.mrf.mxu0
        %v5371 = vadd.f32 0.0, %v5370
        %v5372 = vpop.f32.mrf.mxu0
        %v5373 = vpop.f32.mrf.mxu0
        %v5374 = vadd.f32 0.0, %v5373
        %v5375 = vpop.f32.mrf.mxu0
        %5376 = vmatprep.mubr.bf16.mxu0 0
        %5377 = vmatmul.mubr.bf16.gmra.mxu0 %v5283
        %v5378 = vpop.f32.mrf.mxu0
        %v5379 = vadd.f32 0.0, %v5378
        %v5380 = vpop.f32.mrf.mxu0
        %v5381 = vpop.f32.mrf.mxu0
        %v5382 = vadd.f32 0.0, %v5381
        %v5383 = vpop.f32.mrf.mxu0
        %5384 = vdwg.mxu0
        %v5385 = vadd.f32 %v5219, %v5323
        %v5386 = vadd.f32 %v5220, %v5326
        %v5387 = vadd.f32 %v5221, %v5331
        %v5388 = vadd.f32 %v5222, %v5334
        %v5389 = vadd.f32 %v5223, %v5339
        %v5390 = vadd.f32 %v5224, %v5342
        %v5391 = vadd.f32 %v5225, %v5347
        %v5392 = vadd.f32 %v5226, %v5350
        %v5393 = vadd.f32 %v5227, %v5355
        %v5394 = vadd.f32 %v5228, %v5358
        %v5395 = vadd.f32 %v5229, %v5363
        %v5396 = vadd.f32 %v5230, %v5366
        %v5397 = vadd.f32 %v5231, %v5371
        %v5398 = vadd.f32 %v5232, %v5374
        %v5399 = vadd.f32 %v5233, %v5379
        %v5400 = vadd.f32 %v5234, %v5382
        %v5401 = vld [vmem:[%s475 + $0x1] sm:$0xff]
        %v5402 = vld [vmem:[%s475 + $0x9] sm:$0xff]
        %v5403 = vld [vmem:[%s475 + $0x19] sm:$0xff]
        %v5404 = vld [vmem:[%s475 + $0x21] sm:$0xff]
        %v5405 = vld [vmem:[%s475 + $0x31] sm:$0xff]
        %v5406 = vld [vmem:[%s475 + $0x39] sm:$0xff]
        %v5407 = vld [vmem:[%s475 + $0x49] sm:$0xff]
        %v5408 = vld [vmem:[%s475 + $0x51] sm:$0xff]
        %v5409 = vld [vmem:[%s475 + $0x61] sm:$0xff]
        %v5410 = vld [vmem:[%s475 + $0x69] sm:$0xff]
        %v5411 = vld [vmem:[%s475 + $0x79] sm:$0xff]
        %v5412 = vld [vmem:[%s475 + $0x81] sm:$0xff]
        %v5413 = vld [vmem:[%s475 + $0x91] sm:$0xff]
        %v5414 = vld [vmem:[%s475 + $0x99] sm:$0xff]
        %v5415 = vld [vmem:[%s475 + $0xa9] sm:$0xff]
        %v5416 = vld [vmem:[%s475 + $0xb1] sm:$0xff]
        %v5417 = vpack.c.bf16 %v5402, %v5401
        %v5418 = vpack.c.bf16 %v5404, %v5403
        %v5419 = vpack.c.bf16 %v5406, %v5405
        %v5420 = vpack.c.bf16 %v5408, %v5407
        %v5421 = vpack.c.bf16 %v5410, %v5409
        %v5422 = vpack.c.bf16 %v5412, %v5411
        %v5423 = vpack.c.bf16 %v5414, %v5413
        %v5424 = vpack.c.bf16 %v5416, %v5415
        %s5425 = scalar_lea.vmem %s3, 8
        %v5426 = vld [vmem:[%s5425] sm:$0x3]
        %v5428 = vsel %vm466, %v5417, 0
        %v5431 = vsel %vm466, %v5418, 0
        %v5434 = vsel %vm466, %v5419, 0
        %v5437 = vsel %vm466, %v5420, 0
        %v5440 = vsel %vm466, %v5421, 0
        %v5443 = vsel %vm466, %v5422, 0
        %v5446 = vsel %vm466, %v5423, 0
        %v5449 = vsel %vm466, %v5424, 0
        %v5452 = vsel %vm4844, %v5426, 0
        %5454 = vmatprep.subr.bf16.mxu0 0
        %5455 = vmatpush1.bf16.msra.mxu0 0
        %5456 = vmatprep.subr.bf16.mxu0 0
        %5457 = vmatpush1.bf16.msra.mxu0 0
        %5458 = vmatprep.subr.bf16.mxu0 0
        %5459 = vmatpush1.bf16.msra.mxu0 0
        %5460 = vmatprep.subr.bf16.mxu0 0
        %5461 = vmatpush1.bf16.msra.mxu0 0
        %5462 = vmatprep.subr.bf16.mxu0 0
        %5463 = vmatpush1.bf16.msra.mxu0 0
        %5464 = vmatprep.subr.bf16.mxu0 0
        %5465 = vmatpush1.bf16.msra.mxu0 0
        %5466 = vmatprep.subr.bf16.mxu0 0
        %5467 = vmatpush1.bf16.msra.mxu0 0
        %5468 = vmatprep.subr.bf16.mxu0 0
        %5469 = vmatpush1.bf16.msra.mxu0 %v5452
        %5470 = vmatprep.subr.bf16.mxu0 0
        %5471 = vmatpush2.bf16.msra.mxu0 0
        %5472 = vmatprep.subr.bf16.mxu0 0
        %5473 = vmatpush2.bf16.msra.mxu0 0
        %5474 = vmatprep.subr.bf16.mxu0 0
        %5475 = vmatpush2.bf16.msra.mxu0 0
        %5476 = vmatprep.subr.bf16.mxu0 0
        %5477 = vmatpush2.bf16.msra.mxu0 0
        %5478 = vmatprep.subr.bf16.mxu0 0
        %5479 = vmatpush2.bf16.msra.mxu0 0
        %5480 = vmatprep.subr.bf16.mxu0 0
        %5481 = vmatpush2.bf16.msra.mxu0 0
        %5482 = vmatprep.subr.bf16.mxu0 0
        %5483 = vmatpush2.bf16.msra.mxu0 0
        %5484 = vmatprep.subr.bf16.mxu0 0
        %5485 = vmatpush2.bf16.msra.mxu0 0
        %5486 = vmatprep.mubr.bf16.mxu0 0
        %5487 = vmatmul.mubr.bf16.gmra.mxu0 %v5428
        %v5488 = vpop.f32.mrf.mxu0
        %v5489 = vadd.f32 0.0, %v5488
        %v5490 = vpop.f32.mrf.mxu0
        %v5491 = vpop.f32.mrf.mxu0
        %v5492 = vadd.f32 0.0, %v5491
        %v5493 = vpop.f32.mrf.mxu0
        %5494 = vmatprep.mubr.bf16.mxu0 0
        %5495 = vmatmul.mubr.bf16.gmra.mxu0 %v5431
        %v5496 = vpop.f32.mrf.mxu0
        %v5497 = vadd.f32 0.0, %v5496
        %v5498 = vpop.f32.mrf.mxu0
        %v5499 = vpop.f32.mrf.mxu0
        %v5500 = vadd.f32 0.0, %v5499
        %v5501 = vpop.f32.mrf.mxu0
        %5502 = vmatprep.mubr.bf16.mxu0 0
        %5503 = vmatmul.mubr.bf16.gmra.mxu0 %v5434
        %v5504 = vpop.f32.mrf.mxu0
        %v5505 = vadd.f32 0.0, %v5504
        %v5506 = vpop.f32.mrf.mxu0
        %v5507 = vpop.f32.mrf.mxu0
        %v5508 = vadd.f32 0.0, %v5507
        %v5509 = vpop.f32.mrf.mxu0
        %5510 = vmatprep.mubr.bf16.mxu0 0
        %5511 = vmatmul.mubr.bf16.gmra.mxu0 %v5437
        %v5512 = vpop.f32.mrf.mxu0
        %v5513 = vadd.f32 0.0, %v5512
        %v5514 = vpop.f32.mrf.mxu0
        %v5515 = vpop.f32.mrf.mxu0
        %v5516 = vadd.f32 0.0, %v5515
        %v5517 = vpop.f32.mrf.mxu0
        %5518 = vmatprep.mubr.bf16.mxu0 0
        %5519 = vmatmul.mubr.bf16.gmra.mxu0 %v5440
        %v5520 = vpop.f32.mrf.mxu0
        %v5521 = vadd.f32 0.0, %v5520
        %v5522 = vpop.f32.mrf.mxu0
        %v5523 = vpop.f32.mrf.mxu0
        %v5524 = vadd.f32 0.0, %v5523
        %v5525 = vpop.f32.mrf.mxu0
        %5526 = vmatprep.mubr.bf16.mxu0 0
        %5527 = vmatmul.mubr.bf16.gmra.mxu0 %v5443
        %v5528 = vpop.f32.mrf.mxu0
        %v5529 = vadd.f32 0.0, %v5528
        %v5530 = vpop.f32.mrf.mxu0
        %v5531 = vpop.f32.mrf.mxu0
        %v5532 = vadd.f32 0.0, %v5531
        %v5533 = vpop.f32.mrf.mxu0
        %5534 = vmatprep.mubr.bf16.mxu0 0
        %5535 = vmatmul.mubr.bf16.gmra.mxu0 %v5446
        %v5536 = vpop.f32.mrf.mxu0
        %v5537 = vadd.f32 0.0, %v5536
        %v5538 = vpop.f32.mrf.mxu0
        %v5539 = vpop.f32.mrf.mxu0
        %v5540 = vadd.f32 0.0, %v5539
        %v5541 = vpop.f32.mrf.mxu0
        %5542 = vmatprep.mubr.bf16.mxu0 0
        %5543 = vmatmul.mubr.bf16.gmra.mxu0 %v5449
        %v5544 = vpop.f32.mrf.mxu0
        %v5545 = vadd.f32 0.0, %v5544
        %v5546 = vpop.f32.mrf.mxu0
        %v5547 = vpop.f32.mrf.mxu0
        %v5548 = vadd.f32 0.0, %v5547
        %v5549 = vpop.f32.mrf.mxu0
        %5550 = vdwg.mxu0
        %v5551 = vadd.f32 %v5385, %v5489
        %v5552 = vadd.f32 %v5386, %v5492
        %v5553 = vadd.f32 %v5387, %v5497
        %v5554 = vadd.f32 %v5388, %v5500
        %v5555 = vadd.f32 %v5389, %v5505
        %v5556 = vadd.f32 %v5390, %v5508
        %v5557 = vadd.f32 %v5391, %v5513
        %v5558 = vadd.f32 %v5392, %v5516
        %v5559 = vadd.f32 %v5393, %v5521
        %v5560 = vadd.f32 %v5394, %v5524
        %v5561 = vadd.f32 %v5395, %v5529
        %v5562 = vadd.f32 %v5396, %v5532
        %v5563 = vadd.f32 %v5397, %v5537
        %v5564 = vadd.f32 %v5398, %v5540
        %v5565 = vadd.f32 %v5399, %v5545
        %v5566 = vadd.f32 %v5400, %v5548
        %v5567 = vld [vmem:[%s475 + $0x2] sm:$0xff]
        %v5568 = vld [vmem:[%s475 + $0xa] sm:$0xff]
        %v5569 = vld [vmem:[%s475 + $0x1a] sm:$0xff]
        %v5570 = vld [vmem:[%s475 + $0x22] sm:$0xff]
        %v5571 = vld [vmem:[%s475 + $0x32] sm:$0xff]
        %v5572 = vld [vmem:[%s475 + $0x3a] sm:$0xff]
        %v5573 = vld [vmem:[%s475 + $0x4a] sm:$0xff]
        %v5574 = vld [vmem:[%s475 + $0x52] sm:$0xff]
        %v5575 = vld [vmem:[%s475 + $0x62] sm:$0xff]
        %v5576 = vld [vmem:[%s475 + $0x6a] sm:$0xff]
        %v5577 = vld [vmem:[%s475 + $0x7a] sm:$0xff]
        %v5578 = vld [vmem:[%s475 + $0x82] sm:$0xff]
        %v5579 = vld [vmem:[%s475 + $0x92] sm:$0xff]
        %v5580 = vld [vmem:[%s475 + $0x9a] sm:$0xff]
        %v5581 = vld [vmem:[%s475 + $0xaa] sm:$0xff]
        %v5582 = vld [vmem:[%s475 + $0xb2] sm:$0xff]
        %v5583 = vpack.c.bf16 %v5568, %v5567
        %v5584 = vpack.c.bf16 %v5570, %v5569
        %v5585 = vpack.c.bf16 %v5572, %v5571
        %v5586 = vpack.c.bf16 %v5574, %v5573
        %v5587 = vpack.c.bf16 %v5576, %v5575
        %v5588 = vpack.c.bf16 %v5578, %v5577
        %v5589 = vpack.c.bf16 %v5580, %v5579
        %v5590 = vpack.c.bf16 %v5582, %v5581
        %s5591 = scalar_lea.vmem %s3, 10
        %v5592 = vld [vmem:[%s5591] sm:$0x3]
        %v5594 = vsel %vm466, %v5583, 0
        %v5597 = vsel %vm466, %v5584, 0
        %v5600 = vsel %vm466, %v5585, 0
        %v5603 = vsel %vm466, %v5586, 0
        %v5606 = vsel %vm466, %v5587, 0
        %v5609 = vsel %vm466, %v5588, 0
        %v5612 = vsel %vm466, %v5589, 0
        %v5615 = vsel %vm466, %v5590, 0
        %v5618 = vsel %vm4844, %v5592, 0
        %5620 = vmatprep.subr.bf16.mxu0 0
        %5621 = vmatpush1.bf16.msra.mxu0 0
        %5622 = vmatprep.subr.bf16.mxu0 0
        %5623 = vmatpush1.bf16.msra.mxu0 0
        %5624 = vmatprep.subr.bf16.mxu0 0
        %5625 = vmatpush1.bf16.msra.mxu0 0
        %5626 = vmatprep.subr.bf16.mxu0 0
        %5627 = vmatpush1.bf16.msra.mxu0 0
        %5628 = vmatprep.subr.bf16.mxu0 0
        %5629 = vmatpush1.bf16.msra.mxu0 0
        %5630 = vmatprep.subr.bf16.mxu0 0
        %5631 = vmatpush1.bf16.msra.mxu0 0
        %5632 = vmatprep.subr.bf16.mxu0 0
        %5633 = vmatpush1.bf16.msra.mxu0 0
        %5634 = vmatprep.subr.bf16.mxu0 0
        %5635 = vmatpush1.bf16.msra.mxu0 %v5618
        %5636 = vmatprep.subr.bf16.mxu0 0
        %5637 = vmatpush2.bf16.msra.mxu0 0
        %5638 = vmatprep.subr.bf16.mxu0 0
        %5639 = vmatpush2.bf16.msra.mxu0 0
        %5640 = vmatprep.subr.bf16.mxu0 0
        %5641 = vmatpush2.bf16.msra.mxu0 0
        %5642 = vmatprep.subr.bf16.mxu0 0
        %5643 = vmatpush2.bf16.msra.mxu0 0
        %5644 = vmatprep.subr.bf16.mxu0 0
        %5645 = vmatpush2.bf16.msra.mxu0 0
        %5646 = vmatprep.subr.bf16.mxu0 0
        %5647 = vmatpush2.bf16.msra.mxu0 0
        %5648 = vmatprep.subr.bf16.mxu0 0
        %5649 = vmatpush2.bf16.msra.mxu0 0
        %5650 = vmatprep.subr.bf16.mxu0 0
        %5651 = vmatpush2.bf16.msra.mxu0 0
        %5652 = vmatprep.mubr.bf16.mxu0 0
        %5653 = vmatmul.mubr.bf16.gmra.mxu0 %v5594
        %v5654 = vpop.f32.mrf.mxu0
        %v5655 = vadd.f32 0.0, %v5654
        %v5656 = vpop.f32.mrf.mxu0
        %v5657 = vpop.f32.mrf.mxu0
        %v5658 = vadd.f32 0.0, %v5657
        %v5659 = vpop.f32.mrf.mxu0
        %5660 = vmatprep.mubr.bf16.mxu0 0
        %5661 = vmatmul.mubr.bf16.gmra.mxu0 %v5597
        %v5662 = vpop.f32.mrf.mxu0
        %v5663 = vadd.f32 0.0, %v5662
        %v5664 = vpop.f32.mrf.mxu0
        %v5665 = vpop.f32.mrf.mxu0
        %v5666 = vadd.f32 0.0, %v5665
        %v5667 = vpop.f32.mrf.mxu0
        %5668 = vmatprep.mubr.bf16.mxu0 0
        %5669 = vmatmul.mubr.bf16.gmra.mxu0 %v5600
        %v5670 = vpop.f32.mrf.mxu0
        %v5671 = vadd.f32 0.0, %v5670
        %v5672 = vpop.f32.mrf.mxu0
        %v5673 = vpop.f32.mrf.mxu0
        %v5674 = vadd.f32 0.0, %v5673
        %v5675 = vpop.f32.mrf.mxu0
        %5676 = vmatprep.mubr.bf16.mxu0 0
        %5677 = vmatmul.mubr.bf16.gmra.mxu0 %v5603
        %v5678 = vpop.f32.mrf.mxu0
        %v5679 = vadd.f32 0.0, %v5678
        %v5680 = vpop.f32.mrf.mxu0
        %v5681 = vpop.f32.mrf.mxu0
        %v5682 = vadd.f32 0.0, %v5681
        %v5683 = vpop.f32.mrf.mxu0
        %5684 = vmatprep.mubr.bf16.mxu0 0
        %5685 = vmatmul.mubr.bf16.gmra.mxu0 %v5606
        %v5686 = vpop.f32.mrf.mxu0
        %v5687 = vadd.f32 0.0, %v5686
        %v5688 = vpop.f32.mrf.mxu0
        %v5689 = vpop.f32.mrf.mxu0
        %v5690 = vadd.f32 0.0, %v5689
        %v5691 = vpop.f32.mrf.mxu0
        %5692 = vmatprep.mubr.bf16.mxu0 0
        %5693 = vmatmul.mubr.bf16.gmra.mxu0 %v5609
        %v5694 = vpop.f32.mrf.mxu0
        %v5695 = vadd.f32 0.0, %v5694
        %v5696 = vpop.f32.mrf.mxu0
        %v5697 = vpop.f32.mrf.mxu0
        %v5698 = vadd.f32 0.0, %v5697
        %v5699 = vpop.f32.mrf.mxu0
        %5700 = vmatprep.mubr.bf16.mxu0 0
        %5701 = vmatmul.mubr.bf16.gmra.mxu0 %v5612
        %v5702 = vpop.f32.mrf.mxu0
        %v5703 = vadd.f32 0.0, %v5702
        %v5704 = vpop.f32.mrf.mxu0
        %v5705 = vpop.f32.mrf.mxu0
        %v5706 = vadd.f32 0.0, %v5705
        %v5707 = vpop.f32.mrf.mxu0
        %5708 = vmatprep.mubr.bf16.mxu0 0
        %5709 = vmatmul.mubr.bf16.gmra.mxu0 %v5615
        %v5710 = vpop.f32.mrf.mxu0
        %v5711 = vadd.f32 0.0, %v5710
        %v5712 = vpop.f32.mrf.mxu0
        %v5713 = vpop.f32.mrf.mxu0
        %v5714 = vadd.f32 0.0, %v5713
        %v5715 = vpop.f32.mrf.mxu0
        %5716 = vdwg.mxu0
        %v5717 = vadd.f32 %v5551, %v5655
        %v5718 = vadd.f32 %v5552, %v5658
        %v5719 = vadd.f32 %v5553, %v5663
        %v5720 = vadd.f32 %v5554, %v5666
        %v5721 = vadd.f32 %v5555, %v5671
        %v5722 = vadd.f32 %v5556, %v5674
        %v5723 = vadd.f32 %v5557, %v5679
        %v5724 = vadd.f32 %v5558, %v5682
        %v5725 = vadd.f32 %v5559, %v5687
        %v5726 = vadd.f32 %v5560, %v5690
        %v5727 = vadd.f32 %v5561, %v5695
        %v5728 = vadd.f32 %v5562, %v5698
        %v5729 = vadd.f32 %v5563, %v5703
        %v5730 = vadd.f32 %v5564, %v5706
        %v5731 = vadd.f32 %v5565, %v5711
        %v5732 = vadd.f32 %v5566, %v5714
        %s5733 = scalar_lea.vmem [#allocation2], 48
        %v5734 = vld [vmem:[%s5733] sm:$0xff]
        %v5735 = vld [vmem:[%s5733 + $0x8] sm:$0xff]
        %v5736 = vld [vmem:[%s5733 + $0x18] sm:$0xff]
        %v5737 = vld [vmem:[%s5733 + $0x20] sm:$0xff]
        %v5738 = vld [vmem:[%s5733 + $0x30] sm:$0xff]
        %v5739 = vld [vmem:[%s5733 + $0x38] sm:$0xff]
        %v5740 = vld [vmem:[%s5733 + $0x48] sm:$0xff]
        %v5741 = vld [vmem:[%s5733 + $0x50] sm:$0xff]
        %v5742 = vld [vmem:[%s5733 + $0x60] sm:$0xff]
        %v5743 = vld [vmem:[%s5733 + $0x68] sm:$0xff]
        %v5744 = vld [vmem:[%s5733 + $0x78] sm:$0xff]
        %v5745 = vld [vmem:[%s5733 + $0x80] sm:$0xff]
        %v5746 = vld [vmem:[%s5733 + $0x90] sm:$0xff]
        %v5747 = vld [vmem:[%s5733 + $0x98] sm:$0xff]
        %v5748 = vld [vmem:[%s5733 + $0xa8] sm:$0xff]
        %v5749 = vld [vmem:[%s5733 + $0xb0] sm:$0xff]
        %v5750 = vpack.c.bf16 %v5735, %v5734
        %v5751 = vpack.c.bf16 %v5737, %v5736
        %v5752 = vpack.c.bf16 %v5739, %v5738
        %v5753 = vpack.c.bf16 %v5741, %v5740
        %v5754 = vpack.c.bf16 %v5743, %v5742
        %v5755 = vpack.c.bf16 %v5745, %v5744
        %v5756 = vpack.c.bf16 %v5747, %v5746
        %v5757 = vpack.c.bf16 %v5749, %v5748
        %s5758 = scalar_lea.vmem %s3, 12
        %v5759 = vld [vmem:[%s5758] sm:$0x3]
        %v5761 = vsel %vm466, %v5750, 0
        %v5764 = vsel %vm466, %v5751, 0
        %v5767 = vsel %vm466, %v5752, 0
        %v5770 = vsel %vm466, %v5753, 0
        %v5773 = vsel %vm466, %v5754, 0
        %v5776 = vsel %vm466, %v5755, 0
        %v5779 = vsel %vm466, %v5756, 0
        %v5782 = vsel %vm466, %v5757, 0
        %v5785 = vsel %vm4844, %v5759, 0
        %5787 = vmatprep.subr.bf16.mxu0 0
        %5788 = vmatpush1.bf16.msra.mxu0 0
        %5789 = vmatprep.subr.bf16.mxu0 0
        %5790 = vmatpush1.bf16.msra.mxu0 0
        %5791 = vmatprep.subr.bf16.mxu0 0
        %5792 = vmatpush1.bf16.msra.mxu0 0
        %5793 = vmatprep.subr.bf16.mxu0 0
        %5794 = vmatpush1.bf16.msra.mxu0 0
        %5795 = vmatprep.subr.bf16.mxu0 0
        %5796 = vmatpush1.bf16.msra.mxu0 0
        %5797 = vmatprep.subr.bf16.mxu0 0
        %5798 = vmatpush1.bf16.msra.mxu0 0
        %5799 = vmatprep.subr.bf16.mxu0 0
        %5800 = vmatpush1.bf16.msra.mxu0 0
        %5801 = vmatprep.subr.bf16.mxu0 0
        %5802 = vmatpush1.bf16.msra.mxu0 %v5785
        %5803 = vmatprep.subr.bf16.mxu0 0
        %5804 = vmatpush2.bf16.msra.mxu0 0
        %5805 = vmatprep.subr.bf16.mxu0 0
        %5806 = vmatpush2.bf16.msra.mxu0 0
        %5807 = vmatprep.subr.bf16.mxu0 0
        %5808 = vmatpush2.bf16.msra.mxu0 0
        %5809 = vmatprep.subr.bf16.mxu0 0
        %5810 = vmatpush2.bf16.msra.mxu0 0
        %5811 = vmatprep.subr.bf16.mxu0 0
        %5812 = vmatpush2.bf16.msra.mxu0 0
        %5813 = vmatprep.subr.bf16.mxu0 0
        %5814 = vmatpush2.bf16.msra.mxu0 0
        %5815 = vmatprep.subr.bf16.mxu0 0
        %5816 = vmatpush2.bf16.msra.mxu0 0
        %5817 = vmatprep.subr.bf16.mxu0 0
        %5818 = vmatpush2.bf16.msra.mxu0 0
        %5819 = vmatprep.mubr.bf16.mxu0 0
        %5820 = vmatmul.mubr.bf16.gmra.mxu0 %v5761
        %v5821 = vpop.f32.mrf.mxu0
        %v5822 = vadd.f32 0.0, %v5821
        %v5823 = vpop.f32.mrf.mxu0
        %v5824 = vpop.f32.mrf.mxu0
        %v5825 = vadd.f32 0.0, %v5824
        %v5826 = vpop.f32.mrf.mxu0
        %5827 = vmatprep.mubr.bf16.mxu0 0
        %5828 = vmatmul.mubr.bf16.gmra.mxu0 %v5764
        %v5829 = vpop.f32.mrf.mxu0
        %v5830 = vadd.f32 0.0, %v5829
        %v5831 = vpop.f32.mrf.mxu0
        %v5832 = vpop.f32.mrf.mxu0
        %v5833 = vadd.f32 0.0, %v5832
        %v5834 = vpop.f32.mrf.mxu0
        %5835 = vmatprep.mubr.bf16.mxu0 0
        %5836 = vmatmul.mubr.bf16.gmra.mxu0 %v5767
        %v5837 = vpop.f32.mrf.mxu0
        %v5838 = vadd.f32 0.0, %v5837
        %v5839 = vpop.f32.mrf.mxu0
        %v5840 = vpop.f32.mrf.mxu0
        %v5841 = vadd.f32 0.0, %v5840
        %v5842 = vpop.f32.mrf.mxu0
        %5843 = vmatprep.mubr.bf16.mxu0 0
        %5844 = vmatmul.mubr.bf16.gmra.mxu0 %v5770
        %v5845 = vpop.f32.mrf.mxu0
        %v5846 = vadd.f32 0.0, %v5845
        %v5847 = vpop.f32.mrf.mxu0
        %v5848 = vpop.f32.mrf.mxu0
        %v5849 = vadd.f32 0.0, %v5848
        %v5850 = vpop.f32.mrf.mxu0
        %5851 = vmatprep.mubr.bf16.mxu0 0
        %5852 = vmatmul.mubr.bf16.gmra.mxu0 %v5773
        %v5853 = vpop.f32.mrf.mxu0
        %v5854 = vadd.f32 0.0, %v5853
        %v5855 = vpop.f32.mrf.mxu0
        %v5856 = vpop.f32.mrf.mxu0
        %v5857 = vadd.f32 0.0, %v5856
        %v5858 = vpop.f32.mrf.mxu0
        %5859 = vmatprep.mubr.bf16.mxu0 0
        %5860 = vmatmul.mubr.bf16.gmra.mxu0 %v5776
        %v5861 = vpop.f32.mrf.mxu0
        %v5862 = vadd.f32 0.0, %v5861
        %v5863 = vpop.f32.mrf.mxu0
        %v5864 = vpop.f32.mrf.mxu0
        %v5865 = vadd.f32 0.0, %v5864
        %v5866 = vpop.f32.mrf.mxu0
        %5867 = vmatprep.mubr.bf16.mxu0 0
        %5868 = vmatmul.mubr.bf16.gmra.mxu0 %v5779
        %v5869 = vpop.f32.mrf.mxu0
        %v5870 = vadd.f32 0.0, %v5869
        %v5871 = vpop.f32.mrf.mxu0
        %v5872 = vpop.f32.mrf.mxu0
        %v5873 = vadd.f32 0.0, %v5872
        %v5874 = vpop.f32.mrf.mxu0
        %5875 = vmatprep.mubr.bf16.mxu0 0
        %5876 = vmatmul.mubr.bf16.gmra.mxu0 %v5782
        %v5877 = vpop.f32.mrf.mxu0
        %v5878 = vadd.f32 0.0, %v5877
        %v5879 = vpop.f32.mrf.mxu0
        %v5880 = vpop.f32.mrf.mxu0
        %v5881 = vadd.f32 0.0, %v5880
        %v5882 = vpop.f32.mrf.mxu0
        %5883 = vdwg.mxu0
        %v5884 = vadd.f32 %v5717, %v5822
        %v5885 = vadd.f32 %v5718, %v5825
        %v5886 = vadd.f32 %v5719, %v5830
        %v5887 = vadd.f32 %v5720, %v5833
        %v5888 = vadd.f32 %v5721, %v5838
        %v5889 = vadd.f32 %v5722, %v5841
        %v5890 = vadd.f32 %v5723, %v5846
        %v5891 = vadd.f32 %v5724, %v5849
        %v5892 = vadd.f32 %v5725, %v5854
        %v5893 = vadd.f32 %v5726, %v5857
        %v5894 = vadd.f32 %v5727, %v5862
        %v5895 = vadd.f32 %v5728, %v5865
        %v5896 = vadd.f32 %v5729, %v5870
        %v5897 = vadd.f32 %v5730, %v5873
        %v5898 = vadd.f32 %v5731, %v5878
        %v5899 = vadd.f32 %v5732, %v5881
        %v5900 = vld [vmem:[%s5733 + $0x1] sm:$0xff]
        %v5901 = vld [vmem:[%s5733 + $0x9] sm:$0xff]
        %v5902 = vld [vmem:[%s5733 + $0x19] sm:$0xff]
        %v5903 = vld [vmem:[%s5733 + $0x21] sm:$0xff]
        %v5904 = vld [vmem:[%s5733 + $0x31] sm:$0xff]
        %v5905 = vld [vmem:[%s5733 + $0x39] sm:$0xff]
        %v5906 = vld [vmem:[%s5733 + $0x49] sm:$0xff]
        %v5907 = vld [vmem:[%s5733 + $0x51] sm:$0xff]
        %v5908 = vld [vmem:[%s5733 + $0x61] sm:$0xff]
        %v5909 = vld [vmem:[%s5733 + $0x69] sm:$0xff]
        %v5910 = vld [vmem:[%s5733 + $0x79] sm:$0xff]
        %v5911 = vld [vmem:[%s5733 + $0x81] sm:$0xff]
        %v5912 = vld [vmem:[%s5733 + $0x91] sm:$0xff]
        %v5913 = vld [vmem:[%s5733 + $0x99] sm:$0xff]
        %v5914 = vld [vmem:[%s5733 + $0xa9] sm:$0xff]
        %v5915 = vld [vmem:[%s5733 + $0xb1] sm:$0xff]
        %v5916 = vpack.c.bf16 %v5901, %v5900
        %v5917 = vpack.c.bf16 %v5903, %v5902
        %v5918 = vpack.c.bf16 %v5905, %v5904
        %v5919 = vpack.c.bf16 %v5907, %v5906
        %v5920 = vpack.c.bf16 %v5909, %v5908
        %v5921 = vpack.c.bf16 %v5911, %v5910
        %v5922 = vpack.c.bf16 %v5913, %v5912
        %v5923 = vpack.c.bf16 %v5915, %v5914
        %s5924 = scalar_lea.vmem %s3, 14
        %v5925 = vld [vmem:[%s5924] sm:$0x3]
        %v5927 = vsel %vm466, %v5916, 0
        %v5930 = vsel %vm466, %v5917, 0
        %v5933 = vsel %vm466, %v5918, 0
        %v5936 = vsel %vm466, %v5919, 0
        %v5939 = vsel %vm466, %v5920, 0
        %v5942 = vsel %vm466, %v5921, 0
        %v5945 = vsel %vm466, %v5922, 0
        %v5948 = vsel %vm466, %v5923, 0
        %v5951 = vsel %vm4844, %v5925, 0
        %5953 = vmatprep.subr.bf16.mxu0 0
        %5954 = vmatpush1.bf16.msra.mxu0 0
        %5955 = vmatprep.subr.bf16.mxu0 0
        %5956 = vmatpush1.bf16.msra.mxu0 0
        %5957 = vmatprep.subr.bf16.mxu0 0
        %5958 = vmatpush1.bf16.msra.mxu0 0
        %5959 = vmatprep.subr.bf16.mxu0 0
        %5960 = vmatpush1.bf16.msra.mxu0 0
        %5961 = vmatprep.subr.bf16.mxu0 0
        %5962 = vmatpush1.bf16.msra.mxu0 0
        %5963 = vmatprep.subr.bf16.mxu0 0
        %5964 = vmatpush1.bf16.msra.mxu0 0
        %5965 = vmatprep.subr.bf16.mxu0 0
        %5966 = vmatpush1.bf16.msra.mxu0 0
        %5967 = vmatprep.subr.bf16.mxu0 0
        %5968 = vmatpush1.bf16.msra.mxu0 %v5951
        %5969 = vmatprep.subr.bf16.mxu0 0
        %5970 = vmatpush2.bf16.msra.mxu0 0
        %5971 = vmatprep.subr.bf16.mxu0 0
        %5972 = vmatpush2.bf16.msra.mxu0 0
        %5973 = vmatprep.subr.bf16.mxu0 0
        %5974 = vmatpush2.bf16.msra.mxu0 0
        %5975 = vmatprep.subr.bf16.mxu0 0
        %5976 = vmatpush2.bf16.msra.mxu0 0
        %5977 = vmatprep.subr.bf16.mxu0 0
        %5978 = vmatpush2.bf16.msra.mxu0 0
        %5979 = vmatprep.subr.bf16.mxu0 0
        %5980 = vmatpush2.bf16.msra.mxu0 0
        %5981 = vmatprep.subr.bf16.mxu0 0
        %5982 = vmatpush2.bf16.msra.mxu0 0
        %5983 = vmatprep.subr.bf16.mxu0 0
        %5984 = vmatpush2.bf16.msra.mxu0 0
        %5985 = vmatprep.mubr.bf16.mxu0 0
        %5986 = vmatmul.mubr.bf16.gmra.mxu0 %v5927
        %v5987 = vpop.f32.mrf.mxu0
        %v5988 = vadd.f32 0.0, %v5987
        %v5989 = vpop.f32.mrf.mxu0
        %v5990 = vpop.f32.mrf.mxu0
        %v5991 = vadd.f32 0.0, %v5990
        %v5992 = vpop.f32.mrf.mxu0
        %5993 = vmatprep.mubr.bf16.mxu0 0
        %5994 = vmatmul.mubr.bf16.gmra.mxu0 %v5930
        %v5995 = vpop.f32.mrf.mxu0
        %v5996 = vadd.f32 0.0, %v5995
        %v5997 = vpop.f32.mrf.mxu0
        %v5998 = vpop.f32.mrf.mxu0
        %v5999 = vadd.f32 0.0, %v5998
        %v6000 = vpop.f32.mrf.mxu0
        %6001 = vmatprep.mubr.bf16.mxu0 0
        %6002 = vmatmul.mubr.bf16.gmra.mxu0 %v5933
        %v6003 = vpop.f32.mrf.mxu0
        %v6004 = vadd.f32 0.0, %v6003
        %v6005 = vpop.f32.mrf.mxu0
        %v6006 = vpop.f32.mrf.mxu0
        %v6007 = vadd.f32 0.0, %v6006
        %v6008 = vpop.f32.mrf.mxu0
        %6009 = vmatprep.mubr.bf16.mxu0 0
        %6010 = vmatmul.mubr.bf16.gmra.mxu0 %v5936
        %v6011 = vpop.f32.mrf.mxu0
        %v6012 = vadd.f32 0.0, %v6011
        %v6013 = vpop.f32.mrf.mxu0
        %v6014 = vpop.f32.mrf.mxu0
        %v6015 = vadd.f32 0.0, %v6014
        %v6016 = vpop.f32.mrf.mxu0
        %6017 = vmatprep.mubr.bf16.mxu0 0
        %6018 = vmatmul.mubr.bf16.gmra.mxu0 %v5939
        %v6019 = vpop.f32.mrf.mxu0
        %v6020 = vadd.f32 0.0, %v6019
        %v6021 = vpop.f32.mrf.mxu0
        %v6022 = vpop.f32.mrf.mxu0
        %v6023 = vadd.f32 0.0, %v6022
        %v6024 = vpop.f32.mrf.mxu0
        %6025 = vmatprep.mubr.bf16.mxu0 0
        %6026 = vmatmul.mubr.bf16.gmra.mxu0 %v5942
        %v6027 = vpop.f32.mrf.mxu0
        %v6028 = vadd.f32 0.0, %v6027
        %v6029 = vpop.f32.mrf.mxu0
        %v6030 = vpop.f32.mrf.mxu0
        %v6031 = vadd.f32 0.0, %v6030
        %v6032 = vpop.f32.mrf.mxu0
        %6033 = vmatprep.mubr.bf16.mxu0 0
        %6034 = vmatmul.mubr.bf16.gmra.mxu0 %v5945
        %v6035 = vpop.f32.mrf.mxu0
        %v6036 = vadd.f32 0.0, %v6035
        %v6037 = vpop.f32.mrf.mxu0
        %v6038 = vpop.f32.mrf.mxu0
        %v6039 = vadd.f32 0.0, %v6038
        %v6040 = vpop.f32.mrf.mxu0
        %6041 = vmatprep.mubr.bf16.mxu0 0
        %6042 = vmatmul.mubr.bf16.gmra.mxu0 %v5948
        %v6043 = vpop.f32.mrf.mxu0
        %v6044 = vadd.f32 0.0, %v6043
        %v6045 = vpop.f32.mrf.mxu0
        %v6046 = vpop.f32.mrf.mxu0
        %v6047 = vadd.f32 0.0, %v6046
        %v6048 = vpop.f32.mrf.mxu0
        %6049 = vdwg.mxu0
        %v6050 = vadd.f32 %v5884, %v5988
        %v6051 = vadd.f32 %v5885, %v5991
        %v6052 = vadd.f32 %v5886, %v5996
        %v6053 = vadd.f32 %v5887, %v5999
        %v6054 = vadd.f32 %v5888, %v6004
        %v6055 = vadd.f32 %v5889, %v6007
        %v6056 = vadd.f32 %v5890, %v6012
        %v6057 = vadd.f32 %v5891, %v6015
        %v6058 = vadd.f32 %v5892, %v6020
        %v6059 = vadd.f32 %v5893, %v6023
        %v6060 = vadd.f32 %v5894, %v6028
        %v6061 = vadd.f32 %v5895, %v6031
        %v6062 = vadd.f32 %v5896, %v6036
        %v6063 = vadd.f32 %v5897, %v6039
        %v6064 = vadd.f32 %v5898, %v6044
        %v6065 = vadd.f32 %v5899, %v6047
        %v6066 = vld [vmem:[%s5733 + $0x2] sm:$0xff]
        %v6067 = vld [vmem:[%s5733 + $0xa] sm:$0xff]
        %v6068 = vld [vmem:[%s5733 + $0x1a] sm:$0xff]
        %v6069 = vld [vmem:[%s5733 + $0x22] sm:$0xff]
        %v6070 = vld [vmem:[%s5733 + $0x32] sm:$0xff]
        %v6071 = vld [vmem:[%s5733 + $0x3a] sm:$0xff]
        %v6072 = vld [vmem:[%s5733 + $0x4a] sm:$0xff]
        %v6073 = vld [vmem:[%s5733 + $0x52] sm:$0xff]
        %v6074 = vld [vmem:[%s5733 + $0x62] sm:$0xff]
        %v6075 = vld [vmem:[%s5733 + $0x6a] sm:$0xff]
        %v6076 = vld [vmem:[%s5733 + $0x7a] sm:$0xff]
        %v6077 = vld [vmem:[%s5733 + $0x82] sm:$0xff]
        %v6078 = vld [vmem:[%s5733 + $0x92] sm:$0xff]
        %v6079 = vld [vmem:[%s5733 + $0x9a] sm:$0xff]
        %v6080 = vld [vmem:[%s5733 + $0xaa] sm:$0xff]
        %v6081 = vld [vmem:[%s5733 + $0xb2] sm:$0xff]
        %v6082 = vpack.c.bf16 %v6067, %v6066
        %v6083 = vpack.c.bf16 %v6069, %v6068
        %v6084 = vpack.c.bf16 %v6071, %v6070
        %v6085 = vpack.c.bf16 %v6073, %v6072
        %v6086 = vpack.c.bf16 %v6075, %v6074
        %v6087 = vpack.c.bf16 %v6077, %v6076
        %v6088 = vpack.c.bf16 %v6079, %v6078
        %v6089 = vpack.c.bf16 %v6081, %v6080
        %s6090 = scalar_lea.vmem %s3, 16
        %v6091 = vld [vmem:[%s6090] sm:$0x3]
        %v6093 = vsel %vm466, %v6082, 0
        %v6096 = vsel %vm466, %v6083, 0
        %v6099 = vsel %vm466, %v6084, 0
        %v6102 = vsel %vm466, %v6085, 0
        %v6105 = vsel %vm466, %v6086, 0
        %v6108 = vsel %vm466, %v6087, 0
        %v6111 = vsel %vm466, %v6088, 0
        %v6114 = vsel %vm466, %v6089, 0
        %v6117 = vsel %vm4844, %v6091, 0
        %6119 = vmatprep.subr.bf16.mxu0 0
        %6120 = vmatpush1.bf16.msra.mxu0 0
        %6121 = vmatprep.subr.bf16.mxu0 0
        %6122 = vmatpush1.bf16.msra.mxu0 0
        %6123 = vmatprep.subr.bf16.mxu0 0
        %6124 = vmatpush1.bf16.msra.mxu0 0
        %6125 = vmatprep.subr.bf16.mxu0 0
        %6126 = vmatpush1.bf16.msra.mxu0 0
        %6127 = vmatprep.subr.bf16.mxu0 0
        %6128 = vmatpush1.bf16.msra.mxu0 0
        %6129 = vmatprep.subr.bf16.mxu0 0
        %6130 = vmatpush1.bf16.msra.mxu0 0
        %6131 = vmatprep.subr.bf16.mxu0 0
        %6132 = vmatpush1.bf16.msra.mxu0 0
        %6133 = vmatprep.subr.bf16.mxu0 0
        %6134 = vmatpush1.bf16.msra.mxu0 %v6117
        %6135 = vmatprep.subr.bf16.mxu0 0
        %6136 = vmatpush2.bf16.msra.mxu0 0
        %6137 = vmatprep.subr.bf16.mxu0 0
        %6138 = vmatpush2.bf16.msra.mxu0 0
        %6139 = vmatprep.subr.bf16.mxu0 0
        %6140 = vmatpush2.bf16.msra.mxu0 0
        %6141 = vmatprep.subr.bf16.mxu0 0
        %6142 = vmatpush2.bf16.msra.mxu0 0
        %6143 = vmatprep.subr.bf16.mxu0 0
        %6144 = vmatpush2.bf16.msra.mxu0 0
        %6145 = vmatprep.subr.bf16.mxu0 0
        %6146 = vmatpush2.bf16.msra.mxu0 0
        %6147 = vmatprep.subr.bf16.mxu0 0
        %6148 = vmatpush2.bf16.msra.mxu0 0
        %6149 = vmatprep.subr.bf16.mxu0 0
        %6150 = vmatpush2.bf16.msra.mxu0 0
        %6151 = vmatprep.mubr.bf16.mxu0 0
        %6152 = vmatmul.mubr.bf16.gmra.mxu0 %v6093
        %v6153 = vpop.f32.mrf.mxu0
        %v6154 = vadd.f32 0.0, %v6153
        %v6155 = vpop.f32.mrf.mxu0
        %v6156 = vpop.f32.mrf.mxu0
        %v6157 = vadd.f32 0.0, %v6156
        %v6158 = vpop.f32.mrf.mxu0
        %6159 = vmatprep.mubr.bf16.mxu0 0
        %6160 = vmatmul.mubr.bf16.gmra.mxu0 %v6096
        %v6161 = vpop.f32.mrf.mxu0
        %v6162 = vadd.f32 0.0, %v6161
        %v6163 = vpop.f32.mrf.mxu0
        %v6164 = vpop.f32.mrf.mxu0
        %v6165 = vadd.f32 0.0, %v6164
        %v6166 = vpop.f32.mrf.mxu0
        %6167 = vmatprep.mubr.bf16.mxu0 0
        %6168 = vmatmul.mubr.bf16.gmra.mxu0 %v6099
        %v6169 = vpop.f32.mrf.mxu0
        %v6170 = vadd.f32 0.0, %v6169
        %v6171 = vpop.f32.mrf.mxu0
        %v6172 = vpop.f32.mrf.mxu0
        %v6173 = vadd.f32 0.0, %v6172
        %v6174 = vpop.f32.mrf.mxu0
        %6175 = vmatprep.mubr.bf16.mxu0 0
        %6176 = vmatmul.mubr.bf16.gmra.mxu0 %v6102
        %v6177 = vpop.f32.mrf.mxu0
        %v6178 = vadd.f32 0.0, %v6177
        %v6179 = vpop.f32.mrf.mxu0
        %v6180 = vpop.f32.mrf.mxu0
        %v6181 = vadd.f32 0.0, %v6180
        %v6182 = vpop.f32.mrf.mxu0
        %6183 = vmatprep.mubr.bf16.mxu0 0
        %6184 = vmatmul.mubr.bf16.gmra.mxu0 %v6105
        %v6185 = vpop.f32.mrf.mxu0
        %v6186 = vadd.f32 0.0, %v6185
        %v6187 = vpop.f32.mrf.mxu0
        %v6188 = vpop.f32.mrf.mxu0
        %v6189 = vadd.f32 0.0, %v6188
        %v6190 = vpop.f32.mrf.mxu0
        %6191 = vmatprep.mubr.bf16.mxu0 0
        %6192 = vmatmul.mubr.bf16.gmra.mxu0 %v6108
        %v6193 = vpop.f32.mrf.mxu0
        %v6194 = vadd.f32 0.0, %v6193
        %v6195 = vpop.f32.mrf.mxu0
        %v6196 = vpop.f32.mrf.mxu0
        %v6197 = vadd.f32 0.0, %v6196
        %v6198 = vpop.f32.mrf.mxu0
        %6199 = vmatprep.mubr.bf16.mxu0 0
        %6200 = vmatmul.mubr.bf16.gmra.mxu0 %v6111
        %v6201 = vpop.f32.mrf.mxu0
        %v6202 = vadd.f32 0.0, %v6201
        %v6203 = vpop.f32.mrf.mxu0
        %v6204 = vpop.f32.mrf.mxu0
        %v6205 = vadd.f32 0.0, %v6204
        %v6206 = vpop.f32.mrf.mxu0
        %6207 = vmatprep.mubr.bf16.mxu0 0
        %6208 = vmatmul.mubr.bf16.gmra.mxu0 %v6114
        %v6209 = vpop.f32.mrf.mxu0
        %v6210 = vadd.f32 0.0, %v6209
        %v6211 = vpop.f32.mrf.mxu0
        %v6212 = vpop.f32.mrf.mxu0
        %v6213 = vadd.f32 0.0, %v6212
        %v6214 = vpop.f32.mrf.mxu0
        %6215 = vdwg.mxu0
        %v6216 = vadd.f32 %v6050, %v6154
        %v6217 = vadd.f32 %v6051, %v6157
        %v6218 = vadd.f32 %v6052, %v6162
        %v6219 = vadd.f32 %v6053, %v6165
        %v6220 = vadd.f32 %v6054, %v6170
        %v6221 = vadd.f32 %v6055, %v6173
        %v6222 = vadd.f32 %v6056, %v6178
        %v6223 = vadd.f32 %v6057, %v6181
        %v6224 = vadd.f32 %v6058, %v6186
        %v6225 = vadd.f32 %v6059, %v6189
        %v6226 = vadd.f32 %v6060, %v6194
        %v6227 = vadd.f32 %v6061, %v6197
        %v6228 = vadd.f32 %v6062, %v6202
        %v6229 = vadd.f32 %v6063, %v6205
        %v6230 = vadd.f32 %v6064, %v6210
        %v6231 = vadd.f32 %v6065, %v6213
        %v6232 = vld [vmem:[%s4] sm:$0x1]
        %v6234 = vlaneseq
        %v6235 = vshrl.u32 %v6234, 7
        %v6236 = vsub.s32 0, %v6235
        %v6237 = vrot.slane %v6232, %v6236
        %v6239 = vadd.f32 %v6216, %v6237
        %v6240 = vadd.f32 %v6217, %v6237
        %v6241 = vadd.f32 %v6218, %v6237
        %v6242 = vadd.f32 %v6219, %v6237
        %v6243 = vadd.f32 %v6220, %v6237
        %v6244 = vadd.f32 %v6221, %v6237
        %v6245 = vadd.f32 %v6222, %v6237
        %v6246 = vadd.f32 %v6223, %v6237
        %v6247 = vadd.f32 %v6224, %v6237
        %v6248 = vadd.f32 %v6225, %v6237
        %v6249 = vadd.f32 %v6226, %v6237
        %v6250 = vadd.f32 %v6227, %v6237
        %v6251 = vadd.f32 %v6228, %v6237
        %v6252 = vadd.f32 %v6229, %v6237
        %v6253 = vadd.f32 %v6230, %v6237
        %v6254 = vadd.f32 %v6231, %v6237
        %v6255 = vpack.c.bf16 %v6240, %v6239
        %v6256 = vpack.c.bf16 %v6242, %v6241
        %v6257 = vpack.c.bf16 %v6244, %v6243
        %v6258 = vpack.c.bf16 %v6246, %v6245
        %v6259 = vpack.c.bf16 %v6248, %v6247
        %v6260 = vpack.c.bf16 %v6250, %v6249
        %v6261 = vpack.c.bf16 %v6252, %v6251
        %v6262 = vpack.c.bf16 %v6254, %v6253
        %v6271 = vunpack.c.l.b16 %v6255
        %v6272 = vunpack.c.h.b16 %v6255
        %v6273 = vunpack.c.l.b16 %v6256
        %v6274 = vunpack.c.h.b16 %v6256
        %v6275 = vunpack.c.l.b16 %v6257
        %v6276 = vunpack.c.h.b16 %v6257
        %v6277 = vunpack.c.l.b16 %v6258
        %v6278 = vunpack.c.h.b16 %v6258
        %v6279 = vunpack.c.l.b16 %v6259
        %v6280 = vunpack.c.h.b16 %v6259
        %v6281 = vunpack.c.l.b16 %v6260
        %v6282 = vunpack.c.h.b16 %v6260
        %v6283 = vunpack.c.l.b16 %v6261
        %v6284 = vunpack.c.h.b16 %v6261
        %v6285 = vunpack.c.l.b16 %v6262
        %v6286 = vunpack.c.h.b16 %v6262
        %v6287 = vpack.c.b16 %v6271, %v6271
        %v6288 = vpack.c.b16 %v6272, %v6272
        %v6289 = vpack.c.b16 %v6273, %v6273
        %v6290 = vpack.c.b16 %v6274, %v6274
        %v6291 = vpack.c.b16 %v6275, %v6275
        %v6292 = vpack.c.b16 %v6276, %v6276
        %v6293 = vpack.c.b16 %v6277, %v6277
        %v6294 = vpack.c.b16 %v6278, %v6278
        %v6295 = vpack.c.b16 %v6279, %v6279
        %v6296 = vpack.c.b16 %v6280, %v6280
        %v6297 = vpack.c.b16 %v6281, %v6281
        %v6298 = vpack.c.b16 %v6282, %v6282
        %v6299 = vpack.c.b16 %v6283, %v6283
        %v6300 = vpack.c.b16 %v6284, %v6284
        %v6301 = vpack.c.b16 %v6285, %v6285
        %v6302 = vpack.c.b16 %v6286, %v6286
        %6319 = vst [vmem:[%s402] sm:$0xf] %v6287
        %6320 = vst [vmem:[%s402 + $0x4] sm:$0xf] %v6288
        %6321 = vst [vmem:[%s402 + $0x8] sm:$0xf] %v6289
        %6322 = vst [vmem:[%s402 + $0xc] sm:$0xf] %v6290
        %6323 = vst [vmem:[%s402 + $0x10] sm:$0xf] %v6291
        %6324 = vst [vmem:[%s402 + $0x14] sm:$0xf] %v6292
        %6325 = vst [vmem:[%s402 + $0x18] sm:$0xf] %v6293
        %6326 = vst [vmem:[%s402 + $0x1c] sm:$0xf] %v6294
        %6327 = vst [vmem:[%s402 + $0x20] sm:$0xf] %v6295
        %6328 = vst [vmem:[%s402 + $0x24] sm:$0xf] %v6296
        %6329 = vst [vmem:[%s402 + $0x28] sm:$0xf] %v6297
        %6330 = vst [vmem:[%s402 + $0x2c] sm:$0xf] %v6298
        %6331 = vst [vmem:[%s402 + $0x30] sm:$0xf] %v6299
        %6332 = vst [vmem:[%s402 + $0x34] sm:$0xf] %v6300
        %6333 = vst [vmem:[%s402 + $0x38] sm:$0xf] %v6301
        %6334 = vst [vmem:[%s402 + $0x3c] sm:$0xf] %v6302
        %v6335 = vadd.f32 %v6239, %v6240
        %v6336 = vadd.f32 %v6335, %v6241
        %v6337 = vadd.f32 %v6336, %v6242
        %v6338 = vadd.f32 %v6337, %v6243
        %v6339 = vadd.f32 %v6338, %v6244
        %v6340 = vadd.f32 %v6339, %v6245
        %v6341 = vadd.f32 %v6340, %v6246
        %v6342 = vadd.f32 %v6341, %v6247
        %v6343 = vadd.f32 %v6342, %v6248
        %v6344 = vadd.f32 %v6343, %v6249
        %v6345 = vadd.f32 %v6344, %v6250
        %v6346 = vadd.f32 %v6345, %v6251
        %v6347 = vadd.f32 %v6346, %v6252
        %v6348 = vadd.f32 %v6347, %v6253
        %v6349 = vadd.f32 %v6348, %v6254
        %v6350 = vrot.slane %v6349, 4
        %v6351 = vadd.f32 %v6349, %v6350
        %v6352 = vrot.slane %v6351, 2
        %v6353 = vadd.f32 %v6351, %v6352
        %v6354 = vrot.slane %v6353, 1
        %v6355 = vadd.f32 %v6353, %v6354
        %6356 = vst [vmem:[%s408] sm:$0x1] %v6355
        %v6357 = vmul.f32 %v6239, %v6239
        %v6358 = vmul.f32 %v6240, %v6240
        %v6359 = vmul.f32 %v6241, %v6241
        %v6360 = vmul.f32 %v6242, %v6242
        %v6361 = vmul.f32 %v6243, %v6243
        %v6362 = vmul.f32 %v6244, %v6244
        %v6363 = vmul.f32 %v6245, %v6245
        %v6364 = vmul.f32 %v6246, %v6246
        %v6365 = vmul.f32 %v6247, %v6247
        %v6366 = vmul.f32 %v6248, %v6248
        %v6367 = vmul.f32 %v6249, %v6249
        %v6368 = vmul.f32 %v6250, %v6250
        %v6369 = vmul.f32 %v6251, %v6251
        %v6370 = vmul.f32 %v6252, %v6252
        %v6371 = vmul.f32 %v6253, %v6253
        %v6372 = vmul.f32 %v6254, %v6254
        %v6373 = vadd.f32 %v6357, %v6358
        %v6374 = vadd.f32 %v6373, %v6359
        %v6375 = vadd.f32 %v6374, %v6360
        %v6376 = vadd.f32 %v6375, %v6361
        %v6377 = vadd.f32 %v6376, %v6362
        %v6378 = vadd.f32 %v6377, %v6363
        %v6379 = vadd.f32 %v6378, %v6364
        %v6380 = vadd.f32 %v6379, %v6365
        %v6381 = vadd.f32 %v6380, %v6366
        %v6382 = vadd.f32 %v6381, %v6367
        %v6383 = vadd.f32 %v6382, %v6368
        %v6384 = vadd.f32 %v6383, %v6369
        %v6385 = vadd.f32 %v6384, %v6370
        %v6386 = vadd.f32 %v6385, %v6371
        %v6387 = vadd.f32 %v6386, %v6372
        %v6388 = vrot.slane %v6387, 4
        %v6389 = vadd.f32 %v6387, %v6388
        %v6390 = vrot.slane %v6389, 2
        %v6391 = vadd.f32 %v6389, %v6390
        %v6392 = vrot.slane %v6391, 1
        %v6393 = vadd.f32 %v6391, %v6392
        %6394 = vst [vmem:[%s414] sm:$0x1] %v6393
        %s6395 = sand.u32 %s189, 1
        %s6396 = scalar_lea.sflag [#allocation4], %s6395
        %s6397 = sand.u32 %s189, 1
        %s6398 = smul.addr %s6397, 64
        %s6399 = scalar_lea.vmem [#allocation3], %s6398
        %s6400 = sand.u32 %s25, 1
        %s6401 = scalar_lea.sflag [#allocation6], %s6400
        %s6402 = sand.u32 %s217, 1
        %s6403 = scalar_lea.vmem [#allocation5], %s6402
        %s6404 = sand.u32 %s25, 1
        %s6405 = scalar_lea.sflag [#allocation6], %s6404
        %s6406 = sand.u32 %s245, 1
        %s6407 = scalar_lea.vmem [#allocation7], %s6406
        // Predicated region
        $region49: #{tpu_custom_call.1} parent=39 // pred_check
          %p6408 = pneg %p199
        $region50: #{tpu_custom_call.1} parent=39 // pred_check_branch
          %6410 = sbr.rel (%p6408) target = $region52
        $region51: #{tpu_custom_call.1} parent=39 // pred_region
          %s6411 = smul.u32 8, %s30
          %s6413 = ssub.s32 1024, 1024
          %6414 = vsyncadd %s6396, %s6413
          %s6415 = smul.addr %s6411, 2
          %s6416 = smul.addr %s29, 32
          %s6417 = sadd.s32 %s6415, %s6416
          %s6418 = smul.addr %s6417, 64
          %s6419 = scalar_lea.hbm %s5, %s6418
          %s6420 = sshll.u32 %s6399, 4
          %s6421 = int_to_ptr.vmem [resolvable:$true] %s6420
          %6426 = dma.vmem_to_hbm [thread:$0]  %s6421, 1024, %s6419, %s6396, 64, 64, 4
        $region52: #{tpu_custom_call.1} parent=39 // pred_fallthru
          _
        // Predicated region
        $region53: #{tpu_custom_call.1} parent=39 // pred_check
          %p6427 = pneg %p227
        $region54: #{tpu_custom_call.1} parent=39 // pred_check_branch
          %6429 = sbr.rel (%p6427) target = $region56
        $region55: #{tpu_custom_call.1} parent=39 // pred_region
          %s6431 = ssub.s32 16, 16
          %6432 = vsyncadd %s6401, %s6431
          %s6433 = smul.addr %s29, 2
          %s6434 = sadd.s32 %s30, %s6433
          %s6435 = smul.addr %s6434, 16
          %s6436 = scalar_lea.hbm %s6, %s6435
          %s6438 = sshll.u32 %s6403, 4
          %s6439 = int_to_ptr.vmem [resolvable:$true] %s6438
          %6441 = dma.vmem_to_hbm [thread:$0]  %s6439, 16, %s6436, %s6401
        $region56: #{tpu_custom_call.1} parent=39 // pred_fallthru
          _
        // Predicated region
        $region57: #{tpu_custom_call.1} parent=39 // pred_check
          %p6442 = pneg %p255
        $region58: #{tpu_custom_call.1} parent=39 // pred_check_branch
          %6444 = sbr.rel (%p6442) target = $region60
        $region59: #{tpu_custom_call.1} parent=39 // pred_region
          %s6446 = ssub.s32 16, 16
          %6447 = vsyncadd %s6405, %s6446
          %s6448 = smul.addr %s29, 2
          %s6449 = sadd.s32 %s30, %s6448
          %s6450 = smul.addr %s6449, 16
          %s6451 = scalar_lea.hbm %s7, %s6450
          %s6453 = sshll.u32 %s6407, 4
          %s6454 = int_to_ptr.vmem [resolvable:$true] %s6453
          %6456 = dma.vmem_to_hbm [thread:$0]  %s6454, 16, %s6451, %s6405
        $region60: #{tpu_custom_call.1} parent=39 // pred_fallthru
          _
      $region40: #{tpu_custom_call.1} parent=5 // pred_fallthru
        _
      %p6457 = scmp.le.s32.totalorder 2, %s20
      // Predicated region
      $region61: #{tpu_custom_call.1} parent=5 // pred_check
        %p6458 = pneg %p6457
      $region62: #{tpu_custom_call.1} parent=5 // pred_check_branch
        %6460 = sbr.rel (%p6458) target = $region64
      $region63: #{tpu_custom_call.1} parent=5 // pred_region
        %s6461 = ssub.s32 %s20, 2
        // Predicated region
        $region65: #{tpu_custom_call.1} parent=63 // pred_check
          %p6462 = pneg %p205
        $region66: #{tpu_custom_call.1} parent=63 // pred_check_branch
          %6464 = sbr.rel (%p6462) target = $region68
        $region67: #{tpu_custom_call.1} parent=63 // pred_region
          %s6465 = sand.u32 %s190, 1
          %s6466 = scalar_lea.sflag [#allocation4], %s6465
          %s6467 = sand.u32 %s190, 1
          %s6468 = smul.addr %s6467, 64
          %s6469 = scalar_lea.vmem [#allocation3], %s6468
          %6470 = dma.done %s6466, 1024
        $region68: #{tpu_custom_call.1} parent=63 // pred_fallthru
          _
        // Predicated region
        $region69: #{tpu_custom_call.1} parent=63 // pred_check
          %p6471 = pneg %p233
        $region70: #{tpu_custom_call.1} parent=63 // pred_check_branch
          %6473 = sbr.rel (%p6471) target = $region72
        $region71: #{tpu_custom_call.1} parent=63 // pred_region
          %s6474 = sand.u32 %s26, 1
          %s6475 = scalar_lea.sflag [#allocation6], %s6474
          %s6476 = sand.u32 %s218, 1
          %s6477 = scalar_lea.vmem [#allocation5], %s6476
          %6478 = dma.done %s6475, 16
        $region72: #{tpu_custom_call.1} parent=63 // pred_fallthru
          _
        // Predicated region
        $region73: #{tpu_custom_call.1} parent=63 // pred_check
          %p6479 = pneg %p261
        $region74: #{tpu_custom_call.1} parent=63 // pred_check_branch
          %6481 = sbr.rel (%p6479) target = $region76
        $region75: #{tpu_custom_call.1} parent=63 // pred_region
          %s6482 = sand.u32 %s26, 1
          %s6483 = scalar_lea.sflag [#allocation6], %s6482
          %s6484 = sand.u32 %s246, 1
          %s6485 = scalar_lea.vmem [#allocation7], %s6484
          %6486 = dma.done %s6483, 16
        $region76: #{tpu_custom_call.1} parent=63 // pred_fallthru
          _
      $region64: #{tpu_custom_call.1} parent=5 // pred_fallthru
        _
    $region6: #{tpu_custom_call.1} parent=1 // loop_footer
      %s24 = sadd.s32 1, %s20
    $region7: #{tpu_custom_call.1} parent=1 // loop_footer_branch
      %19 = sbr.rel target = $region3
    $region8: #{tpu_custom_call.1} parent=1 // loop_exit
      _
    %6487 = vsyncpa [#allocation4], 1
    %s6488 = scalar_lea.sflag [#allocation4], 1
    %6489 = vsyncpa %s6488, 1
    %6490 = vsyncpa [#allocation6], 1
    %s6491 = scalar_lea.sflag [#allocation6], 1
    %6492 = vsyncpa %s6491, 1

</llo_original>
